<compile_context>
chip_gen: v6e
topology: v6e:2x2x1
jax: 0.10.0
libtpu: 0.0.40
codegen_flags: <defaults>
</compile_context>

<pallas_src>
import functools

import jax
import jax.numpy as jnp
import numpy as np
from jax import lax
from jax.experimental import pallas as pl
from jax.experimental.pallas import tpu as pltpu

HIDDEN = 64           # real hidden size H
HIDDEN_PAD = 128      # padded per-gate lane width (vreg-aligned)
INPUT_SIZE = 3
INPUT_PAD = 128       # lane-padded input feature width
OUT_PAD = 128         # lane-padded output width (real output is column 0)
GATES = 4 * HIDDEN_PAD


def lstm_kernel(x2d_ref, w_ih0p_ref, b0p_ref, w_hh0p_ref,
                w1p_ref, b1p_ref, w_outp_ref, b_outp_ref,
                out_ref, gx0_ref, h2_ref, *, batch, seq_len):
    HP = HIDDEN_PAD
    B = batch
    T = seq_len

    # ---- Hoisted layer-0 input projection: all timesteps in one matmul. ----
    gx0_ref[...] = (
        jnp.dot(x2d_ref[...], w_ih0p_ref[...],
                preferred_element_type=jnp.float32)
        + b0p_ref[...])

    w_hh0 = w_hh0p_ref[...]                       # (HP, G)
    w1 = w1p_ref[...]                             # (2*HP, G) fused [w_ih1; w_hh1]
    b1 = jnp.broadcast_to(b1p_ref[...], (B, GATES))   # hoisted bias broadcast

    def activations(gates, c):
        # Each gate slice is a full, vreg-aligned 128-lane chunk.
        i = jax.nn.sigmoid(gates[:, 0 * HP:1 * HP])
        f = jax.nn.sigmoid(gates[:, 1 * HP:2 * HP])
        g = jnp.tanh(gates[:, 2 * HP:3 * HP])
        o = jax.nn.sigmoid(gates[:, 3 * HP:4 * HP])
        c_new = f * c + i * g
        h_new = o * jnp.tanh(c_new)
        return h_new, c_new

    def step(t, carry):
        h1, c1, h2, c2 = carry                    # each (B, HP)
        row = pl.multiple_of(t * B, 8)
        # Layer 0: input part precomputed; only the recurrent matmul remains.
        gates0 = gx0_ref[pl.ds(row, B), :] + jnp.dot(
            h1, w_hh0, preferred_element_type=jnp.float32)
        h1, c1 = activations(gates0, c1)
        # Layer 1: single fused K-concat matmul.
        xin1 = jnp.concatenate([h1, h2], axis=-1)  # (B, 2*HP)
        gates1 = jnp.dot(xin1, w1, preferred_element_type=jnp.float32) + b1
        h2, c2 = activations(gates1, c2)
        h2_ref[pl.ds(row, B), :] = h2
        return (h1, c1, h2, c2)

    zeros = jnp.zeros((B, HP), jnp.float32)
    lax.fori_loop(0, T, step, (zeros, zeros, zeros, zeros), unroll=True)

    # ---- Output Linear once over all T*B hidden states; one lane-dense store. ----
    y = (jnp.dot(h2_ref[...], w_outp_ref[...],
                 preferred_element_type=jnp.float32)
         + b_outp_ref[...])
    out_ref[...] = y.astype(out_ref.dtype)


def rnn_forward(x, kparams):
    """x: (B, T, 3) float32, batch_first like the PyTorch module. Returns (B, T, 1)."""
    B, T, _ = x.shape
    B_pad = ((B + 7) // 8) * 8

    # Wrapper-side layout plumbing: time-major, batch padded to a sublane
    # multiple, features zero-padded to a full 128-lane width, flattened to
    # (T*B_pad, 128) so every kernel load / matmul operand is vreg-aligned.
    x_tm = jnp.transpose(x, (1, 0, 2))
    x_tm = jnp.pad(x_tm, ((0, 0), (0, B_pad - B), (0, INPUT_PAD - INPUT_SIZE)))
    x2d = jnp.reshape(x_tm, (T * B_pad, INPUT_PAD))

    vmem = pl.BlockSpec(memory_space=pltpu.MemorySpace.VMEM)
    kernel = functools.partial(lstm_kernel, batch=B_pad, seq_len=T)
    # TODO(synk): at larger batch / sequence sizes, add a batch-parallel grid axis
    # (v7x has 2 TensorCores) and tile the time axis instead of whole-sequence
    # VMEM residency; unnecessary at these toy shapes.
    out2d = pl.pallas_call(
        kernel,
        out_shape=jax.ShapeDtypeStruct((T * B_pad, OUT_PAD), jnp.float32),
        in_specs=[vmem] * 8,
        out_specs=vmem,
        scratch_shapes=[
            pltpu.VMEM((T * B_pad, GATES), jnp.float32),       # hoisted layer-0 input proj
            pltpu.VMEM((T * B_pad, HIDDEN_PAD), jnp.float32),  # h2 history
        ],
    )(x2d,
      kparams["w_ih0p"], kparams["b0p"], kparams["w_hh0p"],
      kparams["w1p"], kparams["b1p"], kparams["w_outp"], kparams["b_outp"])

    out = jnp.reshape(out2d[:, :1], (T, B_pad, 1))[:, :B, :]
    return jnp.transpose(out, (1, 0, 2))


def init_params(key):
    """Deterministic init mirroring PyTorch's uniform(-1/sqrt(H), 1/sqrt(H)).

    Shapes are the transposed PyTorch weights: (in_features, 4*H) with gate
    order [i, f, g, o]; biases are the summed (b_ih + b_hh) rows (1, 4*H).
    """
    H = HIDDEN
    keys = jax.random.split(key, 10)
    bound = 1.0 / (H ** 0.5)

    def u(k, shape, b):
        return jax.random.uniform(k, shape, jnp.float32, -b, b)

    return {
        "w_ih0": u(keys[0], (INPUT_SIZE, 4 * H), bound),
        "w_hh0": u(keys[1], (H, 4 * H), bound),
        "b0":    u(keys[2], (1, 4 * H), bound) + u(keys[3], (1, 4 * H), bound),
        "w_ih1": u(keys[4], (H, 4 * H), bound),
        "w_hh1": u(keys[5], (H, 4 * H), bound),
        "b1":    u(keys[6], (1, 4 * H), bound) + u(keys[7], (1, 4 * H), bound),
        "w_out": u(keys[8], (H, 1), bound),
        "b_out": u(keys[9], (1, 1), bound),
    }


def prepare_params(p):
    """One-time re-layout: pad each gate to 128 lanes, pad hidden/input rows to
    128, pre-stack layer-1's input/recurrent weights for the fused K-concat dot,
    and lane-pad the output head so the final store is lane-dense."""
    H, HP = HIDDEN, HIDDEN_PAD

    def pad_cols(w):  # (in, 4H) -> (in, 4HP), gate k in cols [k*HP, k*HP+H)
        n_in = w.shape[0]
        out = jnp.zeros((n_in, 4 * HP), w.dtype)
        for k in range(4):
            out = out.at[:, k * HP:k * HP + H].set(w[:, k * H:(k + 1) * H])
        return out

    def pad_rows(w, rows):  # (r, c) -> (rows, c) with zero rows appended
        return jnp.concatenate(
            [w, jnp.zeros((rows - w.shape[0], w.shape[1]), w.dtype)], axis=0)

    w_ih0p = pad_rows(pad_cols(p["w_ih0"]), INPUT_PAD)        # (128, 4HP)
    b0p = pad_cols(p["b0"])                                    # (1, 4HP)
    w_hh0p = pad_rows(pad_cols(p["w_hh0"]), HP)                # (HP, 4HP)
    w_ih1p = pad_rows(pad_cols(p["w_ih1"]), HP)                # (HP, 4HP)
    w_hh1p = pad_rows(pad_cols(p["w_hh1"]), HP)                # (HP, 4HP)
    w1p = jnp.concatenate([w_ih1p, w_hh1p], axis=0)            # (2HP, 4HP)
    b1p = pad_cols(p["b1"])                                    # (1, 4HP)

    w_outp = jnp.zeros((HP, OUT_PAD), jnp.float32)             # (HP, 128), col 0 real
    w_outp = w_outp.at[:H, :1].set(p["w_out"])
    b_outp = jnp.zeros((1, OUT_PAD), jnp.float32)              # (1, 128), col 0 real
    b_outp = b_outp.at[:, :1].set(p["b_out"])

    return {
        "w_ih0p": w_ih0p, "b0p": b0p, "w_hh0p": w_hh0p,
        "w1p": w1p, "b1p": b1p, "w_outp": w_outp, "b_outp": b_outp,
    }


def reference_forward(x, p):
    """Pure NumPy (float64) reference matching the PyTorch module semantics."""
    x = np.asarray(x, np.float64)
    H = HIDDEN
    w_ih0 = np.asarray(p["w_ih0"], np.float64)
    w_hh0 = np.asarray(p["w_hh0"], np.float64)
    b0 = np.asarray(p["b0"], np.float64)
    w_ih1 = np.asarray(p["w_ih1"], np.float64)
    w_hh1 = np.asarray(p["w_hh1"], np.float64)
    b1 = np.asarray(p["b1"], np.float64)
    w_out = np.asarray(p["w_out"], np.float64)
    b_out = np.asarray(p["b_out"], np.float64)

    def sigmoid(z):
        return 1.0 / (1.0 + np.exp(-z))

    def cell(x_t, h, c, w_ih, w_hh, b):
        gates = x_t @ w_ih + h @ w_hh + b
        i = sigmoid(gates[:, 0 * H:1 * H])
        f = sigmoid(gates[:, 1 * H:2 * H])
        g = np.tanh(gates[:, 2 * H:3 * H])
        o = sigmoid(gates[:, 3 * H:4 * H])
        c_new = f * c + i * g
        h_new = o * np.tanh(c_new)
        return h_new, c_new

    B, T, _ = x.shape
    h1 = np.zeros((B, H)); c1 = np.zeros((B, H))
    h2 = np.zeros((B, H)); c2 = np.zeros((B, H))
    out = np.zeros((B, T, 1))
    for t in range(T):
        h1, c1 = cell(x[:, t, :], h1, c1, w_ih0, w_hh0, b0)
        h2, c2 = cell(h1, h2, c2, w_ih1, w_hh1, b1)
        out[:, t, :] = h2 @ w_out + b_out
    return out


if __name__ == "__main__":
    key = jax.random.PRNGKey(0)
    k_params, k_x = jax.random.split(key)

    params = init_params(k_params)
    kparams = prepare_params(params)

    # Small, module-consistent input: batch=2, seq=8, features=3, scaled like
    # the synthetic data in the reference script (x1~[20,35], x2~[6,8], x3~[100,150]).
    B, T = 2, 8
    base = jax.random.uniform(k_x, (B, T, 3), jnp.float32)
    scale = jnp.array([[[15.0, 2.0, 50.0]]], jnp.float32)
    offset = jnp.array([[[20.0, 6.0, 100.0]]], jnp.float32)
    x = base * scale + offset

    out = rnn_forward(x, kparams)
    out = jax.block_until_ready(out)
    assert out.shape == (B, T, 1) and out.dtype == jnp.float32

    ref = reference_forward(np.asarray(x), params)
    np.testing.assert_allclose(np.asarray(out), ref, rtol=1e-3, atol=1e-3)
    print("KERNEL_OK")
</pallas_src>

<mosaic_0001>
module attributes {stable_mosaic.version = 11 : i64} {
  func.func @lstm_kernel(%arg0: memref<64x128xf32, #tpu.memory_space<vmem>>, %arg1: memref<128x512xf32, #tpu.memory_space<vmem>>, %arg2: memref<1x512xf32, #tpu.memory_space<vmem>>, %arg3: memref<128x512xf32, #tpu.memory_space<vmem>>, %arg4: memref<256x512xf32, #tpu.memory_space<vmem>>, %arg5: memref<1x512xf32, #tpu.memory_space<vmem>>, %arg6: memref<128x128xf32, #tpu.memory_space<vmem>>, %arg7: memref<1x128xf32, #tpu.memory_space<vmem>>, %arg8: memref<64x128xf32, #tpu.memory_space<vmem>>, %arg9: memref<64x512xf32, #tpu.memory_space<vmem>>, %arg10: memref<64x128xf32, #tpu.memory_space<vmem>>) attributes {dimension_semantics = [], scalar_prefetch = 0 : i64, scratch_operands = 2 : i64, tpu.core_type = #tpu.core_type<tc>} {
    %c0 = arith.constant 0 : index
    %c0_0 = arith.constant 0 : index
    %0 = vector.load %arg0[%c0, %c0_0] : memref<64x128xf32, #tpu.memory_space<vmem>>, vector<64x128xf32>
    %c0_1 = arith.constant 0 : index
    %c0_2 = arith.constant 0 : index
    %1 = vector.load %arg1[%c0_1, %c0_2] : memref<128x512xf32, #tpu.memory_space<vmem>>, vector<128x512xf32>
    %cst = arith.constant dense<0.000000e+00> : vector<64x512xf32>
    %2 = tpu.matmul %0, %1, %cst {dimension_numbers = #tpu.dot_dimension_numbers<[1], [0], [0], [1], [0, 0, 1, 1], [], []>} : vector<64x128xf32>, vector<128x512xf32>, vector<64x512xf32> -> vector<64x512xf32>
    %c0_3 = arith.constant 0 : index
    %c0_4 = arith.constant 0 : index
    %3 = vector.load %arg2[%c0_3, %c0_4] : memref<1x512xf32, #tpu.memory_space<vmem>>, vector<1x512xf32>
    %4 = vector.broadcast %3 : vector<1x512xf32> to vector<64x512xf32>
    %5 = arith.addf %2, %4 : vector<64x512xf32>
    %c0_5 = arith.constant 0 : index
    %c0_6 = arith.constant 0 : index
    %6 = vector.load %arg9[%c0_5, %c0_6] : memref<64x512xf32, #tpu.memory_space<vmem>>, vector<64x512xf32>
    tpu.vector_store %arg9[%c0_5, %c0_6], %5 {strides = array<i32>} : memref<64x512xf32, #tpu.memory_space<vmem>>, vector<64x512xf32>,
    %c0_7 = arith.constant 0 : index
    %c0_8 = arith.constant 0 : index
    %7 = vector.load %arg3[%c0_7, %c0_8] : memref<128x512xf32, #tpu.memory_space<vmem>>, vector<128x512xf32>
    %c0_9 = arith.constant 0 : index
    %c0_10 = arith.constant 0 : index
    %8 = vector.load %arg4[%c0_9, %c0_10] : memref<256x512xf32, #tpu.memory_space<vmem>>, vector<256x512xf32>
    %c0_11 = arith.constant 0 : index
    %c0_12 = arith.constant 0 : index
    %9 = vector.load %arg5[%c0_11, %c0_12] : memref<1x512xf32, #tpu.memory_space<vmem>>, vector<1x512xf32>
    %10 = vector.shape_cast %9 : vector<1x512xf32> to vector<1x512xf32>
    %11 = vector.broadcast %10 : vector<1x512xf32> to vector<8x512xf32>
    %cst_13 = arith.constant 0.000000e+00 : f32
    %12 = vector.broadcast %cst_13 : f32 to vector<8x128xf32>
    %c0_i32 = arith.constant 0 : i32
    %c8_i32 = arith.constant 8 : i32
    %13 = arith.muli %c0_i32, %c8_i32 : i32
    %14 = tpu.assume_multiple %13, 8 : i32
    %15 = arith.index_cast %14 : i32 to index
    %c0_14 = arith.constant 0 : index
    %16 = vector.load %arg9[%15, %c0_14] : memref<64x512xf32, #tpu.memory_space<vmem>>, vector<8x512xf32>
    %cst_15 = arith.constant dense<0.000000e+00> : vector<8x512xf32>
    %17 = tpu.matmul %12, %7, %cst_15 {dimension_numbers = #tpu.dot_dimension_numbers<[1], [0], [0], [1], [0, 0, 1, 1], [], []>} : vector<8x128xf32>, vector<128x512xf32>, vector<8x512xf32> -> vector<8x512xf32>
    %18 = arith.addf %16, %17 : vector<8x512xf32>
    %19 = vector.extract_strided_slice %18 {offsets = [0, 0], sizes = [8, 128], strides = [1, 1]} : vector<8x512xf32> to vector<8x128xf32>
    %20 = arith.negf %19 : vector<8x128xf32>
    %21 = math.exp %20 : vector<8x128xf32>
    %cst_16 = arith.constant 1.000000e+00 : f32
    %22 = vector.broadcast %cst_16 : f32 to vector<8x128xf32>
    %23 = arith.addf %22, %21 : vector<8x128xf32>
    %24 = arith.divf %22, %23 : vector<8x128xf32>
    %25 = vector.extract_strided_slice %18 {offsets = [0, 128], sizes = [8, 128], strides = [1, 1]} : vector<8x512xf32> to vector<8x128xf32>
    %26 = arith.negf %25 : vector<8x128xf32>
    %27 = math.exp %26 : vector<8x128xf32>
    %cst_17 = arith.constant 1.000000e+00 : f32
    %28 = vector.broadcast %cst_17 : f32 to vector<8x128xf32>
    %29 = arith.addf %28, %27 : vector<8x128xf32>
    %30 = arith.divf %28, %29 : vector<8x128xf32>
    %31 = vector.extract_strided_slice %18 {offsets = [0, 256], sizes = [8, 128], strides = [1, 1]} : vector<8x512xf32> to vector<8x128xf32>
    %32 = math.tanh %31 : vector<8x128xf32>
    %33 = vector.extract_strided_slice %18 {offsets = [0, 384], sizes = [8, 128], strides = [1, 1]} : vector<8x512xf32> to vector<8x128xf32>
    %34 = arith.negf %33 : vector<8x128xf32>
    %35 = math.exp %34 : vector<8x128xf32>
    %cst_18 = arith.constant 1.000000e+00 : f32
    %36 = vector.broadcast %cst_18 : f32 to vector<8x128xf32>
    %37 = arith.addf %36, %35 : vector<8x128xf32>
    %38 = arith.divf %36, %37 : vector<8x128xf32>
    %39 = arith.mulf %30, %12 : vector<8x128xf32>
    %40 = arith.mulf %24, %32 : vector<8x128xf32>
    %41 = arith.addf %39, %40 : vector<8x128xf32>
    %42 = math.tanh %41 : vector<8x128xf32>
    %43 = arith.mulf %38, %42 : vector<8x128xf32>
    %44 = tpu.concatenate %43, %12 in 1 : vector<8x128xf32>, vector<8x128xf32> -> vector<8x256xf32>
    %cst_19 = arith.constant dense<0.000000e+00> : vector<8x512xf32>
    %45 = tpu.matmul %44, %8, %cst_19 {dimension_numbers = #tpu.dot_dimension_numbers<[1], [0], [0], [1], [0, 0, 1, 1], [], []>} : vector<8x256xf32>, vector<256x512xf32>, vector<8x512xf32> -> vector<8x512xf32>
    %46 = arith.addf %45, %11 : vector<8x512xf32>
    %47 = vector.extract_strided_slice %46 {offsets = [0, 0], sizes = [8, 128], strides = [1, 1]} : vector<8x512xf32> to vector<8x128xf32>
    %48 = arith.negf %47 : vector<8x128xf32>
    %49 = math.exp %48 : vector<8x128xf32>
    %cst_20 = arith.constant 1.000000e+00 : f32
    %50 = vector.broadcast %cst_20 : f32 to vector<8x128xf32>
    %51 = arith.addf %50, %49 : vector<8x128xf32>
    %52 = arith.divf %50, %51 : vector<8x128xf32>
    %53 = vector.extract_strided_slice %46 {offsets = [0, 128], sizes = [8, 128], strides = [1, 1]} : vector<8x512xf32> to vector<8x128xf32>
    %54 = arith.negf %53 : vector<8x128xf32>
    %55 = math.exp %54 : vector<8x128xf32>
    %cst_21 = arith.constant 1.000000e+00 : f32
    %56 = vector.broadcast %cst_21 : f32 to vector<8x128xf32>
    %57 = arith.addf %56, %55 : vector<8x128xf32>
    %58 = arith.divf %56, %57 : vector<8x128xf32>
    %59 = vector.extract_strided_slice %46 {offsets = [0, 256], sizes = [8, 128], strides = [1, 1]} : vector<8x512xf32> to vector<8x128xf32>
    %60 = math.tanh %59 : vector<8x128xf32>
    %61 = vector.extract_strided_slice %46 {offsets = [0, 384], sizes = [8, 128], strides = [1, 1]} : vector<8x512xf32> to vector<8x128xf32>
    %62 = arith.negf %61 : vector<8x128xf32>
    %63 = math.exp %62 : vector<8x128xf32>
    %cst_22 = arith.constant 1.000000e+00 : f32
    %64 = vector.broadcast %cst_22 : f32 to vector<8x128xf32>
    %65 = arith.addf %64, %63 : vector<8x128xf32>
    %66 = arith.divf %64, %65 : vector<8x128xf32>
    %67 = arith.mulf %58, %12 : vector<8x128xf32>
    %68 = arith.mulf %52, %60 : vector<8x128xf32>
    %69 = arith.addf %67, %68 : vector<8x128xf32>
    %70 = math.tanh %69 : vector<8x128xf32>
    %71 = arith.mulf %66, %70 : vector<8x128xf32>
    %72 = arith.index_cast %14 : i32 to index
    %c0_23 = arith.constant 0 : index
    %73 = vector.load %arg10[%72, %c0_23] : memref<64x128xf32, #tpu.memory_space<vmem>>, vector<8x128xf32>
    tpu.vector_store %arg10[%72, %c0_23], %71 {strides = array<i32>} : memref<64x128xf32, #tpu.memory_space<vmem>>, vector<8x128xf32>,
    %c1_i32 = arith.constant 1 : i32
    %c8_i32_24 = arith.constant 8 : i32
    %74 = arith.muli %c1_i32, %c8_i32_24 : i32
    %75 = tpu.assume_multiple %74, 8 : i32
    %76 = arith.index_cast %75 : i32 to index
    %c0_25 = arith.constant 0 : index
    %77 = vector.load %arg9[%76, %c0_25] : memref<64x512xf32, #tpu.memory_space<vmem>>, vector<8x512xf32>
    %cst_26 = arith.constant dense<0.000000e+00> : vector<8x512xf32>
    %78 = tpu.matmul %43, %7, %cst_26 {dimension_numbers = #tpu.dot_dimension_numbers<[1], [0], [0], [1], [0, 0, 1, 1], [], []>} : vector<8x128xf32>, vector<128x512xf32>, vector<8x512xf32> -> vector<8x512xf32>
    %79 = arith.addf %77, %78 : vector<8x512xf32>
    %80 = vector.extract_strided_slice %79 {offsets = [0, 0], sizes = [8, 128], strides = [1, 1]} : vector<8x512xf32> to vector<8x128xf32>
    %81 = arith.negf %80 : vector<8x128xf32>
    %82 = math.exp %81 : vector<8x128xf32>
    %cst_27 = arith.constant 1.000000e+00 : f32
    %83 = vector.broadcast %cst_27 : f32 to vector<8x128xf32>
    %84 = arith.addf %83, %82 : vector<8x128xf32>
    %85 = arith.divf %83, %84 : vector<8x128xf32>
    %86 = vector.extract_strided_slice %79 {offsets = [0, 128], sizes = [8, 128], strides = [1, 1]} : vector<8x512xf32> to vector<8x128xf32>
    %87 = arith.negf %86 : vector<8x128xf32>
    %88 = math.exp %87 : vector<8x128xf32>
    %cst_28 = arith.constant 1.000000e+00 : f32
    %89 = vector.broadcast %cst_28 : f32 to vector<8x128xf32>
    %90 = arith.addf %89, %88 : vector<8x128xf32>
    %91 = arith.divf %89, %90 : vector<8x128xf32>
    %92 = vector.extract_strided_slice %79 {offsets = [0, 256], sizes = [8, 128], strides = [1, 1]} : vector<8x512xf32> to vector<8x128xf32>
    %93 = math.tanh %92 : vector<8x128xf32>
    %94 = vector.extract_strided_slice %79 {offsets = [0, 384], sizes = [8, 128], strides = [1, 1]} : vector<8x512xf32> to vector<8x128xf32>
    %95 = arith.negf %94 : vector<8x128xf32>
    %96 = math.exp %95 : vector<8x128xf32>
    %cst_29 = arith.constant 1.000000e+00 : f32
    %97 = vector.broadcast %cst_29 : f32 to vector<8x128xf32>
    %98 = arith.addf %97, %96 : vector<8x128xf32>
    %99 = arith.divf %97, %98 : vector<8x128xf32>
    %100 = arith.mulf %91, %41 : vector<8x128xf32>
    %101 = arith.mulf %85, %93 : vector<8x128xf32>
    %102 = arith.addf %100, %101 : vector<8x128xf32>
    %103 = math.tanh %102 : vector<8x128xf32>
    %104 = arith.mulf %99, %103 : vector<8x128xf32>
    %105 = tpu.concatenate %104, %71 in 1 : vector<8x128xf32>, vector<8x128xf32> -> vector<8x256xf32>
    %cst_30 = arith.constant dense<0.000000e+00> : vector<8x512xf32>
    %106 = tpu.matmul %105, %8, %cst_30 {dimension_numbers = #tpu.dot_dimension_numbers<[1], [0], [0], [1], [0, 0, 1, 1], [], []>} : vector<8x256xf32>, vector<256x512xf32>, vector<8x512xf32> -> vector<8x512xf32>
    %107 = arith.addf %106, %11 : vector<8x512xf32>
    %108 = vector.extract_strided_slice %107 {offsets = [0, 0], sizes = [8, 128], strides = [1, 1]} : vector<8x512xf32> to vector<8x128xf32>
    %109 = arith.negf %108 : vector<8x128xf32>
    %110 = math.exp %109 : vector<8x128xf32>
    %cst_31 = arith.constant 1.000000e+00 : f32
    %111 = vector.broadcast %cst_31 : f32 to vector<8x128xf32>
    %112 = arith.addf %111, %110 : vector<8x128xf32>
    %113 = arith.divf %111, %112 : vector<8x128xf32>
    %114 = vector.extract_strided_slice %107 {offsets = [0, 128], sizes = [8, 128], strides = [1, 1]} : vector<8x512xf32> to vector<8x128xf32>
    %115 = arith.negf %114 : vector<8x128xf32>
    %116 = math.exp %115 : vector<8x128xf32>
    %cst_32 = arith.constant 1.000000e+00 : f32
    %117 = vector.broadcast %cst_32 : f32 to vector<8x128xf32>
    %118 = arith.addf %117, %116 : vector<8x128xf32>
    %119 = arith.divf %117, %118 : vector<8x128xf32>
    %120 = vector.extract_strided_slice %107 {offsets = [0, 256], sizes = [8, 128], strides = [1, 1]} : vector<8x512xf32> to vector<8x128xf32>
    %121 = math.tanh %120 : vector<8x128xf32>
    %122 = vector.extract_strided_slice %107 {offsets = [0, 384], sizes = [8, 128], strides = [1, 1]} : vector<8x512xf32> to vector<8x128xf32>
    %123 = arith.negf %122 : vector<8x128xf32>
    %124 = math.exp %123 : vector<8x128xf32>
    %cst_33 = arith.constant 1.000000e+00 : f32
    %125 = vector.broadcast %cst_33 : f32 to vector<8x128xf32>
    %126 = arith.addf %125, %124 : vector<8x128xf32>
    %127 = arith.divf %125, %126 : vector<8x128xf32>
    %128 = arith.mulf %119, %69 : vector<8x128xf32>
    %129 = arith.mulf %113, %121 : vector<8x128xf32>
    %130 = arith.addf %128, %129 : vector<8x128xf32>
    %131 = math.tanh %130 : vector<8x128xf32>
    %132 = arith.mulf %127, %131 : vector<8x128xf32>
    %133 = arith.index_cast %75 : i32 to index
    %c0_34 = arith.constant 0 : index
    %134 = vector.load %arg10[%133, %c0_34] : memref<64x128xf32, #tpu.memory_space<vmem>>, vector<8x128xf32>
    tpu.vector_store %arg10[%133, %c0_34], %132 {strides = array<i32>} : memref<64x128xf32, #tpu.memory_space<vmem>>, vector<8x128xf32>,
    %c2_i32 = arith.constant 2 : i32
    %c8_i32_35 = arith.constant 8 : i32
    %135 = arith.muli %c2_i32, %c8_i32_35 : i32
    %136 = tpu.assume_multiple %135, 8 : i32
    %137 = arith.index_cast %136 : i32 to index
    %c0_36 = arith.constant 0 : index
    %138 = vector.load %arg9[%137, %c0_36] : memref<64x512xf32, #tpu.memory_space<vmem>>, vector<8x512xf32>
    %cst_37 = arith.constant dense<0.000000e+00> : vector<8x512xf32>
    %139 = tpu.matmul %104, %7, %cst_37 {dimension_numbers = #tpu.dot_dimension_numbers<[1], [0], [0], [1], [0, 0, 1, 1], [], []>} : vector<8x128xf32>, vector<128x512xf32>, vector<8x512xf32> -> vector<8x512xf32>
    %140 = arith.addf %138, %139 : vector<8x512xf32>
    %141 = vector.extract_strided_slice %140 {offsets = [0, 0], sizes = [8, 128], strides = [1, 1]} : vector<8x512xf32> to vector<8x128xf32>
    %142 = arith.negf %141 : vector<8x128xf32>
    %143 = math.exp %142 : vector<8x128xf32>
    %cst_38 = arith.constant 1.000000e+00 : f32
    %144 = vector.broadcast %cst_38 : f32 to vector<8x128xf32>
    %145 = arith.addf %144, %143 : vector<8x128xf32>
    %146 = arith.divf %144, %145 : vector<8x128xf32>
    %147 = vector.extract_strided_slice %140 {offsets = [0, 128], sizes = [8, 128], strides = [1, 1]} : vector<8x512xf32> to vector<8x128xf32>
    %148 = arith.negf %147 : vector<8x128xf32>
    %149 = math.exp %148 : vector<8x128xf32>
    %cst_39 = arith.constant 1.000000e+00 : f32
    %150 = vector.broadcast %cst_39 : f32 to vector<8x128xf32>
    %151 = arith.addf %150, %149 : vector<8x128xf32>
    %152 = arith.divf %150, %151 : vector<8x128xf32>
    %153 = vector.extract_strided_slice %140 {offsets = [0, 256], sizes = [8, 128], strides = [1, 1]} : vector<8x512xf32> to vector<8x128xf32>
    %154 = math.tanh %153 : vector<8x128xf32>
    %155 = vector.extract_strided_slice %140 {offsets = [0, 384], sizes = [8, 128], strides = [1, 1]} : vector<8x512xf32> to vector<8x128xf32>
    %156 = arith.negf %155 : vector<8x128xf32>
    %157 = math.exp %156 : vector<8x128xf32>
    %cst_40 = arith.constant 1.000000e+00 : f32
    %158 = vector.broadcast %cst_40 : f32 to vector<8x128xf32>
    %159 = arith.addf %158, %157 : vector<8x128xf32>
    %160 = arith.divf %158, %159 : vector<8x128xf32>
    %161 = arith.mulf %152, %102 : vector<8x128xf32>
    %162 = arith.mulf %146, %154 : vector<8x128xf32>
    %163 = arith.addf %161, %162 : vector<8x128xf32>
    %164 = math.tanh %163 : vector<8x128xf32>
    %165 = arith.mulf %160, %164 : vector<8x128xf32>
    %166 = tpu.concatenate %165, %132 in 1 : vector<8x128xf32>, vector<8x128xf32> -> vector<8x256xf32>
    %cst_41 = arith.constant dense<0.000000e+00> : vector<8x512xf32>
    %167 = tpu.matmul %166, %8, %cst_41 {dimension_numbers = #tpu.dot_dimension_numbers<[1], [0], [0], [1], [0, 0, 1, 1], [], []>} : vector<8x256xf32>, vector<256x512xf32>, vector<8x512xf32> -> vector<8x512xf32>
    %168 = arith.addf %167, %11 : vector<8x512xf32>
    %169 = vector.extract_strided_slice %168 {offsets = [0, 0], sizes = [8, 128], strides = [1, 1]} : vector<8x512xf32> to vector<8x128xf32>
    %170 = arith.negf %169 : vector<8x128xf32>
    %171 = math.exp %170 : vector<8x128xf32>
    %cst_42 = arith.constant 1.000000e+00 : f32
    %172 = vector.broadcast %cst_42 : f32 to vector<8x128xf32>
    %173 = arith.addf %172, %171 : vector<8x128xf32>
    %174 = arith.divf %172, %173 : vector<8x128xf32>
    %175 = vector.extract_strided_slice %168 {offsets = [0, 128], sizes = [8, 128], strides = [1, 1]} : vector<8x512xf32> to vector<8x128xf32>
    %176 = arith.negf %175 : vector<8x128xf32>
    %177 = math.exp %176 : vector<8x128xf32>
    %cst_43 = arith.constant 1.000000e+00 : f32
    %178 = vector.broadcast %cst_43 : f32 to vector<8x128xf32>
    %179 = arith.addf %178, %177 : vector<8x128xf32>
    %180 = arith.divf %178, %179 : vector<8x128xf32>
    %181 = vector.extract_strided_slice %168 {offsets = [0, 256], sizes = [8, 128], strides = [1, 1]} : vector<8x512xf32> to vector<8x128xf32>
    %182 = math.tanh %181 : vector<8x128xf32>
    %183 = vector.extract_strided_slice %168 {offsets = [0, 384], sizes = [8, 128], strides = [1, 1]} : vector<8x512xf32> to vector<8x128xf32>
    %184 = arith.negf %183 : vector<8x128xf32>
    %185 = math.exp %184 : vector<8x128xf32>
    %cst_44 = arith.constant 1.000000e+00 : f32
    %186 = vector.broadcast %cst_44 : f32 to vector<8x128xf32>
    %187 = arith.addf %186, %185 : vector<8x128xf32>
    %188 = arith.divf %186, %187 : vector<8x128xf32>
    %189 = arith.mulf %180, %130 : vector<8x128xf32>
    %190 = arith.mulf %174, %182 : vector<8x128xf32>
    %191 = arith.addf %189, %190 : vector<8x128xf32>
    %192 = math.tanh %191 : vector<8x128xf32>
    %193 = arith.mulf %188, %192 : vector<8x128xf32>
    %194 = arith.index_cast %136 : i32 to index
    %c0_45 = arith.constant 0 : index
    %195 = vector.load %arg10[%194, %c0_45] : memref<64x128xf32, #tpu.memory_space<vmem>>, vector<8x128xf32>
    tpu.vector_store %arg10[%194, %c0_45], %193 {strides = array<i32>} : memref<64x128xf32, #tpu.memory_space<vmem>>, vector<8x128xf32>,
    %c3_i32 = arith.constant 3 : i32
    %c8_i32_46 = arith.constant 8 : i32
    %196 = arith.muli %c3_i32, %c8_i32_46 : i32
    %197 = tpu.assume_multiple %196, 8 : i32
    %198 = arith.index_cast %197 : i32 to index
    %c0_47 = arith.constant 0 : index
    %199 = vector.load %arg9[%198, %c0_47] : memref<64x512xf32, #tpu.memory_space<vmem>>, vector<8x512xf32>
    %cst_48 = arith.constant dense<0.000000e+00> : vector<8x512xf32>
    %200 = tpu.matmul %165, %7, %cst_48 {dimension_numbers = #tpu.dot_dimension_numbers<[1], [0], [0], [1], [0, 0, 1, 1], [], []>} : vector<8x128xf32>, vector<128x512xf32>, vector<8x512xf32> -> vector<8x512xf32>
    %201 = arith.addf %199, %200 : vector<8x512xf32>
    %202 = vector.extract_strided_slice %201 {offsets = [0, 0], sizes = [8, 128], strides = [1, 1]} : vector<8x512xf32> to vector<8x128xf32>
    %203 = arith.negf %202 : vector<8x128xf32>
    %204 = math.exp %203 : vector<8x128xf32>
    %cst_49 = arith.constant 1.000000e+00 : f32
    %205 = vector.broadcast %cst_49 : f32 to vector<8x128xf32>
    %206 = arith.addf %205, %204 : vector<8x128xf32>
    %207 = arith.divf %205, %206 : vector<8x128xf32>
    %208 = vector.extract_strided_slice %201 {offsets = [0, 128], sizes = [8, 128], strides = [1, 1]} : vector<8x512xf32> to vector<8x128xf32>
    %209 = arith.negf %208 : vector<8x128xf32>
    %210 = math.exp %209 : vector<8x128xf32>
    %cst_50 = arith.constant 1.000000e+00 : f32
    %211 = vector.broadcast %cst_50 : f32 to vector<8x128xf32>
    %212 = arith.addf %211, %210 : vector<8x128xf32>
    %213 = arith.divf %211, %212 : vector<8x128xf32>
    %214 = vector.extract_strided_slice %201 {offsets = [0, 256], sizes = [8, 128], strides = [1, 1]} : vector<8x512xf32> to vector<8x128xf32>
    %215 = math.tanh %214 : vector<8x128xf32>
    %216 = vector.extract_strided_slice %201 {offsets = [0, 384], sizes = [8, 128], strides = [1, 1]} : vector<8x512xf32> to vector<8x128xf32>
    %217 = arith.negf %216 : vector<8x128xf32>
    %218 = math.exp %217 : vector<8x128xf32>
    %cst_51 = arith.constant 1.000000e+00 : f32
    %219 = vector.broadcast %cst_51 : f32 to vector<8x128xf32>
    %220 = arith.addf %219, %218 : vector<8x128xf32>
    %221 = arith.divf %219, %220 : vector<8x128xf32>
    %222 = arith.mulf %213, %163 : vector<8x128xf32>
    %223 = arith.mulf %207, %215 : vector<8x128xf32>
    %224 = arith.addf %222, %223 : vector<8x128xf32>
    %225 = math.tanh %224 : vector<8x128xf32>
    %226 = arith.mulf %221, %225 : vector<8x128xf32>
    %227 = tpu.concatenate %226, %193 in 1 : vector<8x128xf32>, vector<8x128xf32> -> vector<8x256xf32>
    %cst_52 = arith.constant dense<0.000000e+00> : vector<8x512xf32>
    %228 = tpu.matmul %227, %8, %cst_52 {dimension_numbers = #tpu.dot_dimension_numbers<[1], [0], [0], [1], [0, 0, 1, 1], [], []>} : vector<8x256xf32>, vector<256x512xf32>, vector<8x512xf32> -> vector<8x512xf32>
    %229 = arith.addf %228, %11 : vector<8x512xf32>
    %230 = vector.extract_strided_slice %229 {offsets = [0, 0], sizes = [8, 128], strides = [1, 1]} : vector<8x512xf32> to vector<8x128xf32>
    %231 = arith.negf %230 : vector<8x128xf32>
    %232 = math.exp %231 : vector<8x128xf32>
    %cst_53 = arith.constant 1.000000e+00 : f32
    %233 = vector.broadcast %cst_53 : f32 to vector<8x128xf32>
    %234 = arith.addf %233, %232 : vector<8x128xf32>
    %235 = arith.divf %233, %234 : vector<8x128xf32>
    %236 = vector.extract_strided_slice %229 {offsets = [0, 128], sizes = [8, 128], strides = [1, 1]} : vector<8x512xf32> to vector<8x128xf32>
    %237 = arith.negf %236 : vector<8x128xf32>
    %238 = math.exp %237 : vector<8x128xf32>
    %cst_54 = arith.constant 1.000000e+00 : f32
    %239 = vector.broadcast %cst_54 : f32 to vector<8x128xf32>
    %240 = arith.addf %239, %238 : vector<8x128xf32>
    %241 = arith.divf %239, %240 : vector<8x128xf32>
    %242 = vector.extract_strided_slice %229 {offsets = [0, 256], sizes = [8, 128], strides = [1, 1]} : vector<8x512xf32> to vector<8x128xf32>
    %243 = math.tanh %242 : vector<8x128xf32>
    %244 = vector.extract_strided_slice %229 {offsets = [0, 384], sizes = [8, 128], strides = [1, 1]} : vector<8x512xf32> to vector<8x128xf32>
    %245 = arith.negf %244 : vector<8x128xf32>
    %246 = math.exp %245 : vector<8x128xf32>
    %cst_55 = arith.constant 1.000000e+00 : f32
    %247 = vector.broadcast %cst_55 : f32 to vector<8x128xf32>
    %248 = arith.addf %247, %246 : vector<8x128xf32>
    %249 = arith.divf %247, %248 : vector<8x128xf32>
    %250 = arith.mulf %241, %191 : vector<8x128xf32>
    %251 = arith.mulf %235, %243 : vector<8x128xf32>
    %252 = arith.addf %250, %251 : vector<8x128xf32>
    %253 = math.tanh %252 : vector<8x128xf32>
    %254 = arith.mulf %249, %253 : vector<8x128xf32>
    %255 = arith.index_cast %197 : i32 to index
    %c0_56 = arith.constant 0 : index
    %256 = vector.load %arg10[%255, %c0_56] : memref<64x128xf32, #tpu.memory_space<vmem>>, vector<8x128xf32>
    tpu.vector_store %arg10[%255, %c0_56], %254 {strides = array<i32>} : memref<64x128xf32, #tpu.memory_space<vmem>>, vector<8x128xf32>,
    %c4_i32 = arith.constant 4 : i32
    %c8_i32_57 = arith.constant 8 : i32
    %257 = arith.muli %c4_i32, %c8_i32_57 : i32
    %258 = tpu.assume_multiple %257, 8 : i32
    %259 = arith.index_cast %258 : i32 to index
    %c0_58 = arith.constant 0 : index
    %260 = vector.load %arg9[%259, %c0_58] : memref<64x512xf32, #tpu.memory_space<vmem>>, vector<8x512xf32>
    %cst_59 = arith.constant dense<0.000000e+00> : vector<8x512xf32>
    %261 = tpu.matmul %226, %7, %cst_59 {dimension_numbers = #tpu.dot_dimension_numbers<[1], [0], [0], [1], [0, 0, 1, 1], [], []>} : vector<8x128xf32>, vector<128x512xf32>, vector<8x512xf32> -> vector<8x512xf32>
    %262 = arith.addf %260, %261 : vector<8x512xf32>
    %263 = vector.extract_strided_slice %262 {offsets = [0, 0], sizes = [8, 128], strides = [1, 1]} : vector<8x512xf32> to vector<8x128xf32>
    %264 = arith.negf %263 : vector<8x128xf32>
    %265 = math.exp %264 : vector<8x128xf32>
    %cst_60 = arith.constant 1.000000e+00 : f32
    %266 = vector.broadcast %cst_60 : f32 to vector<8x128xf32>
    %267 = arith.addf %266, %265 : vector<8x128xf32>
    %268 = arith.divf %266, %267 : vector<8x128xf32>
    %269 = vector.extract_strided_slice %262 {offsets = [0, 128], sizes = [8, 128], strides = [1, 1]} : vector<8x512xf32> to vector<8x128xf32>
    %270 = arith.negf %269 : vector<8x128xf32>
    %271 = math.exp %270 : vector<8x128xf32>
    %cst_61 = arith.constant 1.000000e+00 : f32
    %272 = vector.broadcast %cst_61 : f32 to vector<8x128xf32>
    %273 = arith.addf %272, %271 : vector<8x128xf32>
    %274 = arith.divf %272, %273 : vector<8x128xf32>
    %275 = vector.extract_strided_slice %262 {offsets = [0, 256], sizes = [8, 128], strides = [1, 1]} : vector<8x512xf32> to vector<8x128xf32>
    %276 = math.tanh %275 : vector<8x128xf32>
    %277 = vector.extract_strided_slice %262 {offsets = [0, 384], sizes = [8, 128], strides = [1, 1]} : vector<8x512xf32> to vector<8x128xf32>
    %278 = arith.negf %277 : vector<8x128xf32>
    %279 = math.exp %278 : vector<8x128xf32>
    %cst_62 = arith.constant 1.000000e+00 : f32
    %280 = vector.broadcast %cst_62 : f32 to vector<8x128xf32>
    %281 = arith.addf %280, %279 : vector<8x128xf32>
    %282 = arith.divf %280, %281 : vector<8x128xf32>
    %283 = arith.mulf %274, %224 : vector<8x128xf32>
    %284 = arith.mulf %268, %276 : vector<8x128xf32>
    %285 = arith.addf %283, %284 : vector<8x128xf32>
    %286 = math.tanh %285 : vector<8x128xf32>
    %287 = arith.mulf %282, %286 : vector<8x128xf32>
    %288 = tpu.concatenate %287, %254 in 1 : vector<8x128xf32>, vector<8x128xf32> -> vector<8x256xf32>
    %cst_63 = arith.constant dense<0.000000e+00> : vector<8x512xf32>
    %289 = tpu.matmul %288, %8, %cst_63 {dimension_numbers = #tpu.dot_dimension_numbers<[1], [0], [0], [1], [0, 0, 1, 1], [], []>} : vector<8x256xf32>, vector<256x512xf32>, vector<8x512xf32> -> vector<8x512xf32>
    %290 = arith.addf %289, %11 : vector<8x512xf32>
    %291 = vector.extract_strided_slice %290 {offsets = [0, 0], sizes = [8, 128], strides = [1, 1]} : vector<8x512xf32> to vector<8x128xf32>
    %292 = arith.negf %291 : vector<8x128xf32>
    %293 = math.exp %292 : vector<8x128xf32>
    %cst_64 = arith.constant 1.000000e+00 : f32
    %294 = vector.broadcast %cst_64 : f32 to vector<8x128xf32>
    %295 = arith.addf %294, %293 : vector<8x128xf32>
    %296 = arith.divf %294, %295 : vector<8x128xf32>
    %297 = vector.extract_strided_slice %290 {offsets = [0, 128], sizes = [8, 128], strides = [1, 1]} : vector<8x512xf32> to vector<8x128xf32>
    %298 = arith.negf %297 : vector<8x128xf32>
    %299 = math.exp %298 : vector<8x128xf32>
    %cst_65 = arith.constant 1.000000e+00 : f32
    %300 = vector.broadcast %cst_65 : f32 to vector<8x128xf32>
    %301 = arith.addf %300, %299 : vector<8x128xf32>
    %302 = arith.divf %300, %301 : vector<8x128xf32>
    %303 = vector.extract_strided_slice %290 {offsets = [0, 256], sizes = [8, 128], strides = [1, 1]} : vector<8x512xf32> to vector<8x128xf32>
    %304 = math.tanh %303 : vector<8x128xf32>
    %305 = vector.extract_strided_slice %290 {offsets = [0, 384], sizes = [8, 128], strides = [1, 1]} : vector<8x512xf32> to vector<8x128xf32>
    %306 = arith.negf %305 : vector<8x128xf32>
    %307 = math.exp %306 : vector<8x128xf32>
    %cst_66 = arith.constant 1.000000e+00 : f32
    %308 = vector.broadcast %cst_66 : f32 to vector<8x128xf32>
    %309 = arith.addf %308, %307 : vector<8x128xf32>
    %310 = arith.divf %308, %309 : vector<8x128xf32>
    %311 = arith.mulf %302, %252 : vector<8x128xf32>
    %312 = arith.mulf %296, %304 : vector<8x128xf32>
    %313 = arith.addf %311, %312 : vector<8x128xf32>
    %314 = math.tanh %313 : vector<8x128xf32>
    %315 = arith.mulf %310, %314 : vector<8x128xf32>
    %316 = arith.index_cast %258 : i32 to index
    %c0_67 = arith.constant 0 : index
    %317 = vector.load %arg10[%316, %c0_67] : memref<64x128xf32, #tpu.memory_space<vmem>>, vector<8x128xf32>
    tpu.vector_store %arg10[%316, %c0_67], %315 {strides = array<i32>} : memref<64x128xf32, #tpu.memory_space<vmem>>, vector<8x128xf32>,
    %c5_i32 = arith.constant 5 : i32
    %c8_i32_68 = arith.constant 8 : i32
    %318 = arith.muli %c5_i32, %c8_i32_68 : i32
    %319 = tpu.assume_multiple %318, 8 : i32
    %320 = arith.index_cast %319 : i32 to index
    %c0_69 = arith.constant 0 : index
    %321 = vector.load %arg9[%320, %c0_69] : memref<64x512xf32, #tpu.memory_space<vmem>>, vector<8x512xf32>
    %cst_70 = arith.constant dense<0.000000e+00> : vector<8x512xf32>
    %322 = tpu.matmul %287, %7, %cst_70 {dimension_numbers = #tpu.dot_dimension_numbers<[1], [0], [0], [1], [0, 0, 1, 1], [], []>} : vector<8x128xf32>, vector<128x512xf32>, vector<8x512xf32> -> vector<8x512xf32>
    %323 = arith.addf %321, %322 : vector<8x512xf32>
    %324 = vector.extract_strided_slice %323 {offsets = [0, 0], sizes = [8, 128], strides = [1, 1]} : vector<8x512xf32> to vector<8x128xf32>
    %325 = arith.negf %324 : vector<8x128xf32>
    %326 = math.exp %325 : vector<8x128xf32>
    %cst_71 = arith.constant 1.000000e+00 : f32
    %327 = vector.broadcast %cst_71 : f32 to vector<8x128xf32>
    %328 = arith.addf %327, %326 : vector<8x128xf32>
    %329 = arith.divf %327, %328 : vector<8x128xf32>
    %330 = vector.extract_strided_slice %323 {offsets = [0, 128], sizes = [8, 128], strides = [1, 1]} : vector<8x512xf32> to vector<8x128xf32>
    %331 = arith.negf %330 : vector<8x128xf32>
    %332 = math.exp %331 : vector<8x128xf32>
    %cst_72 = arith.constant 1.000000e+00 : f32
    %333 = vector.broadcast %cst_72 : f32 to vector<8x128xf32>
    %334 = arith.addf %333, %332 : vector<8x128xf32>
    %335 = arith.divf %333, %334 : vector<8x128xf32>
    %336 = vector.extract_strided_slice %323 {offsets = [0, 256], sizes = [8, 128], strides = [1, 1]} : vector<8x512xf32> to vector<8x128xf32>
    %337 = math.tanh %336 : vector<8x128xf32>
    %338 = vector.extract_strided_slice %323 {offsets = [0, 384], sizes = [8, 128], strides = [1, 1]} : vector<8x512xf32> to vector<8x128xf32>
    %339 = arith.negf %338 : vector<8x128xf32>
    %340 = math.exp %339 : vector<8x128xf32>
    %cst_73 = arith.constant 1.000000e+00 : f32
    %341 = vector.broadcast %cst_73 : f32 to vector<8x128xf32>
    %342 = arith.addf %341, %340 : vector<8x128xf32>
    %343 = arith.divf %341, %342 : vector<8x128xf32>
    %344 = arith.mulf %335, %285 : vector<8x128xf32>
    %345 = arith.mulf %329, %337 : vector<8x128xf32>
    %346 = arith.addf %344, %345 : vector<8x128xf32>
    %347 = math.tanh %346 : vector<8x128xf32>
    %348 = arith.mulf %343, %347 : vector<8x128xf32>
    %349 = tpu.concatenate %348, %315 in 1 : vector<8x128xf32>, vector<8x128xf32> -> vector<8x256xf32>
    %cst_74 = arith.constant dense<0.000000e+00> : vector<8x512xf32>
    %350 = tpu.matmul %349, %8, %cst_74 {dimension_numbers = #tpu.dot_dimension_numbers<[1], [0], [0], [1], [0, 0, 1, 1], [], []>} : vector<8x256xf32>, vector<256x512xf32>, vector<8x512xf32> -> vector<8x512xf32>
    %351 = arith.addf %350, %11 : vector<8x512xf32>
    %352 = vector.extract_strided_slice %351 {offsets = [0, 0], sizes = [8, 128], strides = [1, 1]} : vector<8x512xf32> to vector<8x128xf32>
    %353 = arith.negf %352 : vector<8x128xf32>
    %354 = math.exp %353 : vector<8x128xf32>
    %cst_75 = arith.constant 1.000000e+00 : f32
    %355 = vector.broadcast %cst_75 : f32 to vector<8x128xf32>
    %356 = arith.addf %355, %354 : vector<8x128xf32>
    %357 = arith.divf %355, %356 : vector<8x128xf32>
    %358 = vector.extract_strided_slice %351 {offsets = [0, 128], sizes = [8, 128], strides = [1, 1]} : vector<8x512xf32> to vector<8x128xf32>
    %359 = arith.negf %358 : vector<8x128xf32>
    %360 = math.exp %359 : vector<8x128xf32>
    %cst_76 = arith.constant 1.000000e+00 : f32
    %361 = vector.broadcast %cst_76 : f32 to vector<8x128xf32>
    %362 = arith.addf %361, %360 : vector<8x128xf32>
    %363 = arith.divf %361, %362 : vector<8x128xf32>
    %364 = vector.extract_strided_slice %351 {offsets = [0, 256], sizes = [8, 128], strides = [1, 1]} : vector<8x512xf32> to vector<8x128xf32>
    %365 = math.tanh %364 : vector<8x128xf32>
    %366 = vector.extract_strided_slice %351 {offsets = [0, 384], sizes = [8, 128], strides = [1, 1]} : vector<8x512xf32> to vector<8x128xf32>
    %367 = arith.negf %366 : vector<8x128xf32>
    %368 = math.exp %367 : vector<8x128xf32>
    %cst_77 = arith.constant 1.000000e+00 : f32
    %369 = vector.broadcast %cst_77 : f32 to vector<8x128xf32>
    %370 = arith.addf %369, %368 : vector<8x128xf32>
    %371 = arith.divf %369, %370 : vector<8x128xf32>
    %372 = arith.mulf %363, %313 : vector<8x128xf32>
    %373 = arith.mulf %357, %365 : vector<8x128xf32>
    %374 = arith.addf %372, %373 : vector<8x128xf32>
    %375 = math.tanh %374 : vector<8x128xf32>
    %376 = arith.mulf %371, %375 : vector<8x128xf32>
    %377 = arith.index_cast %319 : i32 to index
    %c0_78 = arith.constant 0 : index
    %378 = vector.load %arg10[%377, %c0_78] : memref<64x128xf32, #tpu.memory_space<vmem>>, vector<8x128xf32>
    tpu.vector_store %arg10[%377, %c0_78], %376 {strides = array<i32>} : memref<64x128xf32, #tpu.memory_space<vmem>>, vector<8x128xf32>,
    %c6_i32 = arith.constant 6 : i32
    %c8_i32_79 = arith.constant 8 : i32
    %379 = arith.muli %c6_i32, %c8_i32_79 : i32
    %380 = tpu.assume_multiple %379, 8 : i32
    %381 = arith.index_cast %380 : i32 to index
    %c0_80 = arith.constant 0 : index
    %382 = vector.load %arg9[%381, %c0_80] : memref<64x512xf32, #tpu.memory_space<vmem>>, vector<8x512xf32>
    %cst_81 = arith.constant dense<0.000000e+00> : vector<8x512xf32>
    %383 = tpu.matmul %348, %7, %cst_81 {dimension_numbers = #tpu.dot_dimension_numbers<[1], [0], [0], [1], [0, 0, 1, 1], [], []>} : vector<8x128xf32>, vector<128x512xf32>, vector<8x512xf32> -> vector<8x512xf32>
    %384 = arith.addf %382, %383 : vector<8x512xf32>
    %385 = vector.extract_strided_slice %384 {offsets = [0, 0], sizes = [8, 128], strides = [1, 1]} : vector<8x512xf32> to vector<8x128xf32>
    %386 = arith.negf %385 : vector<8x128xf32>
    %387 = math.exp %386 : vector<8x128xf32>
    %cst_82 = arith.constant 1.000000e+00 : f32
    %388 = vector.broadcast %cst_82 : f32 to vector<8x128xf32>
    %389 = arith.addf %388, %387 : vector<8x128xf32>
    %390 = arith.divf %388, %389 : vector<8x128xf32>
    %391 = vector.extract_strided_slice %384 {offsets = [0, 128], sizes = [8, 128], strides = [1, 1]} : vector<8x512xf32> to vector<8x128xf32>
    %392 = arith.negf %391 : vector<8x128xf32>
    %393 = math.exp %392 : vector<8x128xf32>
    %cst_83 = arith.constant 1.000000e+00 : f32
    %394 = vector.broadcast %cst_83 : f32 to vector<8x128xf32>
    %395 = arith.addf %394, %393 : vector<8x128xf32>
    %396 = arith.divf %394, %395 : vector<8x128xf32>
    %397 = vector.extract_strided_slice %384 {offsets = [0, 256], sizes = [8, 128], strides = [1, 1]} : vector<8x512xf32> to vector<8x128xf32>
    %398 = math.tanh %397 : vector<8x128xf32>
    %399 = vector.extract_strided_slice %384 {offsets = [0, 384], sizes = [8, 128], strides = [1, 1]} : vector<8x512xf32> to vector<8x128xf32>
    %400 = arith.negf %399 : vector<8x128xf32>
    %401 = math.exp %400 : vector<8x128xf32>
    %cst_84 = arith.constant 1.000000e+00 : f32
    %402 = vector.broadcast %cst_84 : f32 to vector<8x128xf32>
    %403 = arith.addf %402, %401 : vector<8x128xf32>
    %404 = arith.divf %402, %403 : vector<8x128xf32>
    %405 = arith.mulf %396, %346 : vector<8x128xf32>
    %406 = arith.mulf %390, %398 : vector<8x128xf32>
    %407 = arith.addf %405, %406 : vector<8x128xf32>
    %408 = math.tanh %407 : vector<8x128xf32>
    %409 = arith.mulf %404, %408 : vector<8x128xf32>
    %410 = tpu.concatenate %409, %376 in 1 : vector<8x128xf32>, vector<8x128xf32> -> vector<8x256xf32>
    %cst_85 = arith.constant dense<0.000000e+00> : vector<8x512xf32>
    %411 = tpu.matmul %410, %8, %cst_85 {dimension_numbers = #tpu.dot_dimension_numbers<[1], [0], [0], [1], [0, 0, 1, 1], [], []>} : vector<8x256xf32>, vector<256x512xf32>, vector<8x512xf32> -> vector<8x512xf32>
    %412 = arith.addf %411, %11 : vector<8x512xf32>
    %413 = vector.extract_strided_slice %412 {offsets = [0, 0], sizes = [8, 128], strides = [1, 1]} : vector<8x512xf32> to vector<8x128xf32>
    %414 = arith.negf %413 : vector<8x128xf32>
    %415 = math.exp %414 : vector<8x128xf32>
    %cst_86 = arith.constant 1.000000e+00 : f32
    %416 = vector.broadcast %cst_86 : f32 to vector<8x128xf32>
    %417 = arith.addf %416, %415 : vector<8x128xf32>
    %418 = arith.divf %416, %417 : vector<8x128xf32>
    %419 = vector.extract_strided_slice %412 {offsets = [0, 128], sizes = [8, 128], strides = [1, 1]} : vector<8x512xf32> to vector<8x128xf32>
    %420 = arith.negf %419 : vector<8x128xf32>
    %421 = math.exp %420 : vector<8x128xf32>
    %cst_87 = arith.constant 1.000000e+00 : f32
    %422 = vector.broadcast %cst_87 : f32 to vector<8x128xf32>
    %423 = arith.addf %422, %421 : vector<8x128xf32>
    %424 = arith.divf %422, %423 : vector<8x128xf32>
    %425 = vector.extract_strided_slice %412 {offsets = [0, 256], sizes = [8, 128], strides = [1, 1]} : vector<8x512xf32> to vector<8x128xf32>
    %426 = math.tanh %425 : vector<8x128xf32>
    %427 = vector.extract_strided_slice %412 {offsets = [0, 384], sizes = [8, 128], strides = [1, 1]} : vector<8x512xf32> to vector<8x128xf32>
    %428 = arith.negf %427 : vector<8x128xf32>
    %429 = math.exp %428 : vector<8x128xf32>
    %cst_88 = arith.constant 1.000000e+00 : f32
    %430 = vector.broadcast %cst_88 : f32 to vector<8x128xf32>
    %431 = arith.addf %430, %429 : vector<8x128xf32>
    %432 = arith.divf %430, %431 : vector<8x128xf32>
    %433 = arith.mulf %424, %374 : vector<8x128xf32>
    %434 = arith.mulf %418, %426 : vector<8x128xf32>
    %435 = arith.addf %433, %434 : vector<8x128xf32>
    %436 = math.tanh %435 : vector<8x128xf32>
    %437 = arith.mulf %432, %436 : vector<8x128xf32>
    %438 = arith.index_cast %380 : i32 to index
    %c0_89 = arith.constant 0 : index
    %439 = vector.load %arg10[%438, %c0_89] : memref<64x128xf32, #tpu.memory_space<vmem>>, vector<8x128xf32>
    tpu.vector_store %arg10[%438, %c0_89], %437 {strides = array<i32>} : memref<64x128xf32, #tpu.memory_space<vmem>>, vector<8x128xf32>,
    %c7_i32 = arith.constant 7 : i32
    %c8_i32_90 = arith.constant 8 : i32
    %440 = arith.muli %c7_i32, %c8_i32_90 : i32
    %441 = tpu.assume_multiple %440, 8 : i32
    %442 = arith.index_cast %441 : i32 to index
    %c0_91 = arith.constant 0 : index
    %443 = vector.load %arg9[%442, %c0_91] : memref<64x512xf32, #tpu.memory_space<vmem>>, vector<8x512xf32>
    %cst_92 = arith.constant dense<0.000000e+00> : vector<8x512xf32>
    %444 = tpu.matmul %409, %7, %cst_92 {dimension_numbers = #tpu.dot_dimension_numbers<[1], [0], [0], [1], [0, 0, 1, 1], [], []>} : vector<8x128xf32>, vector<128x512xf32>, vector<8x512xf32> -> vector<8x512xf32>
    %445 = arith.addf %443, %444 : vector<8x512xf32>
    %446 = vector.extract_strided_slice %445 {offsets = [0, 0], sizes = [8, 128], strides = [1, 1]} : vector<8x512xf32> to vector<8x128xf32>
    %447 = arith.negf %446 : vector<8x128xf32>
    %448 = math.exp %447 : vector<8x128xf32>
    %cst_93 = arith.constant 1.000000e+00 : f32
    %449 = vector.broadcast %cst_93 : f32 to vector<8x128xf32>
    %450 = arith.addf %449, %448 : vector<8x128xf32>
    %451 = arith.divf %449, %450 : vector<8x128xf32>
    %452 = vector.extract_strided_slice %445 {offsets = [0, 128], sizes = [8, 128], strides = [1, 1]} : vector<8x512xf32> to vector<8x128xf32>
    %453 = arith.negf %452 : vector<8x128xf32>
    %454 = math.exp %453 : vector<8x128xf32>
    %cst_94 = arith.constant 1.000000e+00 : f32
    %455 = vector.broadcast %cst_94 : f32 to vector<8x128xf32>
    %456 = arith.addf %455, %454 : vector<8x128xf32>
    %457 = arith.divf %455, %456 : vector<8x128xf32>
    %458 = vector.extract_strided_slice %445 {offsets = [0, 256], sizes = [8, 128], strides = [1, 1]} : vector<8x512xf32> to vector<8x128xf32>
    %459 = math.tanh %458 : vector<8x128xf32>
    %460 = vector.extract_strided_slice %445 {offsets = [0, 384], sizes = [8, 128], strides = [1, 1]} : vector<8x512xf32> to vector<8x128xf32>
    %461 = arith.negf %460 : vector<8x128xf32>
    %462 = math.exp %461 : vector<8x128xf32>
    %cst_95 = arith.constant 1.000000e+00 : f32
    %463 = vector.broadcast %cst_95 : f32 to vector<8x128xf32>
    %464 = arith.addf %463, %462 : vector<8x128xf32>
    %465 = arith.divf %463, %464 : vector<8x128xf32>
    %466 = arith.mulf %457, %407 : vector<8x128xf32>
    %467 = arith.mulf %451, %459 : vector<8x128xf32>
    %468 = arith.addf %466, %467 : vector<8x128xf32>
    %469 = math.tanh %468 : vector<8x128xf32>
    %470 = arith.mulf %465, %469 : vector<8x128xf32>
    %471 = tpu.concatenate %470, %437 in 1 : vector<8x128xf32>, vector<8x128xf32> -> vector<8x256xf32>
    %cst_96 = arith.constant dense<0.000000e+00> : vector<8x512xf32>
    %472 = tpu.matmul %471, %8, %cst_96 {dimension_numbers = #tpu.dot_dimension_numbers<[1], [0], [0], [1], [0, 0, 1, 1], [], []>} : vector<8x256xf32>, vector<256x512xf32>, vector<8x512xf32> -> vector<8x512xf32>
    %473 = arith.addf %472, %11 : vector<8x512xf32>
    %474 = vector.extract_strided_slice %473 {offsets = [0, 0], sizes = [8, 128], strides = [1, 1]} : vector<8x512xf32> to vector<8x128xf32>
    %475 = arith.negf %474 : vector<8x128xf32>
    %476 = math.exp %475 : vector<8x128xf32>
    %cst_97 = arith.constant 1.000000e+00 : f32
    %477 = vector.broadcast %cst_97 : f32 to vector<8x128xf32>
    %478 = arith.addf %477, %476 : vector<8x128xf32>
    %479 = arith.divf %477, %478 : vector<8x128xf32>
    %480 = vector.extract_strided_slice %473 {offsets = [0, 128], sizes = [8, 128], strides = [1, 1]} : vector<8x512xf32> to vector<8x128xf32>
    %481 = arith.negf %480 : vector<8x128xf32>
    %482 = math.exp %481 : vector<8x128xf32>
    %cst_98 = arith.constant 1.000000e+00 : f32
    %483 = vector.broadcast %cst_98 : f32 to vector<8x128xf32>
    %484 = arith.addf %483, %482 : vector<8x128xf32>
    %485 = arith.divf %483, %484 : vector<8x128xf32>
    %486 = vector.extract_strided_slice %473 {offsets = [0, 256], sizes = [8, 128], strides = [1, 1]} : vector<8x512xf32> to vector<8x128xf32>
    %487 = math.tanh %486 : vector<8x128xf32>
    %488 = vector.extract_strided_slice %473 {offsets = [0, 384], sizes = [8, 128], strides = [1, 1]} : vector<8x512xf32> to vector<8x128xf32>
    %489 = arith.negf %488 : vector<8x128xf32>
    %490 = math.exp %489 : vector<8x128xf32>
    %cst_99 = arith.constant 1.000000e+00 : f32
    %491 = vector.broadcast %cst_99 : f32 to vector<8x128xf32>
    %492 = arith.addf %491, %490 : vector<8x128xf32>
    %493 = arith.divf %491, %492 : vector<8x128xf32>
    %494 = arith.mulf %485, %435 : vector<8x128xf32>
    %495 = arith.mulf %479, %487 : vector<8x128xf32>
    %496 = arith.addf %494, %495 : vector<8x128xf32>
    %497 = math.tanh %496 : vector<8x128xf32>
    %498 = arith.mulf %493, %497 : vector<8x128xf32>
    %499 = arith.index_cast %441 : i32 to index
    %c0_100 = arith.constant 0 : index
    %500 = vector.load %arg10[%499, %c0_100] : memref<64x128xf32, #tpu.memory_space<vmem>>, vector<8x128xf32>
    tpu.vector_store %arg10[%499, %c0_100], %498 {strides = array<i32>} : memref<64x128xf32, #tpu.memory_space<vmem>>, vector<8x128xf32>,
    %c8_i32_101 = arith.constant 8 : i32
    %c0_102 = arith.constant 0 : index
    %c0_103 = arith.constant 0 : index
    %501 = vector.load %arg10[%c0_102, %c0_103] : memref<64x128xf32, #tpu.memory_space<vmem>>, vector<64x128xf32>
    %c0_104 = arith.constant 0 : index
    %c0_105 = arith.constant 0 : index
    %502 = vector.load %arg6[%c0_104, %c0_105] : memref<128x128xf32, #tpu.memory_space<vmem>>, vector<128x128xf32>
    %cst_106 = arith.constant dense<0.000000e+00> : vector<64x128xf32>
    %503 = tpu.matmul %501, %502, %cst_106 {dimension_numbers = #tpu.dot_dimension_numbers<[1], [0], [0], [1], [0, 0, 1, 1], [], []>} : vector<64x128xf32>, vector<128x128xf32>, vector<64x128xf32> -> vector<64x128xf32>
    %c0_107 = arith.constant 0 : index
    %c0_108 = arith.constant 0 : index
    %504 = vector.load %arg7[%c0_107, %c0_108] : memref<1x128xf32, #tpu.memory_space<vmem>>, vector<1x128xf32>
    %505 = vector.broadcast %504 : vector<1x128xf32> to vector<64x128xf32>
    %506 = arith.addf %503, %505 : vector<64x128xf32>
    %c0_109 = arith.constant 0 : index
    %c0_110 = arith.constant 0 : index
    %507 = vector.load %arg8[%c0_109, %c0_110] : memref<64x128xf32, #tpu.memory_space<vmem>>, vector<64x128xf32>
    tpu.vector_store %arg8[%c0_109, %c0_110], %506 {strides = array<i32>} : memref<64x128xf32, #tpu.memory_space<vmem>>, vector<64x128xf32>,
    return
  }
}

</mosaic_0001>

<llo_original>
// kernel: tpu_custom_call.1
$region0: #{tpu_custom_call.1}
  #allocation0 [shape = 'u32[]', space=smem, size = 0x4, offset = 0x4, fixed_abs, tag = 'smem constant byte address 0x4 - core index']
  #allocation1 [shape = 'u32[144,128]{1,0:T(1,128)}', space=vmem, size = 0x12000, scoped, tag = 'internal scratch']
  #allocation2 [shape = 'f32[64,512]{1,0:T(8,128)}', space=vmem, size = 0x20000, scoped, tag = 'scratch operand']
  #allocation3 [shape = 'f32[64,128]{1,0:T(8,128)}', space=vmem, size = 0x8000, scoped, tag = 'scratch operand']
  %s0 = inlined_call_operand.hbm [shape: f32[64,128], index: 0, kind: input, shape index: {}]
  %s1 = inlined_call_operand.hbm [shape: f32[128,512], index: 1, kind: input, shape index: {}]
  %s2 = inlined_call_operand.hbm [shape: f32[1,512], index: 2, kind: input, shape index: {}]
  %s3 = inlined_call_operand.hbm [shape: f32[128,512], index: 3, kind: input, shape index: {}]
  %s4 = inlined_call_operand.hbm [shape: f32[256,512], index: 4, kind: input, shape index: {}]
  %s5 = inlined_call_operand.vmem [shape: f32[1,512], index: 5, kind: input, shape index: {}]
  %s6 = inlined_call_operand.hbm [shape: f32[128,128], index: 6, kind: input, shape index: {}]
  %s7 = inlined_call_operand.vmem [shape: f32[1,128], index: 7, kind: input, shape index: {}]
  %s8 = inlined_call_operand.hbm [shape: f32[64,128], index: 8, kind: output, shape index: {}]
  %s9 = sld [smem:[#allocation0]]
  $region66: #{tpu_custom_call.1} parent=0
    _
  %s11 = ssub.s32 1, %s9
  %s12 = scalar_select 0, %s11, %s9
  $region1: #{tpu_custom_call.1} parent=0
    #allocation4 [shape = 'u8[32768]{0}', space=vmem, size = 0x8000, scoped, tag = 'input window, operand 0, single buffered']
    #allocation5 [shape = 's32[1]{0}', space=sflag, size = 0x4, scoped, tag = 'scoped memory for tpu_custom_call.1']
    #allocation6 [shape = 's32[1]{0}', space=sflag, size = 0x4, scoped, tag = 'scoped memory for tpu_custom_call.1']
    #allocation7 [shape = 'u8[262144]{0}', space=vmem, size = 0x40000, scoped, tag = 'input window, operand 1, single buffered']
    #allocation8 [shape = 's32[1]{0}', space=sflag, size = 0x4, scoped, tag = 'scoped memory for tpu_custom_call.1']
    #allocation9 [shape = 'u8[2048]{0}', space=vmem, size = 0x800, scoped, tag = 'input window, operand 2, single buffered']
    #allocation10 [shape = 'u8[262144]{0}', space=vmem, size = 0x40000, scoped, tag = 'input window, operand 3, single buffered']
    #allocation11 [shape = 's32[1]{0}', space=sflag, size = 0x4, scoped, tag = 'scoped memory for tpu_custom_call.1']
    #allocation12 [shape = 'u8[524288]{0}', space=vmem, size = 0x80000, scoped, tag = 'input window, operand 4, single buffered']
    #allocation13 [shape = 'u8[65536]{0}', space=vmem, size = 0x10000, scoped, tag = 'input window, operand 6, single buffered']
    #allocation14 [shape = 's32[1]{0}', space=sflag, size = 0x4, scoped, tag = 'scoped memory for tpu_custom_call.1']
    #allocation15 [shape = 'u8[32768]{0}', space=vmem, size = 0x8000, scoped, tag = 'output window, operand 0, single buffered']
    %13 = vsyncpa [#allocation5], 0
    %14 = vsyncpa [#allocation8], 0
    %15 = vsyncpa [#allocation11], 0
    %16 = vsyncpa [#allocation14], 0
    %17 = vsyncpa [#allocation6], 0
    // Predicated region
    $region2: #{tpu_custom_call.1} parent=1 // pred_check
      _
    $region3: #{tpu_custom_call.1} parent=1 // pred_check_branch
      %19 = sbr.rel (0) target = $region5
    $region4: #{tpu_custom_call.1} parent=1 // pred_region
      %s21 = ssub.s32 1024, 1024
      %22 = vsyncadd [#allocation5], %s21
      %s23 = sshll.u32 [#allocation4], 4
      %s24 = int_to_ptr.vmem [resolvable:$true] %s23
      %29 = dma.hbm_to_vmem [thread:$0]  %s0, 1024, %s24, [#allocation5], 128, 128, 8
    $region5: #{tpu_custom_call.1} parent=1 // pred_fallthru
      _
    // Predicated region
    $region6: #{tpu_custom_call.1} parent=1 // pred_check
      _
    $region7: #{tpu_custom_call.1} parent=1 // pred_check_branch
      %31 = sbr.rel (0) target = $region9
    $region8: #{tpu_custom_call.1} parent=1 // pred_region
      %s33 = ssub.s32 8192, 8192
      %34 = vsyncadd [#allocation8], %s33
      %s35 = sshll.u32 [#allocation7], 4
      %s36 = int_to_ptr.vmem [resolvable:$true] %s35
      %41 = dma.hbm_to_vmem [thread:$0]  %s1, 8192, %s36, [#allocation8], 512, 512, 32
    $region9: #{tpu_custom_call.1} parent=1 // pred_fallthru
      _
    // Predicated region
    $region10: #{tpu_custom_call.1} parent=1 // pred_check
      _
    $region11: #{tpu_custom_call.1} parent=1 // pred_check_branch
      %43 = sbr.rel (0) target = $region13
    $region12: #{tpu_custom_call.1} parent=1 // pred_region
      %s45 = ssub.s32 64, 64
      %46 = vsyncadd [#allocation8], %s45
      %s48 = sshll.u32 [#allocation9], 4
      %s49 = int_to_ptr.vmem [resolvable:$true] %s48
      %51 = dma.hbm_to_vmem [thread:$0]  %s2, 64, %s49, [#allocation8]
    $region13: #{tpu_custom_call.1} parent=1 // pred_fallthru
      _
    // Predicated region
    $region14: #{tpu_custom_call.1} parent=1 // pred_check
      _
    $region15: #{tpu_custom_call.1} parent=1 // pred_check_branch
      %53 = sbr.rel (0) target = $region17
    $region16: #{tpu_custom_call.1} parent=1 // pred_region
      %s55 = ssub.s32 8192, 8192
      %56 = vsyncadd [#allocation11], %s55
      %s57 = sshll.u32 [#allocation10], 4
      %s58 = int_to_ptr.vmem [resolvable:$true] %s57
      %63 = dma.hbm_to_vmem [thread:$0]  %s3, 8192, %s58, [#allocation11], 512, 512, 32
    $region17: #{tpu_custom_call.1} parent=1 // pred_fallthru
      _
    // Predicated region
    $region18: #{tpu_custom_call.1} parent=1 // pred_check
      _
    $region19: #{tpu_custom_call.1} parent=1 // pred_check_branch
      %65 = sbr.rel (0) target = $region21
    $region20: #{tpu_custom_call.1} parent=1 // pred_region
      %s67 = ssub.s32 16384, 16384
      %68 = vsyncadd [#allocation11], %s67
      %s69 = sshll.u32 [#allocation12], 4
      %s70 = int_to_ptr.vmem [resolvable:$true] %s69
      %75 = dma.hbm_to_vmem [thread:$0]  %s4, 16384, %s70, [#allocation11], 512, 512, 32
    $region21: #{tpu_custom_call.1} parent=1 // pred_fallthru
      _
    // Predicated region
    $region22: #{tpu_custom_call.1} parent=1 // pred_check
      _
    $region23: #{tpu_custom_call.1} parent=1 // pred_check_branch
      %77 = sbr.rel (0) target = $region25
    $region24: #{tpu_custom_call.1} parent=1 // pred_region
      _
    $region25: #{tpu_custom_call.1} parent=1 // pred_fallthru
      _
    // Predicated region
    $region26: #{tpu_custom_call.1} parent=1 // pred_check
      _
    $region27: #{tpu_custom_call.1} parent=1 // pred_check_branch
      %79 = sbr.rel (0) target = $region29
    $region28: #{tpu_custom_call.1} parent=1 // pred_region
      %s81 = ssub.s32 2048, 2048
      %82 = vsyncadd [#allocation14], %s81
      %s83 = sshll.u32 [#allocation13], 4
      %s84 = int_to_ptr.vmem [resolvable:$true] %s83
      %89 = dma.hbm_to_vmem [thread:$0]  %s6, 2048, %s84, [#allocation14], 128, 128, 8
    $region29: #{tpu_custom_call.1} parent=1 // pred_fallthru
      _
    // Predicated region
    $region30: #{tpu_custom_call.1} parent=1 // pred_check
      _
    $region31: #{tpu_custom_call.1} parent=1 // pred_check_branch
      %91 = sbr.rel (0) target = $region33
    $region32: #{tpu_custom_call.1} parent=1 // pred_region
      _
    $region33: #{tpu_custom_call.1} parent=1 // pred_fallthru
      _
    // Predicated region
    $region34: #{tpu_custom_call.1} parent=1 // pred_check
      _
    $region35: #{tpu_custom_call.1} parent=1 // pred_check_branch
      %93 = sbr.rel (0) target = $region37
    $region36: #{tpu_custom_call.1} parent=1 // pred_region
      %94 = dma.done [#allocation5], 1024
    $region37: #{tpu_custom_call.1} parent=1 // pred_fallthru
      _
    // Predicated region
    $region38: #{tpu_custom_call.1} parent=1 // pred_check
      _
    $region39: #{tpu_custom_call.1} parent=1 // pred_check_branch
      %96 = sbr.rel (0) target = $region41
    $region40: #{tpu_custom_call.1} parent=1 // pred_region
      %97 = dma.done [#allocation8], 8192
    $region41: #{tpu_custom_call.1} parent=1 // pred_fallthru
      _
    // Predicated region
    $region42: #{tpu_custom_call.1} parent=1 // pred_check
      _
    $region43: #{tpu_custom_call.1} parent=1 // pred_check_branch
      %99 = sbr.rel (0) target = $region45
    $region44: #{tpu_custom_call.1} parent=1 // pred_region
      %100 = dma.done [#allocation8], 64
    $region45: #{tpu_custom_call.1} parent=1 // pred_fallthru
      _
    // Predicated region
    $region46: #{tpu_custom_call.1} parent=1 // pred_check
      _
    $region47: #{tpu_custom_call.1} parent=1 // pred_check_branch
      %102 = sbr.rel (0) target = $region49
    $region48: #{tpu_custom_call.1} parent=1 // pred_region
      %103 = dma.done [#allocation11], 8192
    $region49: #{tpu_custom_call.1} parent=1 // pred_fallthru
      _
    // Predicated region
    $region50: #{tpu_custom_call.1} parent=1 // pred_check
      _
    $region51: #{tpu_custom_call.1} parent=1 // pred_check_branch
      %105 = sbr.rel (0) target = $region53
    $region52: #{tpu_custom_call.1} parent=1 // pred_region
      %106 = dma.done [#allocation11], 16384
    $region53: #{tpu_custom_call.1} parent=1 // pred_fallthru
      _
    // Predicated region
    $region54: #{tpu_custom_call.1} parent=1 // pred_check
      _
    $region55: #{tpu_custom_call.1} parent=1 // pred_check_branch
      %108 = sbr.rel (0) target = $region57
    $region56: #{tpu_custom_call.1} parent=1 // pred_region
      %109 = dma.done [#allocation14], 2048
    $region57: #{tpu_custom_call.1} parent=1 // pred_fallthru
      _
    %v110 = vld [vmem:[#allocation4] sm:$0xff]
    %v111 = vld [vmem:[#allocation4 + $0x8] sm:$0xff]
    %v112 = vld [vmem:[#allocation4 + $0x10] sm:$0xff]
    %v113 = vld [vmem:[#allocation4 + $0x18] sm:$0xff]
    %v114 = vld [vmem:[#allocation4 + $0x20] sm:$0xff]
    %v115 = vld [vmem:[#allocation4 + $0x28] sm:$0xff]
    %v116 = vld [vmem:[#allocation4 + $0x30] sm:$0xff]
    %v117 = vld [vmem:[#allocation4 + $0x38] sm:$0xff]
    %v118 = vld [vmem:[#allocation7] sm:$0xff]
    %v119 = vld [vmem:[#allocation7 + $0x8] sm:$0xff]
    %v120 = vld [vmem:[#allocation7 + $0x10] sm:$0xff]
    %v121 = vld [vmem:[#allocation7 + $0x18] sm:$0xff]
    %v122 = vld [vmem:[#allocation7 + $0x20] sm:$0xff]
    %v123 = vld [vmem:[#allocation7 + $0x28] sm:$0xff]
    %v124 = vld [vmem:[#allocation7 + $0x30] sm:$0xff]
    %v125 = vld [vmem:[#allocation7 + $0x38] sm:$0xff]
    %v126 = vld [vmem:[#allocation7 + $0x40] sm:$0xff]
    %v127 = vld [vmem:[#allocation7 + $0x48] sm:$0xff]
    %v128 = vld [vmem:[#allocation7 + $0x50] sm:$0xff]
    %v129 = vld [vmem:[#allocation7 + $0x58] sm:$0xff]
    %v130 = vld [vmem:[#allocation7 + $0x60] sm:$0xff]
    %v131 = vld [vmem:[#allocation7 + $0x68] sm:$0xff]
    %v132 = vld [vmem:[#allocation7 + $0x70] sm:$0xff]
    %v133 = vld [vmem:[#allocation7 + $0x78] sm:$0xff]
    %v134 = vld [vmem:[#allocation7 + $0x80] sm:$0xff]
    %v135 = vld [vmem:[#allocation7 + $0x88] sm:$0xff]
    %v136 = vld [vmem:[#allocation7 + $0x90] sm:$0xff]
    %v137 = vld [vmem:[#allocation7 + $0x98] sm:$0xff]
    %v138 = vld [vmem:[#allocation7 + $0xa0] sm:$0xff]
    %v139 = vld [vmem:[#allocation7 + $0xa8] sm:$0xff]
    %v140 = vld [vmem:[#allocation7 + $0xb0] sm:$0xff]
    %v141 = vld [vmem:[#allocation7 + $0xb8] sm:$0xff]
    %v142 = vld [vmem:[#allocation7 + $0xc0] sm:$0xff]
    %v143 = vld [vmem:[#allocation7 + $0xc8] sm:$0xff]
    %v144 = vld [vmem:[#allocation7 + $0xd0] sm:$0xff]
    %v145 = vld [vmem:[#allocation7 + $0xd8] sm:$0xff]
    %v146 = vld [vmem:[#allocation7 + $0xe0] sm:$0xff]
    %v147 = vld [vmem:[#allocation7 + $0xe8] sm:$0xff]
    %v148 = vld [vmem:[#allocation7 + $0xf0] sm:$0xff]
    %v149 = vld [vmem:[#allocation7 + $0xf8] sm:$0xff]
    %v150 = vld [vmem:[#allocation7 + $0x100] sm:$0xff]
    %v151 = vld [vmem:[#allocation7 + $0x108] sm:$0xff]
    %v152 = vld [vmem:[#allocation7 + $0x110] sm:$0xff]
    %v153 = vld [vmem:[#allocation7 + $0x118] sm:$0xff]
    %v154 = vld [vmem:[#allocation7 + $0x120] sm:$0xff]
    %v155 = vld [vmem:[#allocation7 + $0x128] sm:$0xff]
    %v156 = vld [vmem:[#allocation7 + $0x130] sm:$0xff]
    %v157 = vld [vmem:[#allocation7 + $0x138] sm:$0xff]
    %v158 = vld [vmem:[#allocation7 + $0x140] sm:$0xff]
    %v159 = vld [vmem:[#allocation7 + $0x148] sm:$0xff]
    %v160 = vld [vmem:[#allocation7 + $0x150] sm:$0xff]
    %v161 = vld [vmem:[#allocation7 + $0x158] sm:$0xff]
    %v162 = vld [vmem:[#allocation7 + $0x160] sm:$0xff]
    %v163 = vld [vmem:[#allocation7 + $0x168] sm:$0xff]
    %v164 = vld [vmem:[#allocation7 + $0x170] sm:$0xff]
    %v165 = vld [vmem:[#allocation7 + $0x178] sm:$0xff]
    %v166 = vld [vmem:[#allocation7 + $0x180] sm:$0xff]
    %v167 = vld [vmem:[#allocation7 + $0x188] sm:$0xff]
    %v168 = vld [vmem:[#allocation7 + $0x190] sm:$0xff]
    %v169 = vld [vmem:[#allocation7 + $0x198] sm:$0xff]
    %v170 = vld [vmem:[#allocation7 + $0x1a0] sm:$0xff]
    %v171 = vld [vmem:[#allocation7 + $0x1a8] sm:$0xff]
    %v172 = vld [vmem:[#allocation7 + $0x1b0] sm:$0xff]
    %v173 = vld [vmem:[#allocation7 + $0x1b8] sm:$0xff]
    %v174 = vld [vmem:[#allocation7 + $0x1c0] sm:$0xff]
    %v175 = vld [vmem:[#allocation7 + $0x1c8] sm:$0xff]
    %v176 = vld [vmem:[#allocation7 + $0x1d0] sm:$0xff]
    %v177 = vld [vmem:[#allocation7 + $0x1d8] sm:$0xff]
    %v178 = vld [vmem:[#allocation7 + $0x1e0] sm:$0xff]
    %v179 = vld [vmem:[#allocation7 + $0x1e8] sm:$0xff]
    %v180 = vld [vmem:[#allocation7 + $0x1f0] sm:$0xff]
    %v181 = vld [vmem:[#allocation7 + $0x1f8] sm:$0xff]
    %v182 = vld [vmem:[#allocation9] sm:$0xf]
    %v184 = vlaneseq
    %v185 = vshrl.u32 %v184, 7
    %v186 = vsub.s32 0, %v185
    %v187 = vrot.slane %v182, %v186
    %v188 = vlaneseq
    %v189 = vshrl.u32 %v188, 7
    %v190 = vsub.s32 1, %v189
    %v191 = vrot.slane %v182, %v190
    %v192 = vlaneseq
    %v193 = vshrl.u32 %v192, 7
    %v194 = vsub.s32 2, %v193
    %v195 = vrot.slane %v182, %v194
    %v196 = vlaneseq
    %v197 = vshrl.u32 %v196, 7
    %v198 = vsub.s32 3, %v197
    %v199 = vrot.slane %v182, %v198
    %204 = vmatprep.subr.mxu0 %v179
    %205 = vmatpush1.msra.mxu0 %v178
    %206 = vmatprep.subr.mxu0 %v175
    %207 = vmatpush1.msra.mxu0 %v174
    %208 = vmatprep.subr.mxu0 %v171
    %209 = vmatpush1.msra.mxu0 %v170
    %210 = vmatprep.subr.mxu0 %v167
    %211 = vmatpush1.msra.mxu0 %v166
    %212 = vmatprep.subr.mxu0 %v163
    %213 = vmatpush1.msra.mxu0 %v162
    %214 = vmatprep.subr.mxu0 %v159
    %215 = vmatpush1.msra.mxu0 %v158
    %216 = vmatprep.subr.mxu0 %v155
    %217 = vmatpush1.msra.mxu0 %v154
    %218 = vmatprep.subr.mxu0 %v151
    %219 = vmatpush1.msra.mxu0 %v150
    %220 = vmatprep.subr.mxu0 %v147
    %221 = vmatpush1.msra.mxu0 %v146
    %222 = vmatprep.subr.mxu0 %v143
    %223 = vmatpush1.msra.mxu0 %v142
    %224 = vmatprep.subr.mxu0 %v139
    %225 = vmatpush1.msra.mxu0 %v138
    %226 = vmatprep.subr.mxu0 %v135
    %227 = vmatpush1.msra.mxu0 %v134
    %228 = vmatprep.subr.mxu0 %v131
    %229 = vmatpush1.msra.mxu0 %v130
    %230 = vmatprep.subr.mxu0 %v127
    %231 = vmatpush1.msra.mxu0 %v126
    %232 = vmatprep.subr.mxu0 %v123
    %233 = vmatpush1.msra.mxu0 %v122
    %234 = vmatprep.subr.mxu0 %v119
    %235 = vmatpush1.msra.mxu0 %v118
    %236 = vmatprep.subr.mxu0 0.0
    %237 = vmatpush2.msra.mxu0 0.0
    %238 = vmatprep.subr.mxu0 0.0
    %239 = vmatpush2.msra.mxu0 0.0
    %240 = vmatprep.subr.mxu0 0.0
    %241 = vmatpush2.msra.mxu0 0.0
    %242 = vmatprep.subr.mxu0 0.0
    %243 = vmatpush2.msra.mxu0 0.0
    %244 = vmatprep.subr.mxu0 0.0
    %245 = vmatpush2.msra.mxu0 0.0
    %246 = vmatprep.subr.mxu0 0.0
    %247 = vmatpush2.msra.mxu0 0.0
    %248 = vmatprep.subr.mxu0 0.0
    %249 = vmatpush2.msra.mxu0 0.0
    %250 = vmatprep.subr.mxu0 0.0
    %251 = vmatpush2.msra.mxu0 0.0
    %252 = vmatprep.subr.mxu0 0.0
    %253 = vmatpush2.msra.mxu0 0.0
    %254 = vmatprep.subr.mxu0 0.0
    %255 = vmatpush2.msra.mxu0 0.0
    %256 = vmatprep.subr.mxu0 0.0
    %257 = vmatpush2.msra.mxu0 0.0
    %258 = vmatprep.subr.mxu0 0.0
    %259 = vmatpush2.msra.mxu0 0.0
    %260 = vmatprep.subr.mxu0 0.0
    %261 = vmatpush2.msra.mxu0 0.0
    %262 = vmatprep.subr.mxu0 0.0
    %263 = vmatpush2.msra.mxu0 0.0
    %264 = vmatprep.subr.mxu0 0.0
    %265 = vmatpush2.msra.mxu0 0.0
    %266 = vmatprep.subr.mxu0 0.0
    %267 = vmatpush2.msra.mxu0 0.0
    %268 = vmatprep.mubr.f32.mxu0 0.0
    %269 = vmatmul.mubr.f32.gmra.mxu0 %v110
    %v270 = vpop.f32.mrf.mxu0
    %v271 = vadd.f32 %v187, %v270
    %v272 = vpop.f32.mrf.mxu0
    %v273 = vadd.f32 %v191, %v272
    %274 = vmatprep.mubr.f32.mxu0 0.0
    %275 = vmatmul.mubr.f32.gmra.mxu0 %v111
    %v276 = vpop.f32.mrf.mxu0
    %v277 = vadd.f32 %v187, %v276
    %v278 = vpop.f32.mrf.mxu0
    %v279 = vadd.f32 %v191, %v278
    %280 = vmatprep.mubr.f32.mxu0 0.0
    %281 = vmatmul.mubr.f32.gmra.mxu0 %v112
    %v282 = vpop.f32.mrf.mxu0
    %v283 = vadd.f32 %v187, %v282
    %v284 = vpop.f32.mrf.mxu0
    %v285 = vadd.f32 %v191, %v284
    %286 = vmatprep.mubr.f32.mxu0 0.0
    %287 = vmatmul.mubr.f32.gmra.mxu0 %v113
    %v288 = vpop.f32.mrf.mxu0
    %v289 = vadd.f32 %v187, %v288
    %v290 = vpop.f32.mrf.mxu0
    %v291 = vadd.f32 %v191, %v290
    %292 = vmatprep.mubr.f32.mxu0 0.0
    %293 = vmatmul.mubr.f32.gmra.mxu0 %v114
    %v294 = vpop.f32.mrf.mxu0
    %v295 = vadd.f32 %v187, %v294
    %v296 = vpop.f32.mrf.mxu0
    %v297 = vadd.f32 %v191, %v296
    %298 = vmatprep.mubr.f32.mxu0 0.0
    %299 = vmatmul.mubr.f32.gmra.mxu0 %v115
    %v300 = vpop.f32.mrf.mxu0
    %v301 = vadd.f32 %v187, %v300
    %v302 = vpop.f32.mrf.mxu0
    %v303 = vadd.f32 %v191, %v302
    %304 = vmatprep.mubr.f32.mxu0 0.0
    %305 = vmatmul.mubr.f32.gmra.mxu0 %v116
    %v306 = vpop.f32.mrf.mxu0
    %v307 = vadd.f32 %v187, %v306
    %v308 = vpop.f32.mrf.mxu0
    %v309 = vadd.f32 %v191, %v308
    %310 = vmatprep.mubr.f32.mxu0 0.0
    %311 = vmatmul.mubr.f32.gmra.mxu0 %v117
    %v312 = vpop.f32.mrf.mxu0
    %v313 = vadd.f32 %v187, %v312
    %v314 = vpop.f32.mrf.mxu0
    %v315 = vadd.f32 %v191, %v314
    %316 = vdwg.mxu0
    %317 = vmatprep.subr.mxu0 %v181
    %318 = vmatpush1.msra.mxu0 %v180
    %319 = vmatprep.subr.mxu0 %v177
    %320 = vmatpush1.msra.mxu0 %v176
    %321 = vmatprep.subr.mxu0 %v173
    %322 = vmatpush1.msra.mxu0 %v172
    %323 = vmatprep.subr.mxu0 %v169
    %324 = vmatpush1.msra.mxu0 %v168
    %325 = vmatprep.subr.mxu0 %v165
    %326 = vmatpush1.msra.mxu0 %v164
    %327 = vmatprep.subr.mxu0 %v161
    %328 = vmatpush1.msra.mxu0 %v160
    %329 = vmatprep.subr.mxu0 %v157
    %330 = vmatpush1.msra.mxu0 %v156
    %331 = vmatprep.subr.mxu0 %v153
    %332 = vmatpush1.msra.mxu0 %v152
    %333 = vmatprep.subr.mxu0 %v149
    %334 = vmatpush1.msra.mxu0 %v148
    %335 = vmatprep.subr.mxu0 %v145
    %336 = vmatpush1.msra.mxu0 %v144
    %337 = vmatprep.subr.mxu0 %v141
    %338 = vmatpush1.msra.mxu0 %v140
    %339 = vmatprep.subr.mxu0 %v137
    %340 = vmatpush1.msra.mxu0 %v136
    %341 = vmatprep.subr.mxu0 %v133
    %342 = vmatpush1.msra.mxu0 %v132
    %343 = vmatprep.subr.mxu0 %v129
    %344 = vmatpush1.msra.mxu0 %v128
    %345 = vmatprep.subr.mxu0 %v125
    %346 = vmatpush1.msra.mxu0 %v124
    %347 = vmatprep.subr.mxu0 %v121
    %348 = vmatpush1.msra.mxu0 %v120
    %349 = vmatprep.subr.mxu0 0.0
    %350 = vmatpush2.msra.mxu0 0.0
    %351 = vmatprep.subr.mxu0 0.0
    %352 = vmatpush2.msra.mxu0 0.0
    %353 = vmatprep.subr.mxu0 0.0
    %354 = vmatpush2.msra.mxu0 0.0
    %355 = vmatprep.subr.mxu0 0.0
    %356 = vmatpush2.msra.mxu0 0.0
    %357 = vmatprep.subr.mxu0 0.0
    %358 = vmatpush2.msra.mxu0 0.0
    %359 = vmatprep.subr.mxu0 0.0
    %360 = vmatpush2.msra.mxu0 0.0
    %361 = vmatprep.subr.mxu0 0.0
    %362 = vmatpush2.msra.mxu0 0.0
    %363 = vmatprep.subr.mxu0 0.0
    %364 = vmatpush2.msra.mxu0 0.0
    %365 = vmatprep.subr.mxu0 0.0
    %366 = vmatpush2.msra.mxu0 0.0
    %367 = vmatprep.subr.mxu0 0.0
    %368 = vmatpush2.msra.mxu0 0.0
    %369 = vmatprep.subr.mxu0 0.0
    %370 = vmatpush2.msra.mxu0 0.0
    %371 = vmatprep.subr.mxu0 0.0
    %372 = vmatpush2.msra.mxu0 0.0
    %373 = vmatprep.subr.mxu0 0.0
    %374 = vmatpush2.msra.mxu0 0.0
    %375 = vmatprep.subr.mxu0 0.0
    %376 = vmatpush2.msra.mxu0 0.0
    %377 = vmatprep.subr.mxu0 0.0
    %378 = vmatpush2.msra.mxu0 0.0
    %379 = vmatprep.subr.mxu0 0.0
    %380 = vmatpush2.msra.mxu0 0.0
    %381 = vmatprep.mubr.f32.mxu0 0.0
    %382 = vmatmul.mubr.f32.gmra.mxu0 %v110
    %v383 = vpop.f32.mrf.mxu0
    %v384 = vadd.f32 %v195, %v383
    %v385 = vpop.f32.mrf.mxu0
    %v386 = vadd.f32 %v199, %v385
    %387 = vmatprep.mubr.f32.mxu0 0.0
    %388 = vmatmul.mubr.f32.gmra.mxu0 %v111
    %v389 = vpop.f32.mrf.mxu0
    %v390 = vadd.f32 %v195, %v389
    %v391 = vpop.f32.mrf.mxu0
    %v392 = vadd.f32 %v199, %v391
    %393 = vmatprep.mubr.f32.mxu0 0.0
    %394 = vmatmul.mubr.f32.gmra.mxu0 %v112
    %v395 = vpop.f32.mrf.mxu0
    %v396 = vadd.f32 %v195, %v395
    %v397 = vpop.f32.mrf.mxu0
    %v398 = vadd.f32 %v199, %v397
    %399 = vmatprep.mubr.f32.mxu0 0.0
    %400 = vmatmul.mubr.f32.gmra.mxu0 %v113
    %v401 = vpop.f32.mrf.mxu0
    %v402 = vadd.f32 %v195, %v401
    %v403 = vpop.f32.mrf.mxu0
    %v404 = vadd.f32 %v199, %v403
    %405 = vmatprep.mubr.f32.mxu0 0.0
    %406 = vmatmul.mubr.f32.gmra.mxu0 %v114
    %v407 = vpop.f32.mrf.mxu0
    %v408 = vadd.f32 %v195, %v407
    %v409 = vpop.f32.mrf.mxu0
    %v410 = vadd.f32 %v199, %v409
    %411 = vmatprep.mubr.f32.mxu0 0.0
    %412 = vmatmul.mubr.f32.gmra.mxu0 %v115
    %v413 = vpop.f32.mrf.mxu0
    %v414 = vadd.f32 %v195, %v413
    %v415 = vpop.f32.mrf.mxu0
    %v416 = vadd.f32 %v199, %v415
    %417 = vmatprep.mubr.f32.mxu0 0.0
    %418 = vmatmul.mubr.f32.gmra.mxu0 %v116
    %v419 = vpop.f32.mrf.mxu0
    %v420 = vadd.f32 %v195, %v419
    %v421 = vpop.f32.mrf.mxu0
    %v422 = vadd.f32 %v199, %v421
    %423 = vmatprep.mubr.f32.mxu0 0.0
    %424 = vmatmul.mubr.f32.gmra.mxu0 %v117
    %v425 = vpop.f32.mrf.mxu0
    %v426 = vadd.f32 %v195, %v425
    %v427 = vpop.f32.mrf.mxu0
    %v428 = vadd.f32 %v199, %v427
    %429 = vdwg.mxu0
    %430 = vst [vmem:[#allocation2] sm:$0xff] %v271
    %431 = vst [vmem:[#allocation2 + $0x8] sm:$0xff] %v273
    %432 = vst [vmem:[#allocation2 + $0x10] sm:$0xff] %v384
    %433 = vst [vmem:[#allocation2 + $0x18] sm:$0xff] %v386
    %434 = vst [vmem:[#allocation2 + $0x20] sm:$0xff] %v277
    %435 = vst [vmem:[#allocation2 + $0x28] sm:$0xff] %v279
    %436 = vst [vmem:[#allocation2 + $0x30] sm:$0xff] %v390
    %437 = vst [vmem:[#allocation2 + $0x38] sm:$0xff] %v392
    %438 = vst [vmem:[#allocation2 + $0x40] sm:$0xff] %v283
    %439 = vst [vmem:[#allocation2 + $0x48] sm:$0xff] %v285
    %440 = vst [vmem:[#allocation2 + $0x50] sm:$0xff] %v396
    %441 = vst [vmem:[#allocation2 + $0x58] sm:$0xff] %v398
    %442 = vst [vmem:[#allocation2 + $0x60] sm:$0xff] %v289
    %443 = vst [vmem:[#allocation2 + $0x68] sm:$0xff] %v291
    %444 = vst [vmem:[#allocation2 + $0x70] sm:$0xff] %v402
    %445 = vst [vmem:[#allocation2 + $0x78] sm:$0xff] %v404
    %446 = vst [vmem:[#allocation2 + $0x80] sm:$0xff] %v295
    %447 = vst [vmem:[#allocation2 + $0x88] sm:$0xff] %v297
    %448 = vst [vmem:[#allocation2 + $0x90] sm:$0xff] %v408
    %449 = vst [vmem:[#allocation2 + $0x98] sm:$0xff] %v410
    %450 = vst [vmem:[#allocation2 + $0xa0] sm:$0xff] %v301
    %451 = vst [vmem:[#allocation2 + $0xa8] sm:$0xff] %v303
    %452 = vst [vmem:[#allocation2 + $0xb0] sm:$0xff] %v414
    %453 = vst [vmem:[#allocation2 + $0xb8] sm:$0xff] %v416
    %454 = vst [vmem:[#allocation2 + $0xc0] sm:$0xff] %v307
    %455 = vst [vmem:[#allocation2 + $0xc8] sm:$0xff] %v309
    %456 = vst [vmem:[#allocation2 + $0xd0] sm:$0xff] %v420
    %457 = vst [vmem:[#allocation2 + $0xd8] sm:$0xff] %v422
    %458 = vst [vmem:[#allocation2 + $0xe0] sm:$0xff] %v313
    %459 = vst [vmem:[#allocation2 + $0xe8] sm:$0xff] %v315
    %460 = vst [vmem:[#allocation2 + $0xf0] sm:$0xff] %v426
    %461 = vst [vmem:[#allocation2 + $0xf8] sm:$0xff] %v428
    %v462 = vld [vmem:[#allocation10] sm:$0xff]
    %v463 = vld [vmem:[#allocation10 + $0x8] sm:$0xff]
    %v464 = vld [vmem:[#allocation10 + $0x10] sm:$0xff]
    %v465 = vld [vmem:[#allocation10 + $0x18] sm:$0xff]
    %v466 = vld [vmem:[#allocation10 + $0x20] sm:$0xff]
    %v467 = vld [vmem:[#allocation10 + $0x28] sm:$0xff]
    %v468 = vld [vmem:[#allocation10 + $0x30] sm:$0xff]
    %v469 = vld [vmem:[#allocation10 + $0x38] sm:$0xff]
    %v470 = vld [vmem:[#allocation10 + $0x40] sm:$0xff]
    %v471 = vld [vmem:[#allocation10 + $0x48] sm:$0xff]
    %v472 = vld [vmem:[#allocation10 + $0x50] sm:$0xff]
    %v473 = vld [vmem:[#allocation10 + $0x58] sm:$0xff]
    %v474 = vld [vmem:[#allocation10 + $0x60] sm:$0xff]
    %v475 = vld [vmem:[#allocation10 + $0x68] sm:$0xff]
    %v476 = vld [vmem:[#allocation10 + $0x70] sm:$0xff]
    %v477 = vld [vmem:[#allocation10 + $0x78] sm:$0xff]
    %v478 = vld [vmem:[#allocation10 + $0x80] sm:$0xff]
    %v479 = vld [vmem:[#allocation10 + $0x88] sm:$0xff]
    %v480 = vld [vmem:[#allocation10 + $0x90] sm:$0xff]
    %v481 = vld [vmem:[#allocation10 + $0x98] sm:$0xff]
    %v482 = vld [vmem:[#allocation10 + $0xa0] sm:$0xff]
    %v483 = vld [vmem:[#allocation10 + $0xa8] sm:$0xff]
    %v484 = vld [vmem:[#allocation10 + $0xb0] sm:$0xff]
    %v485 = vld [vmem:[#allocation10 + $0xb8] sm:$0xff]
    %v486 = vld [vmem:[#allocation10 + $0xc0] sm:$0xff]
    %v487 = vld [vmem:[#allocation10 + $0xc8] sm:$0xff]
    %v488 = vld [vmem:[#allocation10 + $0xd0] sm:$0xff]
    %v489 = vld [vmem:[#allocation10 + $0xd8] sm:$0xff]
    %v490 = vld [vmem:[#allocation10 + $0xe0] sm:$0xff]
    %v491 = vld [vmem:[#allocation10 + $0xe8] sm:$0xff]
    %v492 = vld [vmem:[#allocation10 + $0xf0] sm:$0xff]
    %v493 = vld [vmem:[#allocation10 + $0xf8] sm:$0xff]
    %v494 = vld [vmem:[#allocation10 + $0x100] sm:$0xff]
    %v495 = vld [vmem:[#allocation10 + $0x108] sm:$0xff]
    %v496 = vld [vmem:[#allocation10 + $0x110] sm:$0xff]
    %v497 = vld [vmem:[#allocation10 + $0x118] sm:$0xff]
    %v498 = vld [vmem:[#allocation10 + $0x120] sm:$0xff]
    %v499 = vld [vmem:[#allocation10 + $0x128] sm:$0xff]
    %v500 = vld [vmem:[#allocation10 + $0x130] sm:$0xff]
    %v501 = vld [vmem:[#allocation10 + $0x138] sm:$0xff]
    %v502 = vld [vmem:[#allocation10 + $0x140] sm:$0xff]
    %v503 = vld [vmem:[#allocation10 + $0x148] sm:$0xff]
    %v504 = vld [vmem:[#allocation10 + $0x150] sm:$0xff]
    %v505 = vld [vmem:[#allocation10 + $0x158] sm:$0xff]
    %v506 = vld [vmem:[#allocation10 + $0x160] sm:$0xff]
    %v507 = vld [vmem:[#allocation10 + $0x168] sm:$0xff]
    %v508 = vld [vmem:[#allocation10 + $0x170] sm:$0xff]
    %v509 = vld [vmem:[#allocation10 + $0x178] sm:$0xff]
    %v510 = vld [vmem:[#allocation10 + $0x180] sm:$0xff]
    %v511 = vld [vmem:[#allocation10 + $0x188] sm:$0xff]
    %v512 = vld [vmem:[#allocation10 + $0x190] sm:$0xff]
    %v513 = vld [vmem:[#allocation10 + $0x198] sm:$0xff]
    %v514 = vld [vmem:[#allocation10 + $0x1a0] sm:$0xff]
    %v515 = vld [vmem:[#allocation10 + $0x1a8] sm:$0xff]
    %v516 = vld [vmem:[#allocation10 + $0x1b0] sm:$0xff]
    %v517 = vld [vmem:[#allocation10 + $0x1b8] sm:$0xff]
    %v518 = vld [vmem:[#allocation10 + $0x1c0] sm:$0xff]
    %v519 = vld [vmem:[#allocation10 + $0x1c8] sm:$0xff]
    %v520 = vld [vmem:[#allocation10 + $0x1d0] sm:$0xff]
    %v521 = vld [vmem:[#allocation10 + $0x1d8] sm:$0xff]
    %v522 = vld [vmem:[#allocation10 + $0x1e0] sm:$0xff]
    %v523 = vld [vmem:[#allocation10 + $0x1e8] sm:$0xff]
    %v524 = vld [vmem:[#allocation10 + $0x1f0] sm:$0xff]
    %v525 = vld [vmem:[#allocation10 + $0x1f8] sm:$0xff]
    %v526 = vld [vmem:[#allocation12] sm:$0xff]
    %v527 = vld [vmem:[#allocation12 + $0x8] sm:$0xff]
    %v528 = vld [vmem:[#allocation12 + $0x10] sm:$0xff]
    %v529 = vld [vmem:[#allocation12 + $0x18] sm:$0xff]
    %v530 = vld [vmem:[#allocation12 + $0x20] sm:$0xff]
    %v531 = vld [vmem:[#allocation12 + $0x28] sm:$0xff]
    %v532 = vld [vmem:[#allocation12 + $0x30] sm:$0xff]
    %v533 = vld [vmem:[#allocation12 + $0x38] sm:$0xff]
    %v534 = vld [vmem:[#allocation12 + $0x40] sm:$0xff]
    %v535 = vld [vmem:[#allocation12 + $0x48] sm:$0xff]
    %v536 = vld [vmem:[#allocation12 + $0x50] sm:$0xff]
    %v537 = vld [vmem:[#allocation12 + $0x58] sm:$0xff]
    %v538 = vld [vmem:[#allocation12 + $0x60] sm:$0xff]
    %v539 = vld [vmem:[#allocation12 + $0x68] sm:$0xff]
    %v540 = vld [vmem:[#allocation12 + $0x70] sm:$0xff]
    %v541 = vld [vmem:[#allocation12 + $0x78] sm:$0xff]
    %v542 = vld [vmem:[#allocation12 + $0x80] sm:$0xff]
    %v543 = vld [vmem:[#allocation12 + $0x88] sm:$0xff]
    %v544 = vld [vmem:[#allocation12 + $0x90] sm:$0xff]
    %v545 = vld [vmem:[#allocation12 + $0x98] sm:$0xff]
    %v546 = vld [vmem:[#allocation12 + $0xa0] sm:$0xff]
    %v547 = vld [vmem:[#allocation12 + $0xa8] sm:$0xff]
    %v548 = vld [vmem:[#allocation12 + $0xb0] sm:$0xff]
    %v549 = vld [vmem:[#allocation12 + $0xb8] sm:$0xff]
    %v550 = vld [vmem:[#allocation12 + $0xc0] sm:$0xff]
    %v551 = vld [vmem:[#allocation12 + $0xc8] sm:$0xff]
    %v552 = vld [vmem:[#allocation12 + $0xd0] sm:$0xff]
    %v553 = vld [vmem:[#allocation12 + $0xd8] sm:$0xff]
    %v554 = vld [vmem:[#allocation12 + $0xe0] sm:$0xff]
    %v555 = vld [vmem:[#allocation12 + $0xe8] sm:$0xff]
    %v556 = vld [vmem:[#allocation12 + $0xf0] sm:$0xff]
    %v557 = vld [vmem:[#allocation12 + $0xf8] sm:$0xff]
    %v558 = vld [vmem:[#allocation12 + $0x100] sm:$0xff]
    %v559 = vld [vmem:[#allocation12 + $0x108] sm:$0xff]
    %v560 = vld [vmem:[#allocation12 + $0x110] sm:$0xff]
    %v561 = vld [vmem:[#allocation12 + $0x118] sm:$0xff]
    %v562 = vld [vmem:[#allocation12 + $0x120] sm:$0xff]
    %v563 = vld [vmem:[#allocation12 + $0x128] sm:$0xff]
    %v564 = vld [vmem:[#allocation12 + $0x130] sm:$0xff]
    %v565 = vld [vmem:[#allocation12 + $0x138] sm:$0xff]
    %v566 = vld [vmem:[#allocation12 + $0x140] sm:$0xff]
    %v567 = vld [vmem:[#allocation12 + $0x148] sm:$0xff]
    %v568 = vld [vmem:[#allocation12 + $0x150] sm:$0xff]
    %v569 = vld [vmem:[#allocation12 + $0x158] sm:$0xff]
    %v570 = vld [vmem:[#allocation12 + $0x160] sm:$0xff]
    %v571 = vld [vmem:[#allocation12 + $0x168] sm:$0xff]
    %v572 = vld [vmem:[#allocation12 + $0x170] sm:$0xff]
    %v573 = vld [vmem:[#allocation12 + $0x178] sm:$0xff]
    %v574 = vld [vmem:[#allocation12 + $0x180] sm:$0xff]
    %v575 = vld [vmem:[#allocation12 + $0x188] sm:$0xff]
    %v576 = vld [vmem:[#allocation12 + $0x190] sm:$0xff]
    %v577 = vld [vmem:[#allocation12 + $0x198] sm:$0xff]
    %v578 = vld [vmem:[#allocation12 + $0x1a0] sm:$0xff]
    %v579 = vld [vmem:[#allocation12 + $0x1a8] sm:$0xff]
    %v580 = vld [vmem:[#allocation12 + $0x1b0] sm:$0xff]
    %v581 = vld [vmem:[#allocation12 + $0x1b8] sm:$0xff]
    %v582 = vld [vmem:[#allocation12 + $0x1c0] sm:$0xff]
    %v583 = vld [vmem:[#allocation12 + $0x1c8] sm:$0xff]
    %v584 = vld [vmem:[#allocation12 + $0x1d0] sm:$0xff]
    %v585 = vld [vmem:[#allocation12 + $0x1d8] sm:$0xff]
    %v586 = vld [vmem:[#allocation12 + $0x1e0] sm:$0xff]
    %v587 = vld [vmem:[#allocation12 + $0x1e8] sm:$0xff]
    %v588 = vld [vmem:[#allocation12 + $0x1f0] sm:$0xff]
    %v589 = vld [vmem:[#allocation12 + $0x1f8] sm:$0xff]
    %v590 = vld [vmem:[#allocation12 + $0x200] sm:$0xff]
    %v591 = vld [vmem:[#allocation12 + $0x208] sm:$0xff]
    %v592 = vld [vmem:[#allocation12 + $0x210] sm:$0xff]
    %v593 = vld [vmem:[#allocation12 + $0x218] sm:$0xff]
    %v594 = vld [vmem:[#allocation12 + $0x220] sm:$0xff]
    %v595 = vld [vmem:[#allocation12 + $0x228] sm:$0xff]
    %v596 = vld [vmem:[#allocation12 + $0x230] sm:$0xff]
    %v597 = vld [vmem:[#allocation12 + $0x238] sm:$0xff]
    %v598 = vld [vmem:[#allocation12 + $0x240] sm:$0xff]
    %v599 = vld [vmem:[#allocation12 + $0x248] sm:$0xff]
    %v600 = vld [vmem:[#allocation12 + $0x250] sm:$0xff]
    %v601 = vld [vmem:[#allocation12 + $0x258] sm:$0xff]
    %v602 = vld [vmem:[#allocation12 + $0x260] sm:$0xff]
    %v603 = vld [vmem:[#allocation12 + $0x268] sm:$0xff]
    %v604 = vld [vmem:[#allocation12 + $0x270] sm:$0xff]
    %v605 = vld [vmem:[#allocation12 + $0x278] sm:$0xff]
    %v606 = vld [vmem:[#allocation12 + $0x280] sm:$0xff]
    %v607 = vld [vmem:[#allocation12 + $0x288] sm:$0xff]
    %v608 = vld [vmem:[#allocation12 + $0x290] sm:$0xff]
    %v609 = vld [vmem:[#allocation12 + $0x298] sm:$0xff]
    %v610 = vld [vmem:[#allocation12 + $0x2a0] sm:$0xff]
    %v611 = vld [vmem:[#allocation12 + $0x2a8] sm:$0xff]
    %v612 = vld [vmem:[#allocation12 + $0x2b0] sm:$0xff]
    %v613 = vld [vmem:[#allocation12 + $0x2b8] sm:$0xff]
    %v614 = vld [vmem:[#allocation12 + $0x2c0] sm:$0xff]
    %v615 = vld [vmem:[#allocation12 + $0x2c8] sm:$0xff]
    %v616 = vld [vmem:[#allocation12 + $0x2d0] sm:$0xff]
    %v617 = vld [vmem:[#allocation12 + $0x2d8] sm:$0xff]
    %v618 = vld [vmem:[#allocation12 + $0x2e0] sm:$0xff]
    %v619 = vld [vmem:[#allocation12 + $0x2e8] sm:$0xff]
    %v620 = vld [vmem:[#allocation12 + $0x2f0] sm:$0xff]
    %v621 = vld [vmem:[#allocation12 + $0x2f8] sm:$0xff]
    %v622 = vld [vmem:[#allocation12 + $0x300] sm:$0xff]
    %v623 = vld [vmem:[#allocation12 + $0x308] sm:$0xff]
    %v624 = vld [vmem:[#allocation12 + $0x310] sm:$0xff]
    %v625 = vld [vmem:[#allocation12 + $0x318] sm:$0xff]
    %v626 = vld [vmem:[#allocation12 + $0x320] sm:$0xff]
    %v627 = vld [vmem:[#allocation12 + $0x328] sm:$0xff]
    %v628 = vld [vmem:[#allocation12 + $0x330] sm:$0xff]
    %v629 = vld [vmem:[#allocation12 + $0x338] sm:$0xff]
    %v630 = vld [vmem:[#allocation12 + $0x340] sm:$0xff]
    %v631 = vld [vmem:[#allocation12 + $0x348] sm:$0xff]
    %v632 = vld [vmem:[#allocation12 + $0x350] sm:$0xff]
    %v633 = vld [vmem:[#allocation12 + $0x358] sm:$0xff]
    %v634 = vld [vmem:[#allocation12 + $0x360] sm:$0xff]
    %v635 = vld [vmem:[#allocation12 + $0x368] sm:$0xff]
    %v636 = vld [vmem:[#allocation12 + $0x370] sm:$0xff]
    %v637 = vld [vmem:[#allocation12 + $0x378] sm:$0xff]
    %v638 = vld [vmem:[#allocation12 + $0x380] sm:$0xff]
    %v639 = vld [vmem:[#allocation12 + $0x388] sm:$0xff]
    %v640 = vld [vmem:[#allocation12 + $0x390] sm:$0xff]
    %v641 = vld [vmem:[#allocation12 + $0x398] sm:$0xff]
    %v642 = vld [vmem:[#allocation12 + $0x3a0] sm:$0xff]
    %v643 = vld [vmem:[#allocation12 + $0x3a8] sm:$0xff]
    %v644 = vld [vmem:[#allocation12 + $0x3b0] sm:$0xff]
    %v645 = vld [vmem:[#allocation12 + $0x3b8] sm:$0xff]
    %v646 = vld [vmem:[#allocation12 + $0x3c0] sm:$0xff]
    %v647 = vld [vmem:[#allocation12 + $0x3c8] sm:$0xff]
    %v648 = vld [vmem:[#allocation12 + $0x3d0] sm:$0xff]
    %v649 = vld [vmem:[#allocation12 + $0x3d8] sm:$0xff]
    %v650 = vld [vmem:[#allocation12 + $0x3e0] sm:$0xff]
    %v651 = vld [vmem:[#allocation12 + $0x3e8] sm:$0xff]
    %v652 = vld [vmem:[#allocation12 + $0x3f0] sm:$0xff]
    %v653 = vld [vmem:[#allocation12 + $0x3f8] sm:$0xff]
    %v654 = vld [vmem:[%s5] sm:$0xf]
    %v656 = vlaneseq
    %v657 = vshrl.u32 %v656, 7
    %v658 = vsub.s32 0, %v657
    %v659 = vrot.slane %v654, %v658
    %v660 = vlaneseq
    %v661 = vshrl.u32 %v660, 7
    %v662 = vsub.s32 1, %v661
    %v663 = vrot.slane %v654, %v662
    %v664 = vlaneseq
    %v665 = vshrl.u32 %v664, 7
    %v666 = vsub.s32 2, %v665
    %v667 = vrot.slane %v654, %v666
    %v668 = vlaneseq
    %v669 = vshrl.u32 %v668, 7
    %v670 = vsub.s32 3, %v669
    %v671 = vrot.slane %v654, %v670
    %s676 = smul.u32 0, 4
    %s677 = smul.addr %s676, 8
    %s678 = scalar_lea.vmem [#allocation2], %s677
    %v679 = vld [vmem:[%s678] sm:$0xff]
    %v680 = vld [vmem:[%s678 + $0x8] sm:$0xff]
    %v681 = vld [vmem:[%s678 + $0x10] sm:$0xff]
    %v682 = vld [vmem:[%s678 + $0x18] sm:$0xff]
    %683 = vmatprep.subr.mxu0 %v523
    %684 = vmatpush1.msra.mxu0 %v522
    %685 = vmatprep.subr.mxu0 %v519
    %686 = vmatpush1.msra.mxu0 %v518
    %687 = vmatprep.subr.mxu0 %v515
    %688 = vmatpush1.msra.mxu0 %v514
    %689 = vmatprep.subr.mxu0 %v511
    %690 = vmatpush1.msra.mxu0 %v510
    %691 = vmatprep.subr.mxu0 %v507
    %692 = vmatpush1.msra.mxu0 %v506
    %693 = vmatprep.subr.mxu0 %v503
    %694 = vmatpush1.msra.mxu0 %v502
    %695 = vmatprep.subr.mxu0 %v499
    %696 = vmatpush1.msra.mxu0 %v498
    %697 = vmatprep.subr.mxu0 %v495
    %698 = vmatpush1.msra.mxu0 %v494
    %699 = vmatprep.subr.mxu0 %v491
    %700 = vmatpush1.msra.mxu0 %v490
    %701 = vmatprep.subr.mxu0 %v487
    %702 = vmatpush1.msra.mxu0 %v486
    %703 = vmatprep.subr.mxu0 %v483
    %704 = vmatpush1.msra.mxu0 %v482
    %705 = vmatprep.subr.mxu0 %v479
    %706 = vmatpush1.msra.mxu0 %v478
    %707 = vmatprep.subr.mxu0 %v475
    %708 = vmatpush1.msra.mxu0 %v474
    %709 = vmatprep.subr.mxu0 %v471
    %710 = vmatpush1.msra.mxu0 %v470
    %711 = vmatprep.subr.mxu0 %v467
    %712 = vmatpush1.msra.mxu0 %v466
    %713 = vmatprep.subr.mxu0 %v463
    %714 = vmatpush1.msra.mxu0 %v462
    %715 = vmatprep.subr.mxu0 0.0
    %716 = vmatpush2.msra.mxu0 0.0
    %717 = vmatprep.subr.mxu0 0.0
    %718 = vmatpush2.msra.mxu0 0.0
    %719 = vmatprep.subr.mxu0 0.0
    %720 = vmatpush2.msra.mxu0 0.0
    %721 = vmatprep.subr.mxu0 0.0
    %722 = vmatpush2.msra.mxu0 0.0
    %723 = vmatprep.subr.mxu0 0.0
    %724 = vmatpush2.msra.mxu0 0.0
    %725 = vmatprep.subr.mxu0 0.0
    %726 = vmatpush2.msra.mxu0 0.0
    %727 = vmatprep.subr.mxu0 0.0
    %728 = vmatpush2.msra.mxu0 0.0
    %729 = vmatprep.subr.mxu0 0.0
    %730 = vmatpush2.msra.mxu0 0.0
    %731 = vmatprep.subr.mxu0 0.0
    %732 = vmatpush2.msra.mxu0 0.0
    %733 = vmatprep.subr.mxu0 0.0
    %734 = vmatpush2.msra.mxu0 0.0
    %735 = vmatprep.subr.mxu0 0.0
    %736 = vmatpush2.msra.mxu0 0.0
    %737 = vmatprep.subr.mxu0 0.0
    %738 = vmatpush2.msra.mxu0 0.0
    %739 = vmatprep.subr.mxu0 0.0
    %740 = vmatpush2.msra.mxu0 0.0
    %741 = vmatprep.subr.mxu0 0.0
    %742 = vmatpush2.msra.mxu0 0.0
    %743 = vmatprep.subr.mxu0 0.0
    %744 = vmatpush2.msra.mxu0 0.0
    %745 = vmatprep.subr.mxu0 0.0
    %746 = vmatpush2.msra.mxu0 0.0
    %747 = vmatprep.mubr.f32.mxu0 0.0
    %748 = vmatmul.mubr.f32.gmra.mxu0 0.0
    %v749 = vpop.f32.mrf.mxu0
    %v750 = vadd.f32 0.0, %v749
    %v751 = vpop.f32.mrf.mxu0
    %v752 = vadd.f32 0.0, %v751
    %753 = vdwg.mxu0
    %754 = vmatprep.subr.mxu0 %v525
    %755 = vmatpush1.msra.mxu0 %v524
    %756 = vmatprep.subr.mxu0 %v521
    %757 = vmatpush1.msra.mxu0 %v520
    %758 = vmatprep.subr.mxu0 %v517
    %759 = vmatpush1.msra.mxu0 %v516
    %760 = vmatprep.subr.mxu0 %v513
    %761 = vmatpush1.msra.mxu0 %v512
    %762 = vmatprep.subr.mxu0 %v509
    %763 = vmatpush1.msra.mxu0 %v508
    %764 = vmatprep.subr.mxu0 %v505
    %765 = vmatpush1.msra.mxu0 %v504
    %766 = vmatprep.subr.mxu0 %v501
    %767 = vmatpush1.msra.mxu0 %v500
    %768 = vmatprep.subr.mxu0 %v497
    %769 = vmatpush1.msra.mxu0 %v496
    %770 = vmatprep.subr.mxu0 %v493
    %771 = vmatpush1.msra.mxu0 %v492
    %772 = vmatprep.subr.mxu0 %v489
    %773 = vmatpush1.msra.mxu0 %v488
    %774 = vmatprep.subr.mxu0 %v485
    %775 = vmatpush1.msra.mxu0 %v484
    %776 = vmatprep.subr.mxu0 %v481
    %777 = vmatpush1.msra.mxu0 %v480
    %778 = vmatprep.subr.mxu0 %v477
    %779 = vmatpush1.msra.mxu0 %v476
    %780 = vmatprep.subr.mxu0 %v473
    %781 = vmatpush1.msra.mxu0 %v472
    %782 = vmatprep.subr.mxu0 %v469
    %783 = vmatpush1.msra.mxu0 %v468
    %784 = vmatprep.subr.mxu0 %v465
    %785 = vmatpush1.msra.mxu0 %v464
    %786 = vmatprep.subr.mxu0 0.0
    %787 = vmatpush2.msra.mxu0 0.0
    %788 = vmatprep.subr.mxu0 0.0
    %789 = vmatpush2.msra.mxu0 0.0
    %790 = vmatprep.subr.mxu0 0.0
    %791 = vmatpush2.msra.mxu0 0.0
    %792 = vmatprep.subr.mxu0 0.0
    %793 = vmatpush2.msra.mxu0 0.0
    %794 = vmatprep.subr.mxu0 0.0
    %795 = vmatpush2.msra.mxu0 0.0
    %796 = vmatprep.subr.mxu0 0.0
    %797 = vmatpush2.msra.mxu0 0.0
    %798 = vmatprep.subr.mxu0 0.0
    %799 = vmatpush2.msra.mxu0 0.0
    %800 = vmatprep.subr.mxu0 0.0
    %801 = vmatpush2.msra.mxu0 0.0
    %802 = vmatprep.subr.mxu0 0.0
    %803 = vmatpush2.msra.mxu0 0.0
    %804 = vmatprep.subr.mxu0 0.0
    %805 = vmatpush2.msra.mxu0 0.0
    %806 = vmatprep.subr.mxu0 0.0
    %807 = vmatpush2.msra.mxu0 0.0
    %808 = vmatprep.subr.mxu0 0.0
    %809 = vmatpush2.msra.mxu0 0.0
    %810 = vmatprep.subr.mxu0 0.0
    %811 = vmatpush2.msra.mxu0 0.0
    %812 = vmatprep.subr.mxu0 0.0
    %813 = vmatpush2.msra.mxu0 0.0
    %814 = vmatprep.subr.mxu0 0.0
    %815 = vmatpush2.msra.mxu0 0.0
    %816 = vmatprep.subr.mxu0 0.0
    %817 = vmatpush2.msra.mxu0 0.0
    %818 = vmatprep.mubr.f32.mxu0 0.0
    %819 = vmatmul.mubr.f32.gmra.mxu0 0.0
    %v820 = vpop.f32.mrf.mxu0
    %v821 = vadd.f32 0.0, %v820
    %v822 = vpop.f32.mrf.mxu0
    %v823 = vadd.f32 0.0, %v822
    %824 = vdwg.mxu0
    %v825 = vadd.f32 %v679, %v750
    %v826 = vadd.f32 %v680, %v752
    %v827 = vadd.f32 %v681, %v821
    %v828 = vadd.f32 %v682, %v823
    %v829 = vxor.u32 %v825, 2147483648
    %v830 = vmul.f32 %v829, 1.442695
    %v831 = vpow.pop %v830
    %v832 = vadd.f32 %v831, 1.0
    %v833 = vrcp.pop %v832
    %v834 = vmul.f32 1.0, %v833
    %v835 = vxor.u32 %v826, 2147483648
    %v836 = vmul.f32 %v835, 1.442695
    %v837 = vpow.pop %v836
    %v838 = vadd.f32 %v837, 1.0
    %v839 = vrcp.pop %v838
    %v840 = vmul.f32 1.0, %v839
    %v841 = vtanh.pop %v827
    %v842 = vxor.u32 %v828, 2147483648
    %v843 = vmul.f32 %v842, 1.442695
    %v844 = vpow.pop %v843
    %v845 = vadd.f32 %v844, 1.0
    %v846 = vrcp.pop %v845
    %v847 = vmul.f32 1.0, %v846
    %v848 = vmul.f32 %v840, 0.0
    %v849 = vmul.f32 %v834, %v841
    %v850 = vadd.f32 %v848, %v849
    %v851 = vtanh.pop %v850
    %v852 = vmul.f32 %v847, %v851
    %853 = vmatprep.subr.mxu0 %v587
    %854 = vmatpush1.msra.mxu0 %v586
    %855 = vmatprep.subr.mxu0 %v583
    %856 = vmatpush1.msra.mxu0 %v582
    %857 = vmatprep.subr.mxu0 %v579
    %858 = vmatpush1.msra.mxu0 %v578
    %859 = vmatprep.subr.mxu0 %v575
    %860 = vmatpush1.msra.mxu0 %v574
    %861 = vmatprep.subr.mxu0 %v571
    %862 = vmatpush1.msra.mxu0 %v570
    %863 = vmatprep.subr.mxu0 %v567
    %864 = vmatpush1.msra.mxu0 %v566
    %865 = vmatprep.subr.mxu0 %v563
    %866 = vmatpush1.msra.mxu0 %v562
    %867 = vmatprep.subr.mxu0 %v559
    %868 = vmatpush1.msra.mxu0 %v558
    %869 = vmatprep.subr.mxu0 %v555
    %870 = vmatpush1.msra.mxu0 %v554
    %871 = vmatprep.subr.mxu0 %v551
    %872 = vmatpush1.msra.mxu0 %v550
    %873 = vmatprep.subr.mxu0 %v547
    %874 = vmatpush1.msra.mxu0 %v546
    %875 = vmatprep.subr.mxu0 %v543
    %876 = vmatpush1.msra.mxu0 %v542
    %877 = vmatprep.subr.mxu0 %v539
    %878 = vmatpush1.msra.mxu0 %v538
    %879 = vmatprep.subr.mxu0 %v535
    %880 = vmatpush1.msra.mxu0 %v534
    %881 = vmatprep.subr.mxu0 %v531
    %882 = vmatpush1.msra.mxu0 %v530
    %883 = vmatprep.subr.mxu0 %v527
    %884 = vmatpush1.msra.mxu0 %v526
    %885 = vmatprep.subr.mxu0 %v651
    %886 = vmatpush2.msra.mxu0 %v650
    %887 = vmatprep.subr.mxu0 %v647
    %888 = vmatpush2.msra.mxu0 %v646
    %889 = vmatprep.subr.mxu0 %v643
    %890 = vmatpush2.msra.mxu0 %v642
    %891 = vmatprep.subr.mxu0 %v639
    %892 = vmatpush2.msra.mxu0 %v638
    %893 = vmatprep.subr.mxu0 %v635
    %894 = vmatpush2.msra.mxu0 %v634
    %895 = vmatprep.subr.mxu0 %v631
    %896 = vmatpush2.msra.mxu0 %v630
    %897 = vmatprep.subr.mxu0 %v627
    %898 = vmatpush2.msra.mxu0 %v626
    %899 = vmatprep.subr.mxu0 %v623
    %900 = vmatpush2.msra.mxu0 %v622
    %901 = vmatprep.subr.mxu0 %v619
    %902 = vmatpush2.msra.mxu0 %v618
    %903 = vmatprep.subr.mxu0 %v615
    %904 = vmatpush2.msra.mxu0 %v614
    %905 = vmatprep.subr.mxu0 %v611
    %906 = vmatpush2.msra.mxu0 %v610
    %907 = vmatprep.subr.mxu0 %v607
    %908 = vmatpush2.msra.mxu0 %v606
    %909 = vmatprep.subr.mxu0 %v603
    %910 = vmatpush2.msra.mxu0 %v602
    %911 = vmatprep.subr.mxu0 %v599
    %912 = vmatpush2.msra.mxu0 %v598
    %913 = vmatprep.subr.mxu0 %v595
    %914 = vmatpush2.msra.mxu0 %v594
    %915 = vmatprep.subr.mxu0 %v591
    %916 = vmatpush2.msra.mxu0 %v590
    %917 = vmatprep.mubr.f32.mxu0 0.0
    %918 = vmatmul.mubr.f32.gmra.mxu0 %v852
    %v919 = vpop.f32.mrf.mxu0
    %v920 = vadd.f32 %v659, %v919
    %v921 = vpop.f32.mrf.mxu0
    %v922 = vadd.f32 %v663, %v921
    %923 = vdwg.mxu0
    %924 = vmatprep.subr.mxu0 %v589
    %925 = vmatpush1.msra.mxu0 %v588
    %926 = vmatprep.subr.mxu0 %v585
    %927 = vmatpush1.msra.mxu0 %v584
    %928 = vmatprep.subr.mxu0 %v581
    %929 = vmatpush1.msra.mxu0 %v580
    %930 = vmatprep.subr.mxu0 %v577
    %931 = vmatpush1.msra.mxu0 %v576
    %932 = vmatprep.subr.mxu0 %v573
    %933 = vmatpush1.msra.mxu0 %v572
    %934 = vmatprep.subr.mxu0 %v569
    %935 = vmatpush1.msra.mxu0 %v568
    %936 = vmatprep.subr.mxu0 %v565
    %937 = vmatpush1.msra.mxu0 %v564
    %938 = vmatprep.subr.mxu0 %v561
    %939 = vmatpush1.msra.mxu0 %v560
    %940 = vmatprep.subr.mxu0 %v557
    %941 = vmatpush1.msra.mxu0 %v556
    %942 = vmatprep.subr.mxu0 %v553
    %943 = vmatpush1.msra.mxu0 %v552
    %944 = vmatprep.subr.mxu0 %v549
    %945 = vmatpush1.msra.mxu0 %v548
    %946 = vmatprep.subr.mxu0 %v545
    %947 = vmatpush1.msra.mxu0 %v544
    %948 = vmatprep.subr.mxu0 %v541
    %949 = vmatpush1.msra.mxu0 %v540
    %950 = vmatprep.subr.mxu0 %v537
    %951 = vmatpush1.msra.mxu0 %v536
    %952 = vmatprep.subr.mxu0 %v533
    %953 = vmatpush1.msra.mxu0 %v532
    %954 = vmatprep.subr.mxu0 %v529
    %955 = vmatpush1.msra.mxu0 %v528
    %956 = vmatprep.subr.mxu0 %v653
    %957 = vmatpush2.msra.mxu0 %v652
    %958 = vmatprep.subr.mxu0 %v649
    %959 = vmatpush2.msra.mxu0 %v648
    %960 = vmatprep.subr.mxu0 %v645
    %961 = vmatpush2.msra.mxu0 %v644
    %962 = vmatprep.subr.mxu0 %v641
    %963 = vmatpush2.msra.mxu0 %v640
    %964 = vmatprep.subr.mxu0 %v637
    %965 = vmatpush2.msra.mxu0 %v636
    %966 = vmatprep.subr.mxu0 %v633
    %967 = vmatpush2.msra.mxu0 %v632
    %968 = vmatprep.subr.mxu0 %v629
    %969 = vmatpush2.msra.mxu0 %v628
    %970 = vmatprep.subr.mxu0 %v625
    %971 = vmatpush2.msra.mxu0 %v624
    %972 = vmatprep.subr.mxu0 %v621
    %973 = vmatpush2.msra.mxu0 %v620
    %974 = vmatprep.subr.mxu0 %v617
    %975 = vmatpush2.msra.mxu0 %v616
    %976 = vmatprep.subr.mxu0 %v613
    %977 = vmatpush2.msra.mxu0 %v612
    %978 = vmatprep.subr.mxu0 %v609
    %979 = vmatpush2.msra.mxu0 %v608
    %980 = vmatprep.subr.mxu0 %v605
    %981 = vmatpush2.msra.mxu0 %v604
    %982 = vmatprep.subr.mxu0 %v601
    %983 = vmatpush2.msra.mxu0 %v600
    %984 = vmatprep.subr.mxu0 %v597
    %985 = vmatpush2.msra.mxu0 %v596
    %986 = vmatprep.subr.mxu0 %v593
    %987 = vmatpush2.msra.mxu0 %v592
    %988 = vmatprep.mubr.f32.mxu0 0.0
    %989 = vmatmul.mubr.f32.gmra.mxu0 %v852
    %v990 = vpop.f32.mrf.mxu0
    %v991 = vadd.f32 %v667, %v990
    %v992 = vpop.f32.mrf.mxu0
    %v993 = vadd.f32 %v671, %v992
    %994 = vdwg.mxu0
    %v995 = vxor.u32 %v920, 2147483648
    %v996 = vmul.f32 %v995, 1.442695
    %v997 = vpow.pop %v996
    %v998 = vadd.f32 %v997, 1.0
    %v999 = vrcp.pop %v998
    %v1000 = vmul.f32 1.0, %v999
    %v1001 = vxor.u32 %v922, 2147483648
    %v1002 = vmul.f32 %v1001, 1.442695
    %v1003 = vpow.pop %v1002
    %v1004 = vadd.f32 %v1003, 1.0
    %v1005 = vrcp.pop %v1004
    %v1006 = vmul.f32 1.0, %v1005
    %v1007 = vtanh.pop %v991
    %v1008 = vxor.u32 %v993, 2147483648
    %v1009 = vmul.f32 %v1008, 1.442695
    %v1010 = vpow.pop %v1009
    %v1011 = vadd.f32 %v1010, 1.0
    %v1012 = vrcp.pop %v1011
    %v1013 = vmul.f32 1.0, %v1012
    %v1014 = vmul.f32 %v1006, 0.0
    %v1015 = vmul.f32 %v1000, %v1007
    %v1016 = vadd.f32 %v1014, %v1015
    %v1017 = vtanh.pop %v1016
    %v1018 = vmul.f32 %v1013, %v1017
    %1019 = vst [vmem:[#allocation3] sm:$0xff] %v1018
    %s1020 = smul.u32 1, 4
    %s1021 = smul.addr %s1020, 8
    %s1022 = scalar_lea.vmem [#allocation2], %s1021
    %v1023 = vld [vmem:[%s1022] sm:$0xff]
    %v1024 = vld [vmem:[%s1022 + $0x8] sm:$0xff]
    %v1025 = vld [vmem:[%s1022 + $0x10] sm:$0xff]
    %v1026 = vld [vmem:[%s1022 + $0x18] sm:$0xff]
    %1027 = vmatprep.subr.mxu0 %v523
    %1028 = vmatpush1.msra.mxu0 %v522
    %1029 = vmatprep.subr.mxu0 %v519
    %1030 = vmatpush1.msra.mxu0 %v518
    %1031 = vmatprep.subr.mxu0 %v515
    %1032 = vmatpush1.msra.mxu0 %v514
    %1033 = vmatprep.subr.mxu0 %v511
    %1034 = vmatpush1.msra.mxu0 %v510
    %1035 = vmatprep.subr.mxu0 %v507
    %1036 = vmatpush1.msra.mxu0 %v506
    %1037 = vmatprep.subr.mxu0 %v503
    %1038 = vmatpush1.msra.mxu0 %v502
    %1039 = vmatprep.subr.mxu0 %v499
    %1040 = vmatpush1.msra.mxu0 %v498
    %1041 = vmatprep.subr.mxu0 %v495
    %1042 = vmatpush1.msra.mxu0 %v494
    %1043 = vmatprep.subr.mxu0 %v491
    %1044 = vmatpush1.msra.mxu0 %v490
    %1045 = vmatprep.subr.mxu0 %v487
    %1046 = vmatpush1.msra.mxu0 %v486
    %1047 = vmatprep.subr.mxu0 %v483
    %1048 = vmatpush1.msra.mxu0 %v482
    %1049 = vmatprep.subr.mxu0 %v479
    %1050 = vmatpush1.msra.mxu0 %v478
    %1051 = vmatprep.subr.mxu0 %v475
    %1052 = vmatpush1.msra.mxu0 %v474
    %1053 = vmatprep.subr.mxu0 %v471
    %1054 = vmatpush1.msra.mxu0 %v470
    %1055 = vmatprep.subr.mxu0 %v467
    %1056 = vmatpush1.msra.mxu0 %v466
    %1057 = vmatprep.subr.mxu0 %v463
    %1058 = vmatpush1.msra.mxu0 %v462
    %1059 = vmatprep.subr.mxu0 0.0
    %1060 = vmatpush2.msra.mxu0 0.0
    %1061 = vmatprep.subr.mxu0 0.0
    %1062 = vmatpush2.msra.mxu0 0.0
    %1063 = vmatprep.subr.mxu0 0.0
    %1064 = vmatpush2.msra.mxu0 0.0
    %1065 = vmatprep.subr.mxu0 0.0
    %1066 = vmatpush2.msra.mxu0 0.0
    %1067 = vmatprep.subr.mxu0 0.0
    %1068 = vmatpush2.msra.mxu0 0.0
    %1069 = vmatprep.subr.mxu0 0.0
    %1070 = vmatpush2.msra.mxu0 0.0
    %1071 = vmatprep.subr.mxu0 0.0
    %1072 = vmatpush2.msra.mxu0 0.0
    %1073 = vmatprep.subr.mxu0 0.0
    %1074 = vmatpush2.msra.mxu0 0.0
    %1075 = vmatprep.subr.mxu0 0.0
    %1076 = vmatpush2.msra.mxu0 0.0
    %1077 = vmatprep.subr.mxu0 0.0
    %1078 = vmatpush2.msra.mxu0 0.0
    %1079 = vmatprep.subr.mxu0 0.0
    %1080 = vmatpush2.msra.mxu0 0.0
    %1081 = vmatprep.subr.mxu0 0.0
    %1082 = vmatpush2.msra.mxu0 0.0
    %1083 = vmatprep.subr.mxu0 0.0
    %1084 = vmatpush2.msra.mxu0 0.0
    %1085 = vmatprep.subr.mxu0 0.0
    %1086 = vmatpush2.msra.mxu0 0.0
    %1087 = vmatprep.subr.mxu0 0.0
    %1088 = vmatpush2.msra.mxu0 0.0
    %1089 = vmatprep.subr.mxu0 0.0
    %1090 = vmatpush2.msra.mxu0 0.0
    %1091 = vmatprep.mubr.f32.mxu0 0.0
    %1092 = vmatmul.mubr.f32.gmra.mxu0 %v852
    %v1093 = vpop.f32.mrf.mxu0
    %v1094 = vadd.f32 0.0, %v1093
    %v1095 = vpop.f32.mrf.mxu0
    %v1096 = vadd.f32 0.0, %v1095
    %1097 = vdwg.mxu0
    %1098 = vmatprep.subr.mxu0 %v525
    %1099 = vmatpush1.msra.mxu0 %v524
    %1100 = vmatprep.subr.mxu0 %v521
    %1101 = vmatpush1.msra.mxu0 %v520
    %1102 = vmatprep.subr.mxu0 %v517
    %1103 = vmatpush1.msra.mxu0 %v516
    %1104 = vmatprep.subr.mxu0 %v513
    %1105 = vmatpush1.msra.mxu0 %v512
    %1106 = vmatprep.subr.mxu0 %v509
    %1107 = vmatpush1.msra.mxu0 %v508
    %1108 = vmatprep.subr.mxu0 %v505
    %1109 = vmatpush1.msra.mxu0 %v504
    %1110 = vmatprep.subr.mxu0 %v501
    %1111 = vmatpush1.msra.mxu0 %v500
    %1112 = vmatprep.subr.mxu0 %v497
    %1113 = vmatpush1.msra.mxu0 %v496
    %1114 = vmatprep.subr.mxu0 %v493
    %1115 = vmatpush1.msra.mxu0 %v492
    %1116 = vmatprep.subr.mxu0 %v489
    %1117 = vmatpush1.msra.mxu0 %v488
    %1118 = vmatprep.subr.mxu0 %v485
    %1119 = vmatpush1.msra.mxu0 %v484
    %1120 = vmatprep.subr.mxu0 %v481
    %1121 = vmatpush1.msra.mxu0 %v480
    %1122 = vmatprep.subr.mxu0 %v477
    %1123 = vmatpush1.msra.mxu0 %v476
    %1124 = vmatprep.subr.mxu0 %v473
    %1125 = vmatpush1.msra.mxu0 %v472
    %1126 = vmatprep.subr.mxu0 %v469
    %1127 = vmatpush1.msra.mxu0 %v468
    %1128 = vmatprep.subr.mxu0 %v465
    %1129 = vmatpush1.msra.mxu0 %v464
    %1130 = vmatprep.subr.mxu0 0.0
    %1131 = vmatpush2.msra.mxu0 0.0
    %1132 = vmatprep.subr.mxu0 0.0
    %1133 = vmatpush2.msra.mxu0 0.0
    %1134 = vmatprep.subr.mxu0 0.0
    %1135 = vmatpush2.msra.mxu0 0.0
    %1136 = vmatprep.subr.mxu0 0.0
    %1137 = vmatpush2.msra.mxu0 0.0
    %1138 = vmatprep.subr.mxu0 0.0
    %1139 = vmatpush2.msra.mxu0 0.0
    %1140 = vmatprep.subr.mxu0 0.0
    %1141 = vmatpush2.msra.mxu0 0.0
    %1142 = vmatprep.subr.mxu0 0.0
    %1143 = vmatpush2.msra.mxu0 0.0
    %1144 = vmatprep.subr.mxu0 0.0
    %1145 = vmatpush2.msra.mxu0 0.0
    %1146 = vmatprep.subr.mxu0 0.0
    %1147 = vmatpush2.msra.mxu0 0.0
    %1148 = vmatprep.subr.mxu0 0.0
    %1149 = vmatpush2.msra.mxu0 0.0
    %1150 = vmatprep.subr.mxu0 0.0
    %1151 = vmatpush2.msra.mxu0 0.0
    %1152 = vmatprep.subr.mxu0 0.0
    %1153 = vmatpush2.msra.mxu0 0.0
    %1154 = vmatprep.subr.mxu0 0.0
    %1155 = vmatpush2.msra.mxu0 0.0
    %1156 = vmatprep.subr.mxu0 0.0
    %1157 = vmatpush2.msra.mxu0 0.0
    %1158 = vmatprep.subr.mxu0 0.0
    %1159 = vmatpush2.msra.mxu0 0.0
    %1160 = vmatprep.subr.mxu0 0.0
    %1161 = vmatpush2.msra.mxu0 0.0
    %1162 = vmatprep.mubr.f32.mxu0 0.0
    %1163 = vmatmul.mubr.f32.gmra.mxu0 %v852
    %v1164 = vpop.f32.mrf.mxu0
    %v1165 = vadd.f32 0.0, %v1164
    %v1166 = vpop.f32.mrf.mxu0
    %v1167 = vadd.f32 0.0, %v1166
    %1168 = vdwg.mxu0
    %v1169 = vadd.f32 %v1023, %v1094
    %v1170 = vadd.f32 %v1024, %v1096
    %v1171 = vadd.f32 %v1025, %v1165
    %v1172 = vadd.f32 %v1026, %v1167
    %v1173 = vxor.u32 %v1169, 2147483648
    %v1174 = vmul.f32 %v1173, 1.442695
    %v1175 = vpow.pop %v1174
    %v1176 = vadd.f32 %v1175, 1.0
    %v1177 = vrcp.pop %v1176
    %v1178 = vmul.f32 1.0, %v1177
    %v1179 = vxor.u32 %v1170, 2147483648
    %v1180 = vmul.f32 %v1179, 1.442695
    %v1181 = vpow.pop %v1180
    %v1182 = vadd.f32 %v1181, 1.0
    %v1183 = vrcp.pop %v1182
    %v1184 = vmul.f32 1.0, %v1183
    %v1185 = vtanh.pop %v1171
    %v1186 = vxor.u32 %v1172, 2147483648
    %v1187 = vmul.f32 %v1186, 1.442695
    %v1188 = vpow.pop %v1187
    %v1189 = vadd.f32 %v1188, 1.0
    %v1190 = vrcp.pop %v1189
    %v1191 = vmul.f32 1.0, %v1190
    %v1192 = vmul.f32 %v1184, %v850
    %v1193 = vmul.f32 %v1178, %v1185
    %v1194 = vadd.f32 %v1192, %v1193
    %v1195 = vtanh.pop %v1194
    %v1196 = vmul.f32 %v1191, %v1195
    %1197 = vmatprep.subr.mxu0 %v587
    %1198 = vmatpush1.msra.mxu0 %v586
    %1199 = vmatprep.subr.mxu0 %v583
    %1200 = vmatpush1.msra.mxu0 %v582
    %1201 = vmatprep.subr.mxu0 %v579
    %1202 = vmatpush1.msra.mxu0 %v578
    %1203 = vmatprep.subr.mxu0 %v575
    %1204 = vmatpush1.msra.mxu0 %v574
    %1205 = vmatprep.subr.mxu0 %v571
    %1206 = vmatpush1.msra.mxu0 %v570
    %1207 = vmatprep.subr.mxu0 %v567
    %1208 = vmatpush1.msra.mxu0 %v566
    %1209 = vmatprep.subr.mxu0 %v563
    %1210 = vmatpush1.msra.mxu0 %v562
    %1211 = vmatprep.subr.mxu0 %v559
    %1212 = vmatpush1.msra.mxu0 %v558
    %1213 = vmatprep.subr.mxu0 %v555
    %1214 = vmatpush1.msra.mxu0 %v554
    %1215 = vmatprep.subr.mxu0 %v551
    %1216 = vmatpush1.msra.mxu0 %v550
    %1217 = vmatprep.subr.mxu0 %v547
    %1218 = vmatpush1.msra.mxu0 %v546
    %1219 = vmatprep.subr.mxu0 %v543
    %1220 = vmatpush1.msra.mxu0 %v542
    %1221 = vmatprep.subr.mxu0 %v539
    %1222 = vmatpush1.msra.mxu0 %v538
    %1223 = vmatprep.subr.mxu0 %v535
    %1224 = vmatpush1.msra.mxu0 %v534
    %1225 = vmatprep.subr.mxu0 %v531
    %1226 = vmatpush1.msra.mxu0 %v530
    %1227 = vmatprep.subr.mxu0 %v527
    %1228 = vmatpush1.msra.mxu0 %v526
    %1229 = vmatprep.subr.mxu0 %v651
    %1230 = vmatpush2.msra.mxu0 %v650
    %1231 = vmatprep.subr.mxu0 %v647
    %1232 = vmatpush2.msra.mxu0 %v646
    %1233 = vmatprep.subr.mxu0 %v643
    %1234 = vmatpush2.msra.mxu0 %v642
    %1235 = vmatprep.subr.mxu0 %v639
    %1236 = vmatpush2.msra.mxu0 %v638
    %1237 = vmatprep.subr.mxu0 %v635
    %1238 = vmatpush2.msra.mxu0 %v634
    %1239 = vmatprep.subr.mxu0 %v631
    %1240 = vmatpush2.msra.mxu0 %v630
    %1241 = vmatprep.subr.mxu0 %v627
    %1242 = vmatpush2.msra.mxu0 %v626
    %1243 = vmatprep.subr.mxu0 %v623
    %1244 = vmatpush2.msra.mxu0 %v622
    %1245 = vmatprep.subr.mxu0 %v619
    %1246 = vmatpush2.msra.mxu0 %v618
    %1247 = vmatprep.subr.mxu0 %v615
    %1248 = vmatpush2.msra.mxu0 %v614
    %1249 = vmatprep.subr.mxu0 %v611
    %1250 = vmatpush2.msra.mxu0 %v610
    %1251 = vmatprep.subr.mxu0 %v607
    %1252 = vmatpush2.msra.mxu0 %v606
    %1253 = vmatprep.subr.mxu0 %v603
    %1254 = vmatpush2.msra.mxu0 %v602
    %1255 = vmatprep.subr.mxu0 %v599
    %1256 = vmatpush2.msra.mxu0 %v598
    %1257 = vmatprep.subr.mxu0 %v595
    %1258 = vmatpush2.msra.mxu0 %v594
    %1259 = vmatprep.subr.mxu0 %v591
    %1260 = vmatpush2.msra.mxu0 %v590
    %1261 = vmatprep.mubr.f32.mxu0 %v1018
    %1262 = vmatmul.mubr.f32.gmra.mxu0 %v1196
    %v1263 = vpop.f32.mrf.mxu0
    %v1264 = vadd.f32 %v659, %v1263
    %v1265 = vpop.f32.mrf.mxu0
    %v1266 = vadd.f32 %v663, %v1265
    %1267 = vdwg.mxu0
    %1268 = vmatprep.subr.mxu0 %v589
    %1269 = vmatpush1.msra.mxu0 %v588
    %1270 = vmatprep.subr.mxu0 %v585
    %1271 = vmatpush1.msra.mxu0 %v584
    %1272 = vmatprep.subr.mxu0 %v581
    %1273 = vmatpush1.msra.mxu0 %v580
    %1274 = vmatprep.subr.mxu0 %v577
    %1275 = vmatpush1.msra.mxu0 %v576
    %1276 = vmatprep.subr.mxu0 %v573
    %1277 = vmatpush1.msra.mxu0 %v572
    %1278 = vmatprep.subr.mxu0 %v569
    %1279 = vmatpush1.msra.mxu0 %v568
    %1280 = vmatprep.subr.mxu0 %v565
    %1281 = vmatpush1.msra.mxu0 %v564
    %1282 = vmatprep.subr.mxu0 %v561
    %1283 = vmatpush1.msra.mxu0 %v560
    %1284 = vmatprep.subr.mxu0 %v557
    %1285 = vmatpush1.msra.mxu0 %v556
    %1286 = vmatprep.subr.mxu0 %v553
    %1287 = vmatpush1.msra.mxu0 %v552
    %1288 = vmatprep.subr.mxu0 %v549
    %1289 = vmatpush1.msra.mxu0 %v548
    %1290 = vmatprep.subr.mxu0 %v545
    %1291 = vmatpush1.msra.mxu0 %v544
    %1292 = vmatprep.subr.mxu0 %v541
    %1293 = vmatpush1.msra.mxu0 %v540
    %1294 = vmatprep.subr.mxu0 %v537
    %1295 = vmatpush1.msra.mxu0 %v536
    %1296 = vmatprep.subr.mxu0 %v533
    %1297 = vmatpush1.msra.mxu0 %v532
    %1298 = vmatprep.subr.mxu0 %v529
    %1299 = vmatpush1.msra.mxu0 %v528
    %1300 = vmatprep.subr.mxu0 %v653
    %1301 = vmatpush2.msra.mxu0 %v652
    %1302 = vmatprep.subr.mxu0 %v649
    %1303 = vmatpush2.msra.mxu0 %v648
    %1304 = vmatprep.subr.mxu0 %v645
    %1305 = vmatpush2.msra.mxu0 %v644
    %1306 = vmatprep.subr.mxu0 %v641
    %1307 = vmatpush2.msra.mxu0 %v640
    %1308 = vmatprep.subr.mxu0 %v637
    %1309 = vmatpush2.msra.mxu0 %v636
    %1310 = vmatprep.subr.mxu0 %v633
    %1311 = vmatpush2.msra.mxu0 %v632
    %1312 = vmatprep.subr.mxu0 %v629
    %1313 = vmatpush2.msra.mxu0 %v628
    %1314 = vmatprep.subr.mxu0 %v625
    %1315 = vmatpush2.msra.mxu0 %v624
    %1316 = vmatprep.subr.mxu0 %v621
    %1317 = vmatpush2.msra.mxu0 %v620
    %1318 = vmatprep.subr.mxu0 %v617
    %1319 = vmatpush2.msra.mxu0 %v616
    %1320 = vmatprep.subr.mxu0 %v613
    %1321 = vmatpush2.msra.mxu0 %v612
    %1322 = vmatprep.subr.mxu0 %v609
    %1323 = vmatpush2.msra.mxu0 %v608
    %1324 = vmatprep.subr.mxu0 %v605
    %1325 = vmatpush2.msra.mxu0 %v604
    %1326 = vmatprep.subr.mxu0 %v601
    %1327 = vmatpush2.msra.mxu0 %v600
    %1328 = vmatprep.subr.mxu0 %v597
    %1329 = vmatpush2.msra.mxu0 %v596
    %1330 = vmatprep.subr.mxu0 %v593
    %1331 = vmatpush2.msra.mxu0 %v592
    %1332 = vmatprep.mubr.f32.mxu0 %v1018
    %1333 = vmatmul.mubr.f32.gmra.mxu0 %v1196
    %v1334 = vpop.f32.mrf.mxu0
    %v1335 = vadd.f32 %v667, %v1334
    %v1336 = vpop.f32.mrf.mxu0
    %v1337 = vadd.f32 %v671, %v1336
    %1338 = vdwg.mxu0
    %v1339 = vxor.u32 %v1264, 2147483648
    %v1340 = vmul.f32 %v1339, 1.442695
    %v1341 = vpow.pop %v1340
    %v1342 = vadd.f32 %v1341, 1.0
    %v1343 = vrcp.pop %v1342
    %v1344 = vmul.f32 1.0, %v1343
    %v1345 = vxor.u32 %v1266, 2147483648
    %v1346 = vmul.f32 %v1345, 1.442695
    %v1347 = vpow.pop %v1346
    %v1348 = vadd.f32 %v1347, 1.0
    %v1349 = vrcp.pop %v1348
    %v1350 = vmul.f32 1.0, %v1349
    %v1351 = vtanh.pop %v1335
    %v1352 = vxor.u32 %v1337, 2147483648
    %v1353 = vmul.f32 %v1352, 1.442695
    %v1354 = vpow.pop %v1353
    %v1355 = vadd.f32 %v1354, 1.0
    %v1356 = vrcp.pop %v1355
    %v1357 = vmul.f32 1.0, %v1356
    %v1358 = vmul.f32 %v1350, %v1016
    %v1359 = vmul.f32 %v1344, %v1351
    %v1360 = vadd.f32 %v1358, %v1359
    %v1361 = vtanh.pop %v1360
    %v1362 = vmul.f32 %v1357, %v1361
    %s1363 = scalar_lea.vmem [#allocation3], 8
    %1364 = vst [vmem:[%s1363] sm:$0xff] %v1362
    %s1365 = smul.u32 2, 4
    %s1366 = smul.addr %s1365, 8
    %s1367 = scalar_lea.vmem [#allocation2], %s1366
    %v1368 = vld [vmem:[%s1367] sm:$0xff]
    %v1369 = vld [vmem:[%s1367 + $0x8] sm:$0xff]
    %v1370 = vld [vmem:[%s1367 + $0x10] sm:$0xff]
    %v1371 = vld [vmem:[%s1367 + $0x18] sm:$0xff]
    %1372 = vmatprep.subr.mxu0 %v523
    %1373 = vmatpush1.msra.mxu0 %v522
    %1374 = vmatprep.subr.mxu0 %v519
    %1375 = vmatpush1.msra.mxu0 %v518
    %1376 = vmatprep.subr.mxu0 %v515
    %1377 = vmatpush1.msra.mxu0 %v514
    %1378 = vmatprep.subr.mxu0 %v511
    %1379 = vmatpush1.msra.mxu0 %v510
    %1380 = vmatprep.subr.mxu0 %v507
    %1381 = vmatpush1.msra.mxu0 %v506
    %1382 = vmatprep.subr.mxu0 %v503
    %1383 = vmatpush1.msra.mxu0 %v502
    %1384 = vmatprep.subr.mxu0 %v499
    %1385 = vmatpush1.msra.mxu0 %v498
    %1386 = vmatprep.subr.mxu0 %v495
    %1387 = vmatpush1.msra.mxu0 %v494
    %1388 = vmatprep.subr.mxu0 %v491
    %1389 = vmatpush1.msra.mxu0 %v490
    %1390 = vmatprep.subr.mxu0 %v487
    %1391 = vmatpush1.msra.mxu0 %v486
    %1392 = vmatprep.subr.mxu0 %v483
    %1393 = vmatpush1.msra.mxu0 %v482
    %1394 = vmatprep.subr.mxu0 %v479
    %1395 = vmatpush1.msra.mxu0 %v478
    %1396 = vmatprep.subr.mxu0 %v475
    %1397 = vmatpush1.msra.mxu0 %v474
    %1398 = vmatprep.subr.mxu0 %v471
    %1399 = vmatpush1.msra.mxu0 %v470
    %1400 = vmatprep.subr.mxu0 %v467
    %1401 = vmatpush1.msra.mxu0 %v466
    %1402 = vmatprep.subr.mxu0 %v463
    %1403 = vmatpush1.msra.mxu0 %v462
    %1404 = vmatprep.subr.mxu0 0.0
    %1405 = vmatpush2.msra.mxu0 0.0
    %1406 = vmatprep.subr.mxu0 0.0
    %1407 = vmatpush2.msra.mxu0 0.0
    %1408 = vmatprep.subr.mxu0 0.0
    %1409 = vmatpush2.msra.mxu0 0.0
    %1410 = vmatprep.subr.mxu0 0.0
    %1411 = vmatpush2.msra.mxu0 0.0
    %1412 = vmatprep.subr.mxu0 0.0
    %1413 = vmatpush2.msra.mxu0 0.0
    %1414 = vmatprep.subr.mxu0 0.0
    %1415 = vmatpush2.msra.mxu0 0.0
    %1416 = vmatprep.subr.mxu0 0.0
    %1417 = vmatpush2.msra.mxu0 0.0
    %1418 = vmatprep.subr.mxu0 0.0
    %1419 = vmatpush2.msra.mxu0 0.0
    %1420 = vmatprep.subr.mxu0 0.0
    %1421 = vmatpush2.msra.mxu0 0.0
    %1422 = vmatprep.subr.mxu0 0.0
    %1423 = vmatpush2.msra.mxu0 0.0
    %1424 = vmatprep.subr.mxu0 0.0
    %1425 = vmatpush2.msra.mxu0 0.0
    %1426 = vmatprep.subr.mxu0 0.0
    %1427 = vmatpush2.msra.mxu0 0.0
    %1428 = vmatprep.subr.mxu0 0.0
    %1429 = vmatpush2.msra.mxu0 0.0
    %1430 = vmatprep.subr.mxu0 0.0
    %1431 = vmatpush2.msra.mxu0 0.0
    %1432 = vmatprep.subr.mxu0 0.0
    %1433 = vmatpush2.msra.mxu0 0.0
    %1434 = vmatprep.subr.mxu0 0.0
    %1435 = vmatpush2.msra.mxu0 0.0
    %1436 = vmatprep.mubr.f32.mxu0 0.0
    %1437 = vmatmul.mubr.f32.gmra.mxu0 %v1196
    %v1438 = vpop.f32.mrf.mxu0
    %v1439 = vadd.f32 0.0, %v1438
    %v1440 = vpop.f32.mrf.mxu0
    %v1441 = vadd.f32 0.0, %v1440
    %1442 = vdwg.mxu0
    %1443 = vmatprep.subr.mxu0 %v525
    %1444 = vmatpush1.msra.mxu0 %v524
    %1445 = vmatprep.subr.mxu0 %v521
    %1446 = vmatpush1.msra.mxu0 %v520
    %1447 = vmatprep.subr.mxu0 %v517
    %1448 = vmatpush1.msra.mxu0 %v516
    %1449 = vmatprep.subr.mxu0 %v513
    %1450 = vmatpush1.msra.mxu0 %v512
    %1451 = vmatprep.subr.mxu0 %v509
    %1452 = vmatpush1.msra.mxu0 %v508
    %1453 = vmatprep.subr.mxu0 %v505
    %1454 = vmatpush1.msra.mxu0 %v504
    %1455 = vmatprep.subr.mxu0 %v501
    %1456 = vmatpush1.msra.mxu0 %v500
    %1457 = vmatprep.subr.mxu0 %v497
    %1458 = vmatpush1.msra.mxu0 %v496
    %1459 = vmatprep.subr.mxu0 %v493
    %1460 = vmatpush1.msra.mxu0 %v492
    %1461 = vmatprep.subr.mxu0 %v489
    %1462 = vmatpush1.msra.mxu0 %v488
    %1463 = vmatprep.subr.mxu0 %v485
    %1464 = vmatpush1.msra.mxu0 %v484
    %1465 = vmatprep.subr.mxu0 %v481
    %1466 = vmatpush1.msra.mxu0 %v480
    %1467 = vmatprep.subr.mxu0 %v477
    %1468 = vmatpush1.msra.mxu0 %v476
    %1469 = vmatprep.subr.mxu0 %v473
    %1470 = vmatpush1.msra.mxu0 %v472
    %1471 = vmatprep.subr.mxu0 %v469
    %1472 = vmatpush1.msra.mxu0 %v468
    %1473 = vmatprep.subr.mxu0 %v465
    %1474 = vmatpush1.msra.mxu0 %v464
    %1475 = vmatprep.subr.mxu0 0.0
    %1476 = vmatpush2.msra.mxu0 0.0
    %1477 = vmatprep.subr.mxu0 0.0
    %1478 = vmatpush2.msra.mxu0 0.0
    %1479 = vmatprep.subr.mxu0 0.0
    %1480 = vmatpush2.msra.mxu0 0.0
    %1481 = vmatprep.subr.mxu0 0.0
    %1482 = vmatpush2.msra.mxu0 0.0
    %1483 = vmatprep.subr.mxu0 0.0
    %1484 = vmatpush2.msra.mxu0 0.0
    %1485 = vmatprep.subr.mxu0 0.0
    %1486 = vmatpush2.msra.mxu0 0.0
    %1487 = vmatprep.subr.mxu0 0.0
    %1488 = vmatpush2.msra.mxu0 0.0
    %1489 = vmatprep.subr.mxu0 0.0
    %1490 = vmatpush2.msra.mxu0 0.0
    %1491 = vmatprep.subr.mxu0 0.0
    %1492 = vmatpush2.msra.mxu0 0.0
    %1493 = vmatprep.subr.mxu0 0.0
    %1494 = vmatpush2.msra.mxu0 0.0
    %1495 = vmatprep.subr.mxu0 0.0
    %1496 = vmatpush2.msra.mxu0 0.0
    %1497 = vmatprep.subr.mxu0 0.0
    %1498 = vmatpush2.msra.mxu0 0.0
    %1499 = vmatprep.subr.mxu0 0.0
    %1500 = vmatpush2.msra.mxu0 0.0
    %1501 = vmatprep.subr.mxu0 0.0
    %1502 = vmatpush2.msra.mxu0 0.0
    %1503 = vmatprep.subr.mxu0 0.0
    %1504 = vmatpush2.msra.mxu0 0.0
    %1505 = vmatprep.subr.mxu0 0.0
    %1506 = vmatpush2.msra.mxu0 0.0
    %1507 = vmatprep.mubr.f32.mxu0 0.0
    %1508 = vmatmul.mubr.f32.gmra.mxu0 %v1196
    %v1509 = vpop.f32.mrf.mxu0
    %v1510 = vadd.f32 0.0, %v1509
    %v1511 = vpop.f32.mrf.mxu0
    %v1512 = vadd.f32 0.0, %v1511
    %1513 = vdwg.mxu0
    %v1514 = vadd.f32 %v1368, %v1439
    %v1515 = vadd.f32 %v1369, %v1441
    %v1516 = vadd.f32 %v1370, %v1510
    %v1517 = vadd.f32 %v1371, %v1512
    %v1518 = vxor.u32 %v1514, 2147483648
    %v1519 = vmul.f32 %v1518, 1.442695
    %v1520 = vpow.pop %v1519
    %v1521 = vadd.f32 %v1520, 1.0
    %v1522 = vrcp.pop %v1521
    %v1523 = vmul.f32 1.0, %v1522
    %v1524 = vxor.u32 %v1515, 2147483648
    %v1525 = vmul.f32 %v1524, 1.442695
    %v1526 = vpow.pop %v1525
    %v1527 = vadd.f32 %v1526, 1.0
    %v1528 = vrcp.pop %v1527
    %v1529 = vmul.f32 1.0, %v1528
    %v1530 = vtanh.pop %v1516
    %v1531 = vxor.u32 %v1517, 2147483648
    %v1532 = vmul.f32 %v1531, 1.442695
    %v1533 = vpow.pop %v1532
    %v1534 = vadd.f32 %v1533, 1.0
    %v1535 = vrcp.pop %v1534
    %v1536 = vmul.f32 1.0, %v1535
    %v1537 = vmul.f32 %v1529, %v1194
    %v1538 = vmul.f32 %v1523, %v1530
    %v1539 = vadd.f32 %v1537, %v1538
    %v1540 = vtanh.pop %v1539
    %v1541 = vmul.f32 %v1536, %v1540
    %1542 = vmatprep.subr.mxu0 %v587
    %1543 = vmatpush1.msra.mxu0 %v586
    %1544 = vmatprep.subr.mxu0 %v583
    %1545 = vmatpush1.msra.mxu0 %v582
    %1546 = vmatprep.subr.mxu0 %v579
    %1547 = vmatpush1.msra.mxu0 %v578
    %1548 = vmatprep.subr.mxu0 %v575
    %1549 = vmatpush1.msra.mxu0 %v574
    %1550 = vmatprep.subr.mxu0 %v571
    %1551 = vmatpush1.msra.mxu0 %v570
    %1552 = vmatprep.subr.mxu0 %v567
    %1553 = vmatpush1.msra.mxu0 %v566
    %1554 = vmatprep.subr.mxu0 %v563
    %1555 = vmatpush1.msra.mxu0 %v562
    %1556 = vmatprep.subr.mxu0 %v559
    %1557 = vmatpush1.msra.mxu0 %v558
    %1558 = vmatprep.subr.mxu0 %v555
    %1559 = vmatpush1.msra.mxu0 %v554
    %1560 = vmatprep.subr.mxu0 %v551
    %1561 = vmatpush1.msra.mxu0 %v550
    %1562 = vmatprep.subr.mxu0 %v547
    %1563 = vmatpush1.msra.mxu0 %v546
    %1564 = vmatprep.subr.mxu0 %v543
    %1565 = vmatpush1.msra.mxu0 %v542
    %1566 = vmatprep.subr.mxu0 %v539
    %1567 = vmatpush1.msra.mxu0 %v538
    %1568 = vmatprep.subr.mxu0 %v535
    %1569 = vmatpush1.msra.mxu0 %v534
    %1570 = vmatprep.subr.mxu0 %v531
    %1571 = vmatpush1.msra.mxu0 %v530
    %1572 = vmatprep.subr.mxu0 %v527
    %1573 = vmatpush1.msra.mxu0 %v526
    %1574 = vmatprep.subr.mxu0 %v651
    %1575 = vmatpush2.msra.mxu0 %v650
    %1576 = vmatprep.subr.mxu0 %v647
    %1577 = vmatpush2.msra.mxu0 %v646
    %1578 = vmatprep.subr.mxu0 %v643
    %1579 = vmatpush2.msra.mxu0 %v642
    %1580 = vmatprep.subr.mxu0 %v639
    %1581 = vmatpush2.msra.mxu0 %v638
    %1582 = vmatprep.subr.mxu0 %v635
    %1583 = vmatpush2.msra.mxu0 %v634
    %1584 = vmatprep.subr.mxu0 %v631
    %1585 = vmatpush2.msra.mxu0 %v630
    %1586 = vmatprep.subr.mxu0 %v627
    %1587 = vmatpush2.msra.mxu0 %v626
    %1588 = vmatprep.subr.mxu0 %v623
    %1589 = vmatpush2.msra.mxu0 %v622
    %1590 = vmatprep.subr.mxu0 %v619
    %1591 = vmatpush2.msra.mxu0 %v618
    %1592 = vmatprep.subr.mxu0 %v615
    %1593 = vmatpush2.msra.mxu0 %v614
    %1594 = vmatprep.subr.mxu0 %v611
    %1595 = vmatpush2.msra.mxu0 %v610
    %1596 = vmatprep.subr.mxu0 %v607
    %1597 = vmatpush2.msra.mxu0 %v606
    %1598 = vmatprep.subr.mxu0 %v603
    %1599 = vmatpush2.msra.mxu0 %v602
    %1600 = vmatprep.subr.mxu0 %v599
    %1601 = vmatpush2.msra.mxu0 %v598
    %1602 = vmatprep.subr.mxu0 %v595
    %1603 = vmatpush2.msra.mxu0 %v594
    %1604 = vmatprep.subr.mxu0 %v591
    %1605 = vmatpush2.msra.mxu0 %v590
    %1606 = vmatprep.mubr.f32.mxu0 %v1362
    %1607 = vmatmul.mubr.f32.gmra.mxu0 %v1541
    %v1608 = vpop.f32.mrf.mxu0
    %v1609 = vadd.f32 %v659, %v1608
    %v1610 = vpop.f32.mrf.mxu0
    %v1611 = vadd.f32 %v663, %v1610
    %1612 = vdwg.mxu0
    %1613 = vmatprep.subr.mxu0 %v589
    %1614 = vmatpush1.msra.mxu0 %v588
    %1615 = vmatprep.subr.mxu0 %v585
    %1616 = vmatpush1.msra.mxu0 %v584
    %1617 = vmatprep.subr.mxu0 %v581
    %1618 = vmatpush1.msra.mxu0 %v580
    %1619 = vmatprep.subr.mxu0 %v577
    %1620 = vmatpush1.msra.mxu0 %v576
    %1621 = vmatprep.subr.mxu0 %v573
    %1622 = vmatpush1.msra.mxu0 %v572
    %1623 = vmatprep.subr.mxu0 %v569
    %1624 = vmatpush1.msra.mxu0 %v568
    %1625 = vmatprep.subr.mxu0 %v565
    %1626 = vmatpush1.msra.mxu0 %v564
    %1627 = vmatprep.subr.mxu0 %v561
    %1628 = vmatpush1.msra.mxu0 %v560
    %1629 = vmatprep.subr.mxu0 %v557
    %1630 = vmatpush1.msra.mxu0 %v556
    %1631 = vmatprep.subr.mxu0 %v553
    %1632 = vmatpush1.msra.mxu0 %v552
    %1633 = vmatprep.subr.mxu0 %v549
    %1634 = vmatpush1.msra.mxu0 %v548
    %1635 = vmatprep.subr.mxu0 %v545
    %1636 = vmatpush1.msra.mxu0 %v544
    %1637 = vmatprep.subr.mxu0 %v541
    %1638 = vmatpush1.msra.mxu0 %v540
    %1639 = vmatprep.subr.mxu0 %v537
    %1640 = vmatpush1.msra.mxu0 %v536
    %1641 = vmatprep.subr.mxu0 %v533
    %1642 = vmatpush1.msra.mxu0 %v532
    %1643 = vmatprep.subr.mxu0 %v529
    %1644 = vmatpush1.msra.mxu0 %v528
    %1645 = vmatprep.subr.mxu0 %v653
    %1646 = vmatpush2.msra.mxu0 %v652
    %1647 = vmatprep.subr.mxu0 %v649
    %1648 = vmatpush2.msra.mxu0 %v648
    %1649 = vmatprep.subr.mxu0 %v645
    %1650 = vmatpush2.msra.mxu0 %v644
    %1651 = vmatprep.subr.mxu0 %v641
    %1652 = vmatpush2.msra.mxu0 %v640
    %1653 = vmatprep.subr.mxu0 %v637
    %1654 = vmatpush2.msra.mxu0 %v636
    %1655 = vmatprep.subr.mxu0 %v633
    %1656 = vmatpush2.msra.mxu0 %v632
    %1657 = vmatprep.subr.mxu0 %v629
    %1658 = vmatpush2.msra.mxu0 %v628
    %1659 = vmatprep.subr.mxu0 %v625
    %1660 = vmatpush2.msra.mxu0 %v624
    %1661 = vmatprep.subr.mxu0 %v621
    %1662 = vmatpush2.msra.mxu0 %v620
    %1663 = vmatprep.subr.mxu0 %v617
    %1664 = vmatpush2.msra.mxu0 %v616
    %1665 = vmatprep.subr.mxu0 %v613
    %1666 = vmatpush2.msra.mxu0 %v612
    %1667 = vmatprep.subr.mxu0 %v609
    %1668 = vmatpush2.msra.mxu0 %v608
    %1669 = vmatprep.subr.mxu0 %v605
    %1670 = vmatpush2.msra.mxu0 %v604
    %1671 = vmatprep.subr.mxu0 %v601
    %1672 = vmatpush2.msra.mxu0 %v600
    %1673 = vmatprep.subr.mxu0 %v597
    %1674 = vmatpush2.msra.mxu0 %v596
    %1675 = vmatprep.subr.mxu0 %v593
    %1676 = vmatpush2.msra.mxu0 %v592
    %1677 = vmatprep.mubr.f32.mxu0 %v1362
    %1678 = vmatmul.mubr.f32.gmra.mxu0 %v1541
    %v1679 = vpop.f32.mrf.mxu0
    %v1680 = vadd.f32 %v667, %v1679
    %v1681 = vpop.f32.mrf.mxu0
    %v1682 = vadd.f32 %v671, %v1681
    %1683 = vdwg.mxu0
    %v1684 = vxor.u32 %v1609, 2147483648
    %v1685 = vmul.f32 %v1684, 1.442695
    %v1686 = vpow.pop %v1685
    %v1687 = vadd.f32 %v1686, 1.0
    %v1688 = vrcp.pop %v1687
    %v1689 = vmul.f32 1.0, %v1688
    %v1690 = vxor.u32 %v1611, 2147483648
    %v1691 = vmul.f32 %v1690, 1.442695
    %v1692 = vpow.pop %v1691
    %v1693 = vadd.f32 %v1692, 1.0
    %v1694 = vrcp.pop %v1693
    %v1695 = vmul.f32 1.0, %v1694
    %v1696 = vtanh.pop %v1680
    %v1697 = vxor.u32 %v1682, 2147483648
    %v1698 = vmul.f32 %v1697, 1.442695
    %v1699 = vpow.pop %v1698
    %v1700 = vadd.f32 %v1699, 1.0
    %v1701 = vrcp.pop %v1700
    %v1702 = vmul.f32 1.0, %v1701
    %v1703 = vmul.f32 %v1695, %v1360
    %v1704 = vmul.f32 %v1689, %v1696
    %v1705 = vadd.f32 %v1703, %v1704
    %v1706 = vtanh.pop %v1705
    %v1707 = vmul.f32 %v1702, %v1706
    %s1708 = scalar_lea.vmem [#allocation3], 16
    %1709 = vst [vmem:[%s1708] sm:$0xff] %v1707
    %s1710 = smul.u32 3, 4
    %s1711 = smul.addr %s1710, 8
    %s1712 = scalar_lea.vmem [#allocation2], %s1711
    %v1713 = vld [vmem:[%s1712] sm:$0xff]
    %v1714 = vld [vmem:[%s1712 + $0x8] sm:$0xff]
    %v1715 = vld [vmem:[%s1712 + $0x10] sm:$0xff]
    %v1716 = vld [vmem:[%s1712 + $0x18] sm:$0xff]
    %1717 = vmatprep.subr.mxu0 %v523
    %1718 = vmatpush1.msra.mxu0 %v522
    %1719 = vmatprep.subr.mxu0 %v519
    %1720 = vmatpush1.msra.mxu0 %v518
    %1721 = vmatprep.subr.mxu0 %v515
    %1722 = vmatpush1.msra.mxu0 %v514
    %1723 = vmatprep.subr.mxu0 %v511
    %1724 = vmatpush1.msra.mxu0 %v510
    %1725 = vmatprep.subr.mxu0 %v507
    %1726 = vmatpush1.msra.mxu0 %v506
    %1727 = vmatprep.subr.mxu0 %v503
    %1728 = vmatpush1.msra.mxu0 %v502
    %1729 = vmatprep.subr.mxu0 %v499
    %1730 = vmatpush1.msra.mxu0 %v498
    %1731 = vmatprep.subr.mxu0 %v495
    %1732 = vmatpush1.msra.mxu0 %v494
    %1733 = vmatprep.subr.mxu0 %v491
    %1734 = vmatpush1.msra.mxu0 %v490
    %1735 = vmatprep.subr.mxu0 %v487
    %1736 = vmatpush1.msra.mxu0 %v486
    %1737 = vmatprep.subr.mxu0 %v483
    %1738 = vmatpush1.msra.mxu0 %v482
    %1739 = vmatprep.subr.mxu0 %v479
    %1740 = vmatpush1.msra.mxu0 %v478
    %1741 = vmatprep.subr.mxu0 %v475
    %1742 = vmatpush1.msra.mxu0 %v474
    %1743 = vmatprep.subr.mxu0 %v471
    %1744 = vmatpush1.msra.mxu0 %v470
    %1745 = vmatprep.subr.mxu0 %v467
    %1746 = vmatpush1.msra.mxu0 %v466
    %1747 = vmatprep.subr.mxu0 %v463
    %1748 = vmatpush1.msra.mxu0 %v462
    %1749 = vmatprep.subr.mxu0 0.0
    %1750 = vmatpush2.msra.mxu0 0.0
    %1751 = vmatprep.subr.mxu0 0.0
    %1752 = vmatpush2.msra.mxu0 0.0
    %1753 = vmatprep.subr.mxu0 0.0
    %1754 = vmatpush2.msra.mxu0 0.0
    %1755 = vmatprep.subr.mxu0 0.0
    %1756 = vmatpush2.msra.mxu0 0.0
    %1757 = vmatprep.subr.mxu0 0.0
    %1758 = vmatpush2.msra.mxu0 0.0
    %1759 = vmatprep.subr.mxu0 0.0
    %1760 = vmatpush2.msra.mxu0 0.0
    %1761 = vmatprep.subr.mxu0 0.0
    %1762 = vmatpush2.msra.mxu0 0.0
    %1763 = vmatprep.subr.mxu0 0.0
    %1764 = vmatpush2.msra.mxu0 0.0
    %1765 = vmatprep.subr.mxu0 0.0
    %1766 = vmatpush2.msra.mxu0 0.0
    %1767 = vmatprep.subr.mxu0 0.0
    %1768 = vmatpush2.msra.mxu0 0.0
    %1769 = vmatprep.subr.mxu0 0.0
    %1770 = vmatpush2.msra.mxu0 0.0
    %1771 = vmatprep.subr.mxu0 0.0
    %1772 = vmatpush2.msra.mxu0 0.0
    %1773 = vmatprep.subr.mxu0 0.0
    %1774 = vmatpush2.msra.mxu0 0.0
    %1775 = vmatprep.subr.mxu0 0.0
    %1776 = vmatpush2.msra.mxu0 0.0
    %1777 = vmatprep.subr.mxu0 0.0
    %1778 = vmatpush2.msra.mxu0 0.0
    %1779 = vmatprep.subr.mxu0 0.0
    %1780 = vmatpush2.msra.mxu0 0.0
    %1781 = vmatprep.mubr.f32.mxu0 0.0
    %1782 = vmatmul.mubr.f32.gmra.mxu0 %v1541
    %v1783 = vpop.f32.mrf.mxu0
    %v1784 = vadd.f32 0.0, %v1783
    %v1785 = vpop.f32.mrf.mxu0
    %v1786 = vadd.f32 0.0, %v1785
    %1787 = vdwg.mxu0
    %1788 = vmatprep.subr.mxu0 %v525
    %1789 = vmatpush1.msra.mxu0 %v524
    %1790 = vmatprep.subr.mxu0 %v521
    %1791 = vmatpush1.msra.mxu0 %v520
    %1792 = vmatprep.subr.mxu0 %v517
    %1793 = vmatpush1.msra.mxu0 %v516
    %1794 = vmatprep.subr.mxu0 %v513
    %1795 = vmatpush1.msra.mxu0 %v512
    %1796 = vmatprep.subr.mxu0 %v509
    %1797 = vmatpush1.msra.mxu0 %v508
    %1798 = vmatprep.subr.mxu0 %v505
    %1799 = vmatpush1.msra.mxu0 %v504
    %1800 = vmatprep.subr.mxu0 %v501
    %1801 = vmatpush1.msra.mxu0 %v500
    %1802 = vmatprep.subr.mxu0 %v497
    %1803 = vmatpush1.msra.mxu0 %v496
    %1804 = vmatprep.subr.mxu0 %v493
    %1805 = vmatpush1.msra.mxu0 %v492
    %1806 = vmatprep.subr.mxu0 %v489
    %1807 = vmatpush1.msra.mxu0 %v488
    %1808 = vmatprep.subr.mxu0 %v485
    %1809 = vmatpush1.msra.mxu0 %v484
    %1810 = vmatprep.subr.mxu0 %v481
    %1811 = vmatpush1.msra.mxu0 %v480
    %1812 = vmatprep.subr.mxu0 %v477
    %1813 = vmatpush1.msra.mxu0 %v476
    %1814 = vmatprep.subr.mxu0 %v473
    %1815 = vmatpush1.msra.mxu0 %v472
    %1816 = vmatprep.subr.mxu0 %v469
    %1817 = vmatpush1.msra.mxu0 %v468
    %1818 = vmatprep.subr.mxu0 %v465
    %1819 = vmatpush1.msra.mxu0 %v464
    %1820 = vmatprep.subr.mxu0 0.0
    %1821 = vmatpush2.msra.mxu0 0.0
    %1822 = vmatprep.subr.mxu0 0.0
    %1823 = vmatpush2.msra.mxu0 0.0
    %1824 = vmatprep.subr.mxu0 0.0
    %1825 = vmatpush2.msra.mxu0 0.0
    %1826 = vmatprep.subr.mxu0 0.0
    %1827 = vmatpush2.msra.mxu0 0.0
    %1828 = vmatprep.subr.mxu0 0.0
    %1829 = vmatpush2.msra.mxu0 0.0
    %1830 = vmatprep.subr.mxu0 0.0
    %1831 = vmatpush2.msra.mxu0 0.0
    %1832 = vmatprep.subr.mxu0 0.0
    %1833 = vmatpush2.msra.mxu0 0.0
    %1834 = vmatprep.subr.mxu0 0.0
    %1835 = vmatpush2.msra.mxu0 0.0
    %1836 = vmatprep.subr.mxu0 0.0
    %1837 = vmatpush2.msra.mxu0 0.0
    %1838 = vmatprep.subr.mxu0 0.0
    %1839 = vmatpush2.msra.mxu0 0.0
    %1840 = vmatprep.subr.mxu0 0.0
    %1841 = vmatpush2.msra.mxu0 0.0
    %1842 = vmatprep.subr.mxu0 0.0
    %1843 = vmatpush2.msra.mxu0 0.0
    %1844 = vmatprep.subr.mxu0 0.0
    %1845 = vmatpush2.msra.mxu0 0.0
    %1846 = vmatprep.subr.mxu0 0.0
    %1847 = vmatpush2.msra.mxu0 0.0
    %1848 = vmatprep.subr.mxu0 0.0
    %1849 = vmatpush2.msra.mxu0 0.0
    %1850 = vmatprep.subr.mxu0 0.0
    %1851 = vmatpush2.msra.mxu0 0.0
    %1852 = vmatprep.mubr.f32.mxu0 0.0
    %1853 = vmatmul.mubr.f32.gmra.mxu0 %v1541
    %v1854 = vpop.f32.mrf.mxu0
    %v1855 = vadd.f32 0.0, %v1854
    %v1856 = vpop.f32.mrf.mxu0
    %v1857 = vadd.f32 0.0, %v1856
    %1858 = vdwg.mxu0
    %v1859 = vadd.f32 %v1713, %v1784
    %v1860 = vadd.f32 %v1714, %v1786
    %v1861 = vadd.f32 %v1715, %v1855
    %v1862 = vadd.f32 %v1716, %v1857
    %v1863 = vxor.u32 %v1859, 2147483648
    %v1864 = vmul.f32 %v1863, 1.442695
    %v1865 = vpow.pop %v1864
    %v1866 = vadd.f32 %v1865, 1.0
    %v1867 = vrcp.pop %v1866
    %v1868 = vmul.f32 1.0, %v1867
    %v1869 = vxor.u32 %v1860, 2147483648
    %v1870 = vmul.f32 %v1869, 1.442695
    %v1871 = vpow.pop %v1870
    %v1872 = vadd.f32 %v1871, 1.0
    %v1873 = vrcp.pop %v1872
    %v1874 = vmul.f32 1.0, %v1873
    %v1875 = vtanh.pop %v1861
    %v1876 = vxor.u32 %v1862, 2147483648
    %v1877 = vmul.f32 %v1876, 1.442695
    %v1878 = vpow.pop %v1877
    %v1879 = vadd.f32 %v1878, 1.0
    %v1880 = vrcp.pop %v1879
    %v1881 = vmul.f32 1.0, %v1880
    %v1882 = vmul.f32 %v1874, %v1539
    %v1883 = vmul.f32 %v1868, %v1875
    %v1884 = vadd.f32 %v1882, %v1883
    %v1885 = vtanh.pop %v1884
    %v1886 = vmul.f32 %v1881, %v1885
    %1887 = vmatprep.subr.mxu0 %v587
    %1888 = vmatpush1.msra.mxu0 %v586
    %1889 = vmatprep.subr.mxu0 %v583
    %1890 = vmatpush1.msra.mxu0 %v582
    %1891 = vmatprep.subr.mxu0 %v579
    %1892 = vmatpush1.msra.mxu0 %v578
    %1893 = vmatprep.subr.mxu0 %v575
    %1894 = vmatpush1.msra.mxu0 %v574
    %1895 = vmatprep.subr.mxu0 %v571
    %1896 = vmatpush1.msra.mxu0 %v570
    %1897 = vmatprep.subr.mxu0 %v567
    %1898 = vmatpush1.msra.mxu0 %v566
    %1899 = vmatprep.subr.mxu0 %v563
    %1900 = vmatpush1.msra.mxu0 %v562
    %1901 = vmatprep.subr.mxu0 %v559
    %1902 = vmatpush1.msra.mxu0 %v558
    %1903 = vmatprep.subr.mxu0 %v555
    %1904 = vmatpush1.msra.mxu0 %v554
    %1905 = vmatprep.subr.mxu0 %v551
    %1906 = vmatpush1.msra.mxu0 %v550
    %1907 = vmatprep.subr.mxu0 %v547
    %1908 = vmatpush1.msra.mxu0 %v546
    %1909 = vmatprep.subr.mxu0 %v543
    %1910 = vmatpush1.msra.mxu0 %v542
    %1911 = vmatprep.subr.mxu0 %v539
    %1912 = vmatpush1.msra.mxu0 %v538
    %1913 = vmatprep.subr.mxu0 %v535
    %1914 = vmatpush1.msra.mxu0 %v534
    %1915 = vmatprep.subr.mxu0 %v531
    %1916 = vmatpush1.msra.mxu0 %v530
    %1917 = vmatprep.subr.mxu0 %v527
    %1918 = vmatpush1.msra.mxu0 %v526
    %1919 = vmatprep.subr.mxu0 %v651
    %1920 = vmatpush2.msra.mxu0 %v650
    %1921 = vmatprep.subr.mxu0 %v647
    %1922 = vmatpush2.msra.mxu0 %v646
    %1923 = vmatprep.subr.mxu0 %v643
    %1924 = vmatpush2.msra.mxu0 %v642
    %1925 = vmatprep.subr.mxu0 %v639
    %1926 = vmatpush2.msra.mxu0 %v638
    %1927 = vmatprep.subr.mxu0 %v635
    %1928 = vmatpush2.msra.mxu0 %v634
    %1929 = vmatprep.subr.mxu0 %v631
    %1930 = vmatpush2.msra.mxu0 %v630
    %1931 = vmatprep.subr.mxu0 %v627
    %1932 = vmatpush2.msra.mxu0 %v626
    %1933 = vmatprep.subr.mxu0 %v623
    %1934 = vmatpush2.msra.mxu0 %v622
    %1935 = vmatprep.subr.mxu0 %v619
    %1936 = vmatpush2.msra.mxu0 %v618
    %1937 = vmatprep.subr.mxu0 %v615
    %1938 = vmatpush2.msra.mxu0 %v614
    %1939 = vmatprep.subr.mxu0 %v611
    %1940 = vmatpush2.msra.mxu0 %v610
    %1941 = vmatprep.subr.mxu0 %v607
    %1942 = vmatpush2.msra.mxu0 %v606
    %1943 = vmatprep.subr.mxu0 %v603
    %1944 = vmatpush2.msra.mxu0 %v602
    %1945 = vmatprep.subr.mxu0 %v599
    %1946 = vmatpush2.msra.mxu0 %v598
    %1947 = vmatprep.subr.mxu0 %v595
    %1948 = vmatpush2.msra.mxu0 %v594
    %1949 = vmatprep.subr.mxu0 %v591
    %1950 = vmatpush2.msra.mxu0 %v590
    %1951 = vmatprep.mubr.f32.mxu0 %v1707
    %1952 = vmatmul.mubr.f32.gmra.mxu0 %v1886
    %v1953 = vpop.f32.mrf.mxu0
    %v1954 = vadd.f32 %v659, %v1953
    %v1955 = vpop.f32.mrf.mxu0
    %v1956 = vadd.f32 %v663, %v1955
    %1957 = vdwg.mxu0
    %1958 = vmatprep.subr.mxu0 %v589
    %1959 = vmatpush1.msra.mxu0 %v588
    %1960 = vmatprep.subr.mxu0 %v585
    %1961 = vmatpush1.msra.mxu0 %v584
    %1962 = vmatprep.subr.mxu0 %v581
    %1963 = vmatpush1.msra.mxu0 %v580
    %1964 = vmatprep.subr.mxu0 %v577
    %1965 = vmatpush1.msra.mxu0 %v576
    %1966 = vmatprep.subr.mxu0 %v573
    %1967 = vmatpush1.msra.mxu0 %v572
    %1968 = vmatprep.subr.mxu0 %v569
    %1969 = vmatpush1.msra.mxu0 %v568
    %1970 = vmatprep.subr.mxu0 %v565
    %1971 = vmatpush1.msra.mxu0 %v564
    %1972 = vmatprep.subr.mxu0 %v561
    %1973 = vmatpush1.msra.mxu0 %v560
    %1974 = vmatprep.subr.mxu0 %v557
    %1975 = vmatpush1.msra.mxu0 %v556
    %1976 = vmatprep.subr.mxu0 %v553
    %1977 = vmatpush1.msra.mxu0 %v552
    %1978 = vmatprep.subr.mxu0 %v549
    %1979 = vmatpush1.msra.mxu0 %v548
    %1980 = vmatprep.subr.mxu0 %v545
    %1981 = vmatpush1.msra.mxu0 %v544
    %1982 = vmatprep.subr.mxu0 %v541
    %1983 = vmatpush1.msra.mxu0 %v540
    %1984 = vmatprep.subr.mxu0 %v537
    %1985 = vmatpush1.msra.mxu0 %v536
    %1986 = vmatprep.subr.mxu0 %v533
    %1987 = vmatpush1.msra.mxu0 %v532
    %1988 = vmatprep.subr.mxu0 %v529
    %1989 = vmatpush1.msra.mxu0 %v528
    %1990 = vmatprep.subr.mxu0 %v653
    %1991 = vmatpush2.msra.mxu0 %v652
    %1992 = vmatprep.subr.mxu0 %v649
    %1993 = vmatpush2.msra.mxu0 %v648
    %1994 = vmatprep.subr.mxu0 %v645
    %1995 = vmatpush2.msra.mxu0 %v644
    %1996 = vmatprep.subr.mxu0 %v641
    %1997 = vmatpush2.msra.mxu0 %v640
    %1998 = vmatprep.subr.mxu0 %v637
    %1999 = vmatpush2.msra.mxu0 %v636
    %2000 = vmatprep.subr.mxu0 %v633
    %2001 = vmatpush2.msra.mxu0 %v632
    %2002 = vmatprep.subr.mxu0 %v629
    %2003 = vmatpush2.msra.mxu0 %v628
    %2004 = vmatprep.subr.mxu0 %v625
    %2005 = vmatpush2.msra.mxu0 %v624
    %2006 = vmatprep.subr.mxu0 %v621
    %2007 = vmatpush2.msra.mxu0 %v620
    %2008 = vmatprep.subr.mxu0 %v617
    %2009 = vmatpush2.msra.mxu0 %v616
    %2010 = vmatprep.subr.mxu0 %v613
    %2011 = vmatpush2.msra.mxu0 %v612
    %2012 = vmatprep.subr.mxu0 %v609
    %2013 = vmatpush2.msra.mxu0 %v608
    %2014 = vmatprep.subr.mxu0 %v605
    %2015 = vmatpush2.msra.mxu0 %v604
    %2016 = vmatprep.subr.mxu0 %v601
    %2017 = vmatpush2.msra.mxu0 %v600
    %2018 = vmatprep.subr.mxu0 %v597
    %2019 = vmatpush2.msra.mxu0 %v596
    %2020 = vmatprep.subr.mxu0 %v593
    %2021 = vmatpush2.msra.mxu0 %v592
    %2022 = vmatprep.mubr.f32.mxu0 %v1707
    %2023 = vmatmul.mubr.f32.gmra.mxu0 %v1886
    %v2024 = vpop.f32.mrf.mxu0
    %v2025 = vadd.f32 %v667, %v2024
    %v2026 = vpop.f32.mrf.mxu0
    %v2027 = vadd.f32 %v671, %v2026
    %2028 = vdwg.mxu0
    %v2029 = vxor.u32 %v1954, 2147483648
    %v2030 = vmul.f32 %v2029, 1.442695
    %v2031 = vpow.pop %v2030
    %v2032 = vadd.f32 %v2031, 1.0
    %v2033 = vrcp.pop %v2032
    %v2034 = vmul.f32 1.0, %v2033
    %v2035 = vxor.u32 %v1956, 2147483648
    %v2036 = vmul.f32 %v2035, 1.442695
    %v2037 = vpow.pop %v2036
    %v2038 = vadd.f32 %v2037, 1.0
    %v2039 = vrcp.pop %v2038
    %v2040 = vmul.f32 1.0, %v2039
    %v2041 = vtanh.pop %v2025
    %v2042 = vxor.u32 %v2027, 2147483648
    %v2043 = vmul.f32 %v2042, 1.442695
    %v2044 = vpow.pop %v2043
    %v2045 = vadd.f32 %v2044, 1.0
    %v2046 = vrcp.pop %v2045
    %v2047 = vmul.f32 1.0, %v2046
    %v2048 = vmul.f32 %v2040, %v1705
    %v2049 = vmul.f32 %v2034, %v2041
    %v2050 = vadd.f32 %v2048, %v2049
    %v2051 = vtanh.pop %v2050
    %v2052 = vmul.f32 %v2047, %v2051
    %s2053 = scalar_lea.vmem [#allocation3], 24
    %2054 = vst [vmem:[%s2053] sm:$0xff] %v2052
    %s2055 = smul.u32 4, 4
    %s2056 = smul.addr %s2055, 8
    %s2057 = scalar_lea.vmem [#allocation2], %s2056
    %v2058 = vld [vmem:[%s2057] sm:$0xff]
    %v2059 = vld [vmem:[%s2057 + $0x8] sm:$0xff]
    %v2060 = vld [vmem:[%s2057 + $0x10] sm:$0xff]
    %v2061 = vld [vmem:[%s2057 + $0x18] sm:$0xff]
    %2062 = vmatprep.subr.mxu0 %v523
    %2063 = vmatpush1.msra.mxu0 %v522
    %2064 = vmatprep.subr.mxu0 %v519
    %2065 = vmatpush1.msra.mxu0 %v518
    %2066 = vmatprep.subr.mxu0 %v515
    %2067 = vmatpush1.msra.mxu0 %v514
    %2068 = vmatprep.subr.mxu0 %v511
    %2069 = vmatpush1.msra.mxu0 %v510
    %2070 = vmatprep.subr.mxu0 %v507
    %2071 = vmatpush1.msra.mxu0 %v506
    %2072 = vmatprep.subr.mxu0 %v503
    %2073 = vmatpush1.msra.mxu0 %v502
    %2074 = vmatprep.subr.mxu0 %v499
    %2075 = vmatpush1.msra.mxu0 %v498
    %2076 = vmatprep.subr.mxu0 %v495
    %2077 = vmatpush1.msra.mxu0 %v494
    %2078 = vmatprep.subr.mxu0 %v491
    %2079 = vmatpush1.msra.mxu0 %v490
    %2080 = vmatprep.subr.mxu0 %v487
    %2081 = vmatpush1.msra.mxu0 %v486
    %2082 = vmatprep.subr.mxu0 %v483
    %2083 = vmatpush1.msra.mxu0 %v482
    %2084 = vmatprep.subr.mxu0 %v479
    %2085 = vmatpush1.msra.mxu0 %v478
    %2086 = vmatprep.subr.mxu0 %v475
    %2087 = vmatpush1.msra.mxu0 %v474
    %2088 = vmatprep.subr.mxu0 %v471
    %2089 = vmatpush1.msra.mxu0 %v470
    %2090 = vmatprep.subr.mxu0 %v467
    %2091 = vmatpush1.msra.mxu0 %v466
    %2092 = vmatprep.subr.mxu0 %v463
    %2093 = vmatpush1.msra.mxu0 %v462
    %2094 = vmatprep.subr.mxu0 0.0
    %2095 = vmatpush2.msra.mxu0 0.0
    %2096 = vmatprep.subr.mxu0 0.0
    %2097 = vmatpush2.msra.mxu0 0.0
    %2098 = vmatprep.subr.mxu0 0.0
    %2099 = vmatpush2.msra.mxu0 0.0
    %2100 = vmatprep.subr.mxu0 0.0
    %2101 = vmatpush2.msra.mxu0 0.0
    %2102 = vmatprep.subr.mxu0 0.0
    %2103 = vmatpush2.msra.mxu0 0.0
    %2104 = vmatprep.subr.mxu0 0.0
    %2105 = vmatpush2.msra.mxu0 0.0
    %2106 = vmatprep.subr.mxu0 0.0
    %2107 = vmatpush2.msra.mxu0 0.0
    %2108 = vmatprep.subr.mxu0 0.0
    %2109 = vmatpush2.msra.mxu0 0.0
    %2110 = vmatprep.subr.mxu0 0.0
    %2111 = vmatpush2.msra.mxu0 0.0
    %2112 = vmatprep.subr.mxu0 0.0
    %2113 = vmatpush2.msra.mxu0 0.0
    %2114 = vmatprep.subr.mxu0 0.0
    %2115 = vmatpush2.msra.mxu0 0.0
    %2116 = vmatprep.subr.mxu0 0.0
    %2117 = vmatpush2.msra.mxu0 0.0
    %2118 = vmatprep.subr.mxu0 0.0
    %2119 = vmatpush2.msra.mxu0 0.0
    %2120 = vmatprep.subr.mxu0 0.0
    %2121 = vmatpush2.msra.mxu0 0.0
    %2122 = vmatprep.subr.mxu0 0.0
    %2123 = vmatpush2.msra.mxu0 0.0
    %2124 = vmatprep.subr.mxu0 0.0
    %2125 = vmatpush2.msra.mxu0 0.0
    %2126 = vmatprep.mubr.f32.mxu0 0.0
    %2127 = vmatmul.mubr.f32.gmra.mxu0 %v1886
    %v2128 = vpop.f32.mrf.mxu0
    %v2129 = vadd.f32 0.0, %v2128
    %v2130 = vpop.f32.mrf.mxu0
    %v2131 = vadd.f32 0.0, %v2130
    %2132 = vdwg.mxu0
    %2133 = vmatprep.subr.mxu0 %v525
    %2134 = vmatpush1.msra.mxu0 %v524
    %2135 = vmatprep.subr.mxu0 %v521
    %2136 = vmatpush1.msra.mxu0 %v520
    %2137 = vmatprep.subr.mxu0 %v517
    %2138 = vmatpush1.msra.mxu0 %v516
    %2139 = vmatprep.subr.mxu0 %v513
    %2140 = vmatpush1.msra.mxu0 %v512
    %2141 = vmatprep.subr.mxu0 %v509
    %2142 = vmatpush1.msra.mxu0 %v508
    %2143 = vmatprep.subr.mxu0 %v505
    %2144 = vmatpush1.msra.mxu0 %v504
    %2145 = vmatprep.subr.mxu0 %v501
    %2146 = vmatpush1.msra.mxu0 %v500
    %2147 = vmatprep.subr.mxu0 %v497
    %2148 = vmatpush1.msra.mxu0 %v496
    %2149 = vmatprep.subr.mxu0 %v493
    %2150 = vmatpush1.msra.mxu0 %v492
    %2151 = vmatprep.subr.mxu0 %v489
    %2152 = vmatpush1.msra.mxu0 %v488
    %2153 = vmatprep.subr.mxu0 %v485
    %2154 = vmatpush1.msra.mxu0 %v484
    %2155 = vmatprep.subr.mxu0 %v481
    %2156 = vmatpush1.msra.mxu0 %v480
    %2157 = vmatprep.subr.mxu0 %v477
    %2158 = vmatpush1.msra.mxu0 %v476
    %2159 = vmatprep.subr.mxu0 %v473
    %2160 = vmatpush1.msra.mxu0 %v472
    %2161 = vmatprep.subr.mxu0 %v469
    %2162 = vmatpush1.msra.mxu0 %v468
    %2163 = vmatprep.subr.mxu0 %v465
    %2164 = vmatpush1.msra.mxu0 %v464
    %2165 = vmatprep.subr.mxu0 0.0
    %2166 = vmatpush2.msra.mxu0 0.0
    %2167 = vmatprep.subr.mxu0 0.0
    %2168 = vmatpush2.msra.mxu0 0.0
    %2169 = vmatprep.subr.mxu0 0.0
    %2170 = vmatpush2.msra.mxu0 0.0
    %2171 = vmatprep.subr.mxu0 0.0
    %2172 = vmatpush2.msra.mxu0 0.0
    %2173 = vmatprep.subr.mxu0 0.0
    %2174 = vmatpush2.msra.mxu0 0.0
    %2175 = vmatprep.subr.mxu0 0.0
    %2176 = vmatpush2.msra.mxu0 0.0
    %2177 = vmatprep.subr.mxu0 0.0
    %2178 = vmatpush2.msra.mxu0 0.0
    %2179 = vmatprep.subr.mxu0 0.0
    %2180 = vmatpush2.msra.mxu0 0.0
    %2181 = vmatprep.subr.mxu0 0.0
    %2182 = vmatpush2.msra.mxu0 0.0
    %2183 = vmatprep.subr.mxu0 0.0
    %2184 = vmatpush2.msra.mxu0 0.0
    %2185 = vmatprep.subr.mxu0 0.0
    %2186 = vmatpush2.msra.mxu0 0.0
    %2187 = vmatprep.subr.mxu0 0.0
    %2188 = vmatpush2.msra.mxu0 0.0
    %2189 = vmatprep.subr.mxu0 0.0
    %2190 = vmatpush2.msra.mxu0 0.0
    %2191 = vmatprep.subr.mxu0 0.0
    %2192 = vmatpush2.msra.mxu0 0.0
    %2193 = vmatprep.subr.mxu0 0.0
    %2194 = vmatpush2.msra.mxu0 0.0
    %2195 = vmatprep.subr.mxu0 0.0
    %2196 = vmatpush2.msra.mxu0 0.0
    %2197 = vmatprep.mubr.f32.mxu0 0.0
    %2198 = vmatmul.mubr.f32.gmra.mxu0 %v1886
    %v2199 = vpop.f32.mrf.mxu0
    %v2200 = vadd.f32 0.0, %v2199
    %v2201 = vpop.f32.mrf.mxu0
    %v2202 = vadd.f32 0.0, %v2201
    %2203 = vdwg.mxu0
    %v2204 = vadd.f32 %v2058, %v2129
    %v2205 = vadd.f32 %v2059, %v2131
    %v2206 = vadd.f32 %v2060, %v2200
    %v2207 = vadd.f32 %v2061, %v2202
    %v2208 = vxor.u32 %v2204, 2147483648
    %v2209 = vmul.f32 %v2208, 1.442695
    %v2210 = vpow.pop %v2209
    %v2211 = vadd.f32 %v2210, 1.0
    %v2212 = vrcp.pop %v2211
    %v2213 = vmul.f32 1.0, %v2212
    %v2214 = vxor.u32 %v2205, 2147483648
    %v2215 = vmul.f32 %v2214, 1.442695
    %v2216 = vpow.pop %v2215
    %v2217 = vadd.f32 %v2216, 1.0
    %v2218 = vrcp.pop %v2217
    %v2219 = vmul.f32 1.0, %v2218
    %v2220 = vtanh.pop %v2206
    %v2221 = vxor.u32 %v2207, 2147483648
    %v2222 = vmul.f32 %v2221, 1.442695
    %v2223 = vpow.pop %v2222
    %v2224 = vadd.f32 %v2223, 1.0
    %v2225 = vrcp.pop %v2224
    %v2226 = vmul.f32 1.0, %v2225
    %v2227 = vmul.f32 %v2219, %v1884
    %v2228 = vmul.f32 %v2213, %v2220
    %v2229 = vadd.f32 %v2227, %v2228
    %v2230 = vtanh.pop %v2229
    %v2231 = vmul.f32 %v2226, %v2230
    %2232 = vmatprep.subr.mxu0 %v587
    %2233 = vmatpush1.msra.mxu0 %v586
    %2234 = vmatprep.subr.mxu0 %v583
    %2235 = vmatpush1.msra.mxu0 %v582
    %2236 = vmatprep.subr.mxu0 %v579
    %2237 = vmatpush1.msra.mxu0 %v578
    %2238 = vmatprep.subr.mxu0 %v575
    %2239 = vmatpush1.msra.mxu0 %v574
    %2240 = vmatprep.subr.mxu0 %v571
    %2241 = vmatpush1.msra.mxu0 %v570
    %2242 = vmatprep.subr.mxu0 %v567
    %2243 = vmatpush1.msra.mxu0 %v566
    %2244 = vmatprep.subr.mxu0 %v563
    %2245 = vmatpush1.msra.mxu0 %v562
    %2246 = vmatprep.subr.mxu0 %v559
    %2247 = vmatpush1.msra.mxu0 %v558
    %2248 = vmatprep.subr.mxu0 %v555
    %2249 = vmatpush1.msra.mxu0 %v554
    %2250 = vmatprep.subr.mxu0 %v551
    %2251 = vmatpush1.msra.mxu0 %v550
    %2252 = vmatprep.subr.mxu0 %v547
    %2253 = vmatpush1.msra.mxu0 %v546
    %2254 = vmatprep.subr.mxu0 %v543
    %2255 = vmatpush1.msra.mxu0 %v542
    %2256 = vmatprep.subr.mxu0 %v539
    %2257 = vmatpush1.msra.mxu0 %v538
    %2258 = vmatprep.subr.mxu0 %v535
    %2259 = vmatpush1.msra.mxu0 %v534
    %2260 = vmatprep.subr.mxu0 %v531
    %2261 = vmatpush1.msra.mxu0 %v530
    %2262 = vmatprep.subr.mxu0 %v527
    %2263 = vmatpush1.msra.mxu0 %v526
    %2264 = vmatprep.subr.mxu0 %v651
    %2265 = vmatpush2.msra.mxu0 %v650
    %2266 = vmatprep.subr.mxu0 %v647
    %2267 = vmatpush2.msra.mxu0 %v646
    %2268 = vmatprep.subr.mxu0 %v643
    %2269 = vmatpush2.msra.mxu0 %v642
    %2270 = vmatprep.subr.mxu0 %v639
    %2271 = vmatpush2.msra.mxu0 %v638
    %2272 = vmatprep.subr.mxu0 %v635
    %2273 = vmatpush2.msra.mxu0 %v634
    %2274 = vmatprep.subr.mxu0 %v631
    %2275 = vmatpush2.msra.mxu0 %v630
    %2276 = vmatprep.subr.mxu0 %v627
    %2277 = vmatpush2.msra.mxu0 %v626
    %2278 = vmatprep.subr.mxu0 %v623
    %2279 = vmatpush2.msra.mxu0 %v622
    %2280 = vmatprep.subr.mxu0 %v619
    %2281 = vmatpush2.msra.mxu0 %v618
    %2282 = vmatprep.subr.mxu0 %v615
    %2283 = vmatpush2.msra.mxu0 %v614
    %2284 = vmatprep.subr.mxu0 %v611
    %2285 = vmatpush2.msra.mxu0 %v610
    %2286 = vmatprep.subr.mxu0 %v607
    %2287 = vmatpush2.msra.mxu0 %v606
    %2288 = vmatprep.subr.mxu0 %v603
    %2289 = vmatpush2.msra.mxu0 %v602
    %2290 = vmatprep.subr.mxu0 %v599
    %2291 = vmatpush2.msra.mxu0 %v598
    %2292 = vmatprep.subr.mxu0 %v595
    %2293 = vmatpush2.msra.mxu0 %v594
    %2294 = vmatprep.subr.mxu0 %v591
    %2295 = vmatpush2.msra.mxu0 %v590
    %2296 = vmatprep.mubr.f32.mxu0 %v2052
    %2297 = vmatmul.mubr.f32.gmra.mxu0 %v2231
    %v2298 = vpop.f32.mrf.mxu0
    %v2299 = vadd.f32 %v659, %v2298
    %v2300 = vpop.f32.mrf.mxu0
    %v2301 = vadd.f32 %v663, %v2300
    %2302 = vdwg.mxu0
    %2303 = vmatprep.subr.mxu0 %v589
    %2304 = vmatpush1.msra.mxu0 %v588
    %2305 = vmatprep.subr.mxu0 %v585
    %2306 = vmatpush1.msra.mxu0 %v584
    %2307 = vmatprep.subr.mxu0 %v581
    %2308 = vmatpush1.msra.mxu0 %v580
    %2309 = vmatprep.subr.mxu0 %v577
    %2310 = vmatpush1.msra.mxu0 %v576
    %2311 = vmatprep.subr.mxu0 %v573
    %2312 = vmatpush1.msra.mxu0 %v572
    %2313 = vmatprep.subr.mxu0 %v569
    %2314 = vmatpush1.msra.mxu0 %v568
    %2315 = vmatprep.subr.mxu0 %v565
    %2316 = vmatpush1.msra.mxu0 %v564
    %2317 = vmatprep.subr.mxu0 %v561
    %2318 = vmatpush1.msra.mxu0 %v560
    %2319 = vmatprep.subr.mxu0 %v557
    %2320 = vmatpush1.msra.mxu0 %v556
    %2321 = vmatprep.subr.mxu0 %v553
    %2322 = vmatpush1.msra.mxu0 %v552
    %2323 = vmatprep.subr.mxu0 %v549
    %2324 = vmatpush1.msra.mxu0 %v548
    %2325 = vmatprep.subr.mxu0 %v545
    %2326 = vmatpush1.msra.mxu0 %v544
    %2327 = vmatprep.subr.mxu0 %v541
    %2328 = vmatpush1.msra.mxu0 %v540
    %2329 = vmatprep.subr.mxu0 %v537
    %2330 = vmatpush1.msra.mxu0 %v536
    %2331 = vmatprep.subr.mxu0 %v533
    %2332 = vmatpush1.msra.mxu0 %v532
    %2333 = vmatprep.subr.mxu0 %v529
    %2334 = vmatpush1.msra.mxu0 %v528
    %2335 = vmatprep.subr.mxu0 %v653
    %2336 = vmatpush2.msra.mxu0 %v652
    %2337 = vmatprep.subr.mxu0 %v649
    %2338 = vmatpush2.msra.mxu0 %v648
    %2339 = vmatprep.subr.mxu0 %v645
    %2340 = vmatpush2.msra.mxu0 %v644
    %2341 = vmatprep.subr.mxu0 %v641
    %2342 = vmatpush2.msra.mxu0 %v640
    %2343 = vmatprep.subr.mxu0 %v637
    %2344 = vmatpush2.msra.mxu0 %v636
    %2345 = vmatprep.subr.mxu0 %v633
    %2346 = vmatpush2.msra.mxu0 %v632
    %2347 = vmatprep.subr.mxu0 %v629
    %2348 = vmatpush2.msra.mxu0 %v628
    %2349 = vmatprep.subr.mxu0 %v625
    %2350 = vmatpush2.msra.mxu0 %v624
    %2351 = vmatprep.subr.mxu0 %v621
    %2352 = vmatpush2.msra.mxu0 %v620
    %2353 = vmatprep.subr.mxu0 %v617
    %2354 = vmatpush2.msra.mxu0 %v616
    %2355 = vmatprep.subr.mxu0 %v613
    %2356 = vmatpush2.msra.mxu0 %v612
    %2357 = vmatprep.subr.mxu0 %v609
    %2358 = vmatpush2.msra.mxu0 %v608
    %2359 = vmatprep.subr.mxu0 %v605
    %2360 = vmatpush2.msra.mxu0 %v604
    %2361 = vmatprep.subr.mxu0 %v601
    %2362 = vmatpush2.msra.mxu0 %v600
    %2363 = vmatprep.subr.mxu0 %v597
    %2364 = vmatpush2.msra.mxu0 %v596
    %2365 = vmatprep.subr.mxu0 %v593
    %2366 = vmatpush2.msra.mxu0 %v592
    %2367 = vmatprep.mubr.f32.mxu0 %v2052
    %2368 = vmatmul.mubr.f32.gmra.mxu0 %v2231
    %v2369 = vpop.f32.mrf.mxu0
    %v2370 = vadd.f32 %v667, %v2369
    %v2371 = vpop.f32.mrf.mxu0
    %v2372 = vadd.f32 %v671, %v2371
    %2373 = vdwg.mxu0
    %v2374 = vxor.u32 %v2299, 2147483648
    %v2375 = vmul.f32 %v2374, 1.442695
    %v2376 = vpow.pop %v2375
    %v2377 = vadd.f32 %v2376, 1.0
    %v2378 = vrcp.pop %v2377
    %v2379 = vmul.f32 1.0, %v2378
    %v2380 = vxor.u32 %v2301, 2147483648
    %v2381 = vmul.f32 %v2380, 1.442695
    %v2382 = vpow.pop %v2381
    %v2383 = vadd.f32 %v2382, 1.0
    %v2384 = vrcp.pop %v2383
    %v2385 = vmul.f32 1.0, %v2384
    %v2386 = vtanh.pop %v2370
    %v2387 = vxor.u32 %v2372, 2147483648
    %v2388 = vmul.f32 %v2387, 1.442695
    %v2389 = vpow.pop %v2388
    %v2390 = vadd.f32 %v2389, 1.0
    %v2391 = vrcp.pop %v2390
    %v2392 = vmul.f32 1.0, %v2391
    %v2393 = vmul.f32 %v2385, %v2050
    %v2394 = vmul.f32 %v2379, %v2386
    %v2395 = vadd.f32 %v2393, %v2394
    %v2396 = vtanh.pop %v2395
    %v2397 = vmul.f32 %v2392, %v2396
    %s2398 = scalar_lea.vmem [#allocation3], 32
    %2399 = vst [vmem:[%s2398] sm:$0xff] %v2397
    %s2400 = smul.u32 5, 4
    %s2401 = smul.addr %s2400, 8
    %s2402 = scalar_lea.vmem [#allocation2], %s2401
    %v2403 = vld [vmem:[%s2402] sm:$0xff]
    %v2404 = vld [vmem:[%s2402 + $0x8] sm:$0xff]
    %v2405 = vld [vmem:[%s2402 + $0x10] sm:$0xff]
    %v2406 = vld [vmem:[%s2402 + $0x18] sm:$0xff]
    %2407 = vmatprep.subr.mxu0 %v523
    %2408 = vmatpush1.msra.mxu0 %v522
    %2409 = vmatprep.subr.mxu0 %v519
    %2410 = vmatpush1.msra.mxu0 %v518
    %2411 = vmatprep.subr.mxu0 %v515
    %2412 = vmatpush1.msra.mxu0 %v514
    %2413 = vmatprep.subr.mxu0 %v511
    %2414 = vmatpush1.msra.mxu0 %v510
    %2415 = vmatprep.subr.mxu0 %v507
    %2416 = vmatpush1.msra.mxu0 %v506
    %2417 = vmatprep.subr.mxu0 %v503
    %2418 = vmatpush1.msra.mxu0 %v502
    %2419 = vmatprep.subr.mxu0 %v499
    %2420 = vmatpush1.msra.mxu0 %v498
    %2421 = vmatprep.subr.mxu0 %v495
    %2422 = vmatpush1.msra.mxu0 %v494
    %2423 = vmatprep.subr.mxu0 %v491
    %2424 = vmatpush1.msra.mxu0 %v490
    %2425 = vmatprep.subr.mxu0 %v487
    %2426 = vmatpush1.msra.mxu0 %v486
    %2427 = vmatprep.subr.mxu0 %v483
    %2428 = vmatpush1.msra.mxu0 %v482
    %2429 = vmatprep.subr.mxu0 %v479
    %2430 = vmatpush1.msra.mxu0 %v478
    %2431 = vmatprep.subr.mxu0 %v475
    %2432 = vmatpush1.msra.mxu0 %v474
    %2433 = vmatprep.subr.mxu0 %v471
    %2434 = vmatpush1.msra.mxu0 %v470
    %2435 = vmatprep.subr.mxu0 %v467
    %2436 = vmatpush1.msra.mxu0 %v466
    %2437 = vmatprep.subr.mxu0 %v463
    %2438 = vmatpush1.msra.mxu0 %v462
    %2439 = vmatprep.subr.mxu0 0.0
    %2440 = vmatpush2.msra.mxu0 0.0
    %2441 = vmatprep.subr.mxu0 0.0
    %2442 = vmatpush2.msra.mxu0 0.0
    %2443 = vmatprep.subr.mxu0 0.0
    %2444 = vmatpush2.msra.mxu0 0.0
    %2445 = vmatprep.subr.mxu0 0.0
    %2446 = vmatpush2.msra.mxu0 0.0
    %2447 = vmatprep.subr.mxu0 0.0
    %2448 = vmatpush2.msra.mxu0 0.0
    %2449 = vmatprep.subr.mxu0 0.0
    %2450 = vmatpush2.msra.mxu0 0.0
    %2451 = vmatprep.subr.mxu0 0.0
    %2452 = vmatpush2.msra.mxu0 0.0
    %2453 = vmatprep.subr.mxu0 0.0
    %2454 = vmatpush2.msra.mxu0 0.0
    %2455 = vmatprep.subr.mxu0 0.0
    %2456 = vmatpush2.msra.mxu0 0.0
    %2457 = vmatprep.subr.mxu0 0.0
    %2458 = vmatpush2.msra.mxu0 0.0
    %2459 = vmatprep.subr.mxu0 0.0
    %2460 = vmatpush2.msra.mxu0 0.0
    %2461 = vmatprep.subr.mxu0 0.0
    %2462 = vmatpush2.msra.mxu0 0.0
    %2463 = vmatprep.subr.mxu0 0.0
    %2464 = vmatpush2.msra.mxu0 0.0
    %2465 = vmatprep.subr.mxu0 0.0
    %2466 = vmatpush2.msra.mxu0 0.0
    %2467 = vmatprep.subr.mxu0 0.0
    %2468 = vmatpush2.msra.mxu0 0.0
    %2469 = vmatprep.subr.mxu0 0.0
    %2470 = vmatpush2.msra.mxu0 0.0
    %2471 = vmatprep.mubr.f32.mxu0 0.0
    %2472 = vmatmul.mubr.f32.gmra.mxu0 %v2231
    %v2473 = vpop.f32.mrf.mxu0
    %v2474 = vadd.f32 0.0, %v2473
    %v2475 = vpop.f32.mrf.mxu0
    %v2476 = vadd.f32 0.0, %v2475
    %2477 = vdwg.mxu0
    %2478 = vmatprep.subr.mxu0 %v525
    %2479 = vmatpush1.msra.mxu0 %v524
    %2480 = vmatprep.subr.mxu0 %v521
    %2481 = vmatpush1.msra.mxu0 %v520
    %2482 = vmatprep.subr.mxu0 %v517
    %2483 = vmatpush1.msra.mxu0 %v516
    %2484 = vmatprep.subr.mxu0 %v513
    %2485 = vmatpush1.msra.mxu0 %v512
    %2486 = vmatprep.subr.mxu0 %v509
    %2487 = vmatpush1.msra.mxu0 %v508
    %2488 = vmatprep.subr.mxu0 %v505
    %2489 = vmatpush1.msra.mxu0 %v504
    %2490 = vmatprep.subr.mxu0 %v501
    %2491 = vmatpush1.msra.mxu0 %v500
    %2492 = vmatprep.subr.mxu0 %v497
    %2493 = vmatpush1.msra.mxu0 %v496
    %2494 = vmatprep.subr.mxu0 %v493
    %2495 = vmatpush1.msra.mxu0 %v492
    %2496 = vmatprep.subr.mxu0 %v489
    %2497 = vmatpush1.msra.mxu0 %v488
    %2498 = vmatprep.subr.mxu0 %v485
    %2499 = vmatpush1.msra.mxu0 %v484
    %2500 = vmatprep.subr.mxu0 %v481
    %2501 = vmatpush1.msra.mxu0 %v480
    %2502 = vmatprep.subr.mxu0 %v477
    %2503 = vmatpush1.msra.mxu0 %v476
    %2504 = vmatprep.subr.mxu0 %v473
    %2505 = vmatpush1.msra.mxu0 %v472
    %2506 = vmatprep.subr.mxu0 %v469
    %2507 = vmatpush1.msra.mxu0 %v468
    %2508 = vmatprep.subr.mxu0 %v465
    %2509 = vmatpush1.msra.mxu0 %v464
    %2510 = vmatprep.subr.mxu0 0.0
    %2511 = vmatpush2.msra.mxu0 0.0
    %2512 = vmatprep.subr.mxu0 0.0
    %2513 = vmatpush2.msra.mxu0 0.0
    %2514 = vmatprep.subr.mxu0 0.0
    %2515 = vmatpush2.msra.mxu0 0.0
    %2516 = vmatprep.subr.mxu0 0.0
    %2517 = vmatpush2.msra.mxu0 0.0
    %2518 = vmatprep.subr.mxu0 0.0
    %2519 = vmatpush2.msra.mxu0 0.0
    %2520 = vmatprep.subr.mxu0 0.0
    %2521 = vmatpush2.msra.mxu0 0.0
    %2522 = vmatprep.subr.mxu0 0.0
    %2523 = vmatpush2.msra.mxu0 0.0
    %2524 = vmatprep.subr.mxu0 0.0
    %2525 = vmatpush2.msra.mxu0 0.0
    %2526 = vmatprep.subr.mxu0 0.0
    %2527 = vmatpush2.msra.mxu0 0.0
    %2528 = vmatprep.subr.mxu0 0.0
    %2529 = vmatpush2.msra.mxu0 0.0
    %2530 = vmatprep.subr.mxu0 0.0
    %2531 = vmatpush2.msra.mxu0 0.0
    %2532 = vmatprep.subr.mxu0 0.0
    %2533 = vmatpush2.msra.mxu0 0.0
    %2534 = vmatprep.subr.mxu0 0.0
    %2535 = vmatpush2.msra.mxu0 0.0
    %2536 = vmatprep.subr.mxu0 0.0
    %2537 = vmatpush2.msra.mxu0 0.0
    %2538 = vmatprep.subr.mxu0 0.0
    %2539 = vmatpush2.msra.mxu0 0.0
    %2540 = vmatprep.subr.mxu0 0.0
    %2541 = vmatpush2.msra.mxu0 0.0
    %2542 = vmatprep.mubr.f32.mxu0 0.0
    %2543 = vmatmul.mubr.f32.gmra.mxu0 %v2231
    %v2544 = vpop.f32.mrf.mxu0
    %v2545 = vadd.f32 0.0, %v2544
    %v2546 = vpop.f32.mrf.mxu0
    %v2547 = vadd.f32 0.0, %v2546
    %2548 = vdwg.mxu0
    %v2549 = vadd.f32 %v2403, %v2474
    %v2550 = vadd.f32 %v2404, %v2476
    %v2551 = vadd.f32 %v2405, %v2545
    %v2552 = vadd.f32 %v2406, %v2547
    %v2553 = vxor.u32 %v2549, 2147483648
    %v2554 = vmul.f32 %v2553, 1.442695
    %v2555 = vpow.pop %v2554
    %v2556 = vadd.f32 %v2555, 1.0
    %v2557 = vrcp.pop %v2556
    %v2558 = vmul.f32 1.0, %v2557
    %v2559 = vxor.u32 %v2550, 2147483648
    %v2560 = vmul.f32 %v2559, 1.442695
    %v2561 = vpow.pop %v2560
    %v2562 = vadd.f32 %v2561, 1.0
    %v2563 = vrcp.pop %v2562
    %v2564 = vmul.f32 1.0, %v2563
    %v2565 = vtanh.pop %v2551
    %v2566 = vxor.u32 %v2552, 2147483648
    %v2567 = vmul.f32 %v2566, 1.442695
    %v2568 = vpow.pop %v2567
    %v2569 = vadd.f32 %v2568, 1.0
    %v2570 = vrcp.pop %v2569
    %v2571 = vmul.f32 1.0, %v2570
    %v2572 = vmul.f32 %v2564, %v2229
    %v2573 = vmul.f32 %v2558, %v2565
    %v2574 = vadd.f32 %v2572, %v2573
    %v2575 = vtanh.pop %v2574
    %v2576 = vmul.f32 %v2571, %v2575
    %2577 = vmatprep.subr.mxu0 %v587
    %2578 = vmatpush1.msra.mxu0 %v586
    %2579 = vmatprep.subr.mxu0 %v583
    %2580 = vmatpush1.msra.mxu0 %v582
    %2581 = vmatprep.subr.mxu0 %v579
    %2582 = vmatpush1.msra.mxu0 %v578
    %2583 = vmatprep.subr.mxu0 %v575
    %2584 = vmatpush1.msra.mxu0 %v574
    %2585 = vmatprep.subr.mxu0 %v571
    %2586 = vmatpush1.msra.mxu0 %v570
    %2587 = vmatprep.subr.mxu0 %v567
    %2588 = vmatpush1.msra.mxu0 %v566
    %2589 = vmatprep.subr.mxu0 %v563
    %2590 = vmatpush1.msra.mxu0 %v562
    %2591 = vmatprep.subr.mxu0 %v559
    %2592 = vmatpush1.msra.mxu0 %v558
    %2593 = vmatprep.subr.mxu0 %v555
    %2594 = vmatpush1.msra.mxu0 %v554
    %2595 = vmatprep.subr.mxu0 %v551
    %2596 = vmatpush1.msra.mxu0 %v550
    %2597 = vmatprep.subr.mxu0 %v547
    %2598 = vmatpush1.msra.mxu0 %v546
    %2599 = vmatprep.subr.mxu0 %v543
    %2600 = vmatpush1.msra.mxu0 %v542
    %2601 = vmatprep.subr.mxu0 %v539
    %2602 = vmatpush1.msra.mxu0 %v538
    %2603 = vmatprep.subr.mxu0 %v535
    %2604 = vmatpush1.msra.mxu0 %v534
    %2605 = vmatprep.subr.mxu0 %v531
    %2606 = vmatpush1.msra.mxu0 %v530
    %2607 = vmatprep.subr.mxu0 %v527
    %2608 = vmatpush1.msra.mxu0 %v526
    %2609 = vmatprep.subr.mxu0 %v651
    %2610 = vmatpush2.msra.mxu0 %v650
    %2611 = vmatprep.subr.mxu0 %v647
    %2612 = vmatpush2.msra.mxu0 %v646
    %2613 = vmatprep.subr.mxu0 %v643
    %2614 = vmatpush2.msra.mxu0 %v642
    %2615 = vmatprep.subr.mxu0 %v639
    %2616 = vmatpush2.msra.mxu0 %v638
    %2617 = vmatprep.subr.mxu0 %v635
    %2618 = vmatpush2.msra.mxu0 %v634
    %2619 = vmatprep.subr.mxu0 %v631
    %2620 = vmatpush2.msra.mxu0 %v630
    %2621 = vmatprep.subr.mxu0 %v627
    %2622 = vmatpush2.msra.mxu0 %v626
    %2623 = vmatprep.subr.mxu0 %v623
    %2624 = vmatpush2.msra.mxu0 %v622
    %2625 = vmatprep.subr.mxu0 %v619
    %2626 = vmatpush2.msra.mxu0 %v618
    %2627 = vmatprep.subr.mxu0 %v615
    %2628 = vmatpush2.msra.mxu0 %v614
    %2629 = vmatprep.subr.mxu0 %v611
    %2630 = vmatpush2.msra.mxu0 %v610
    %2631 = vmatprep.subr.mxu0 %v607
    %2632 = vmatpush2.msra.mxu0 %v606
    %2633 = vmatprep.subr.mxu0 %v603
    %2634 = vmatpush2.msra.mxu0 %v602
    %2635 = vmatprep.subr.mxu0 %v599
    %2636 = vmatpush2.msra.mxu0 %v598
    %2637 = vmatprep.subr.mxu0 %v595
    %2638 = vmatpush2.msra.mxu0 %v594
    %2639 = vmatprep.subr.mxu0 %v591
    %2640 = vmatpush2.msra.mxu0 %v590
    %2641 = vmatprep.mubr.f32.mxu0 %v2397
    %2642 = vmatmul.mubr.f32.gmra.mxu0 %v2576
    %v2643 = vpop.f32.mrf.mxu0
    %v2644 = vadd.f32 %v659, %v2643
    %v2645 = vpop.f32.mrf.mxu0
    %v2646 = vadd.f32 %v663, %v2645
    %2647 = vdwg.mxu0
    %2648 = vmatprep.subr.mxu0 %v589
    %2649 = vmatpush1.msra.mxu0 %v588
    %2650 = vmatprep.subr.mxu0 %v585
    %2651 = vmatpush1.msra.mxu0 %v584
    %2652 = vmatprep.subr.mxu0 %v581
    %2653 = vmatpush1.msra.mxu0 %v580
    %2654 = vmatprep.subr.mxu0 %v577
    %2655 = vmatpush1.msra.mxu0 %v576
    %2656 = vmatprep.subr.mxu0 %v573
    %2657 = vmatpush1.msra.mxu0 %v572
    %2658 = vmatprep.subr.mxu0 %v569
    %2659 = vmatpush1.msra.mxu0 %v568
    %2660 = vmatprep.subr.mxu0 %v565
    %2661 = vmatpush1.msra.mxu0 %v564
    %2662 = vmatprep.subr.mxu0 %v561
    %2663 = vmatpush1.msra.mxu0 %v560
    %2664 = vmatprep.subr.mxu0 %v557
    %2665 = vmatpush1.msra.mxu0 %v556
    %2666 = vmatprep.subr.mxu0 %v553
    %2667 = vmatpush1.msra.mxu0 %v552
    %2668 = vmatprep.subr.mxu0 %v549
    %2669 = vmatpush1.msra.mxu0 %v548
    %2670 = vmatprep.subr.mxu0 %v545
    %2671 = vmatpush1.msra.mxu0 %v544
    %2672 = vmatprep.subr.mxu0 %v541
    %2673 = vmatpush1.msra.mxu0 %v540
    %2674 = vmatprep.subr.mxu0 %v537
    %2675 = vmatpush1.msra.mxu0 %v536
    %2676 = vmatprep.subr.mxu0 %v533
    %2677 = vmatpush1.msra.mxu0 %v532
    %2678 = vmatprep.subr.mxu0 %v529
    %2679 = vmatpush1.msra.mxu0 %v528
    %2680 = vmatprep.subr.mxu0 %v653
    %2681 = vmatpush2.msra.mxu0 %v652
    %2682 = vmatprep.subr.mxu0 %v649
    %2683 = vmatpush2.msra.mxu0 %v648
    %2684 = vmatprep.subr.mxu0 %v645
    %2685 = vmatpush2.msra.mxu0 %v644
    %2686 = vmatprep.subr.mxu0 %v641
    %2687 = vmatpush2.msra.mxu0 %v640
    %2688 = vmatprep.subr.mxu0 %v637
    %2689 = vmatpush2.msra.mxu0 %v636
    %2690 = vmatprep.subr.mxu0 %v633
    %2691 = vmatpush2.msra.mxu0 %v632
    %2692 = vmatprep.subr.mxu0 %v629
    %2693 = vmatpush2.msra.mxu0 %v628
    %2694 = vmatprep.subr.mxu0 %v625
    %2695 = vmatpush2.msra.mxu0 %v624
    %2696 = vmatprep.subr.mxu0 %v621
    %2697 = vmatpush2.msra.mxu0 %v620
    %2698 = vmatprep.subr.mxu0 %v617
    %2699 = vmatpush2.msra.mxu0 %v616
    %2700 = vmatprep.subr.mxu0 %v613
    %2701 = vmatpush2.msra.mxu0 %v612
    %2702 = vmatprep.subr.mxu0 %v609
    %2703 = vmatpush2.msra.mxu0 %v608
    %2704 = vmatprep.subr.mxu0 %v605
    %2705 = vmatpush2.msra.mxu0 %v604
    %2706 = vmatprep.subr.mxu0 %v601
    %2707 = vmatpush2.msra.mxu0 %v600
    %2708 = vmatprep.subr.mxu0 %v597
    %2709 = vmatpush2.msra.mxu0 %v596
    %2710 = vmatprep.subr.mxu0 %v593
    %2711 = vmatpush2.msra.mxu0 %v592
    %2712 = vmatprep.mubr.f32.mxu0 %v2397
    %2713 = vmatmul.mubr.f32.gmra.mxu0 %v2576
    %v2714 = vpop.f32.mrf.mxu0
    %v2715 = vadd.f32 %v667, %v2714
    %v2716 = vpop.f32.mrf.mxu0
    %v2717 = vadd.f32 %v671, %v2716
    %2718 = vdwg.mxu0
    %v2719 = vxor.u32 %v2644, 2147483648
    %v2720 = vmul.f32 %v2719, 1.442695
    %v2721 = vpow.pop %v2720
    %v2722 = vadd.f32 %v2721, 1.0
    %v2723 = vrcp.pop %v2722
    %v2724 = vmul.f32 1.0, %v2723
    %v2725 = vxor.u32 %v2646, 2147483648
    %v2726 = vmul.f32 %v2725, 1.442695
    %v2727 = vpow.pop %v2726
    %v2728 = vadd.f32 %v2727, 1.0
    %v2729 = vrcp.pop %v2728
    %v2730 = vmul.f32 1.0, %v2729
    %v2731 = vtanh.pop %v2715
    %v2732 = vxor.u32 %v2717, 2147483648
    %v2733 = vmul.f32 %v2732, 1.442695
    %v2734 = vpow.pop %v2733
    %v2735 = vadd.f32 %v2734, 1.0
    %v2736 = vrcp.pop %v2735
    %v2737 = vmul.f32 1.0, %v2736
    %v2738 = vmul.f32 %v2730, %v2395
    %v2739 = vmul.f32 %v2724, %v2731
    %v2740 = vadd.f32 %v2738, %v2739
    %v2741 = vtanh.pop %v2740
    %v2742 = vmul.f32 %v2737, %v2741
    %s2743 = scalar_lea.vmem [#allocation3], 40
    %2744 = vst [vmem:[%s2743] sm:$0xff] %v2742
    %s2745 = smul.u32 6, 4
    %s2746 = smul.addr %s2745, 8
    %s2747 = scalar_lea.vmem [#allocation2], %s2746
    %v2748 = vld [vmem:[%s2747] sm:$0xff]
    %v2749 = vld [vmem:[%s2747 + $0x8] sm:$0xff]
    %v2750 = vld [vmem:[%s2747 + $0x10] sm:$0xff]
    %v2751 = vld [vmem:[%s2747 + $0x18] sm:$0xff]
    %2752 = vmatprep.subr.mxu0 %v523
    %2753 = vmatpush1.msra.mxu0 %v522
    %2754 = vmatprep.subr.mxu0 %v519
    %2755 = vmatpush1.msra.mxu0 %v518
    %2756 = vmatprep.subr.mxu0 %v515
    %2757 = vmatpush1.msra.mxu0 %v514
    %2758 = vmatprep.subr.mxu0 %v511
    %2759 = vmatpush1.msra.mxu0 %v510
    %2760 = vmatprep.subr.mxu0 %v507
    %2761 = vmatpush1.msra.mxu0 %v506
    %2762 = vmatprep.subr.mxu0 %v503
    %2763 = vmatpush1.msra.mxu0 %v502
    %2764 = vmatprep.subr.mxu0 %v499
    %2765 = vmatpush1.msra.mxu0 %v498
    %2766 = vmatprep.subr.mxu0 %v495
    %2767 = vmatpush1.msra.mxu0 %v494
    %2768 = vmatprep.subr.mxu0 %v491
    %2769 = vmatpush1.msra.mxu0 %v490
    %2770 = vmatprep.subr.mxu0 %v487
    %2771 = vmatpush1.msra.mxu0 %v486
    %2772 = vmatprep.subr.mxu0 %v483
    %2773 = vmatpush1.msra.mxu0 %v482
    %2774 = vmatprep.subr.mxu0 %v479
    %2775 = vmatpush1.msra.mxu0 %v478
    %2776 = vmatprep.subr.mxu0 %v475
    %2777 = vmatpush1.msra.mxu0 %v474
    %2778 = vmatprep.subr.mxu0 %v471
    %2779 = vmatpush1.msra.mxu0 %v470
    %2780 = vmatprep.subr.mxu0 %v467
    %2781 = vmatpush1.msra.mxu0 %v466
    %2782 = vmatprep.subr.mxu0 %v463
    %2783 = vmatpush1.msra.mxu0 %v462
    %2784 = vmatprep.subr.mxu0 0.0
    %2785 = vmatpush2.msra.mxu0 0.0
    %2786 = vmatprep.subr.mxu0 0.0
    %2787 = vmatpush2.msra.mxu0 0.0
    %2788 = vmatprep.subr.mxu0 0.0
    %2789 = vmatpush2.msra.mxu0 0.0
    %2790 = vmatprep.subr.mxu0 0.0
    %2791 = vmatpush2.msra.mxu0 0.0
    %2792 = vmatprep.subr.mxu0 0.0
    %2793 = vmatpush2.msra.mxu0 0.0
    %2794 = vmatprep.subr.mxu0 0.0
    %2795 = vmatpush2.msra.mxu0 0.0
    %2796 = vmatprep.subr.mxu0 0.0
    %2797 = vmatpush2.msra.mxu0 0.0
    %2798 = vmatprep.subr.mxu0 0.0
    %2799 = vmatpush2.msra.mxu0 0.0
    %2800 = vmatprep.subr.mxu0 0.0
    %2801 = vmatpush2.msra.mxu0 0.0
    %2802 = vmatprep.subr.mxu0 0.0
    %2803 = vmatpush2.msra.mxu0 0.0
    %2804 = vmatprep.subr.mxu0 0.0
    %2805 = vmatpush2.msra.mxu0 0.0
    %2806 = vmatprep.subr.mxu0 0.0
    %2807 = vmatpush2.msra.mxu0 0.0
    %2808 = vmatprep.subr.mxu0 0.0
    %2809 = vmatpush2.msra.mxu0 0.0
    %2810 = vmatprep.subr.mxu0 0.0
    %2811 = vmatpush2.msra.mxu0 0.0
    %2812 = vmatprep.subr.mxu0 0.0
    %2813 = vmatpush2.msra.mxu0 0.0
    %2814 = vmatprep.subr.mxu0 0.0
    %2815 = vmatpush2.msra.mxu0 0.0
    %2816 = vmatprep.mubr.f32.mxu0 0.0
    %2817 = vmatmul.mubr.f32.gmra.mxu0 %v2576
    %v2818 = vpop.f32.mrf.mxu0
    %v2819 = vadd.f32 0.0, %v2818
    %v2820 = vpop.f32.mrf.mxu0
    %v2821 = vadd.f32 0.0, %v2820
    %2822 = vdwg.mxu0
    %2823 = vmatprep.subr.mxu0 %v525
    %2824 = vmatpush1.msra.mxu0 %v524
    %2825 = vmatprep.subr.mxu0 %v521
    %2826 = vmatpush1.msra.mxu0 %v520
    %2827 = vmatprep.subr.mxu0 %v517
    %2828 = vmatpush1.msra.mxu0 %v516
    %2829 = vmatprep.subr.mxu0 %v513
    %2830 = vmatpush1.msra.mxu0 %v512
    %2831 = vmatprep.subr.mxu0 %v509
    %2832 = vmatpush1.msra.mxu0 %v508
    %2833 = vmatprep.subr.mxu0 %v505
    %2834 = vmatpush1.msra.mxu0 %v504
    %2835 = vmatprep.subr.mxu0 %v501
    %2836 = vmatpush1.msra.mxu0 %v500
    %2837 = vmatprep.subr.mxu0 %v497
    %2838 = vmatpush1.msra.mxu0 %v496
    %2839 = vmatprep.subr.mxu0 %v493
    %2840 = vmatpush1.msra.mxu0 %v492
    %2841 = vmatprep.subr.mxu0 %v489
    %2842 = vmatpush1.msra.mxu0 %v488
    %2843 = vmatprep.subr.mxu0 %v485
    %2844 = vmatpush1.msra.mxu0 %v484
    %2845 = vmatprep.subr.mxu0 %v481
    %2846 = vmatpush1.msra.mxu0 %v480
    %2847 = vmatprep.subr.mxu0 %v477
    %2848 = vmatpush1.msra.mxu0 %v476
    %2849 = vmatprep.subr.mxu0 %v473
    %2850 = vmatpush1.msra.mxu0 %v472
    %2851 = vmatprep.subr.mxu0 %v469
    %2852 = vmatpush1.msra.mxu0 %v468
    %2853 = vmatprep.subr.mxu0 %v465
    %2854 = vmatpush1.msra.mxu0 %v464
    %2855 = vmatprep.subr.mxu0 0.0
    %2856 = vmatpush2.msra.mxu0 0.0
    %2857 = vmatprep.subr.mxu0 0.0
    %2858 = vmatpush2.msra.mxu0 0.0
    %2859 = vmatprep.subr.mxu0 0.0
    %2860 = vmatpush2.msra.mxu0 0.0
    %2861 = vmatprep.subr.mxu0 0.0
    %2862 = vmatpush2.msra.mxu0 0.0
    %2863 = vmatprep.subr.mxu0 0.0
    %2864 = vmatpush2.msra.mxu0 0.0
    %2865 = vmatprep.subr.mxu0 0.0
    %2866 = vmatpush2.msra.mxu0 0.0
    %2867 = vmatprep.subr.mxu0 0.0
    %2868 = vmatpush2.msra.mxu0 0.0
    %2869 = vmatprep.subr.mxu0 0.0
    %2870 = vmatpush2.msra.mxu0 0.0
    %2871 = vmatprep.subr.mxu0 0.0
    %2872 = vmatpush2.msra.mxu0 0.0
    %2873 = vmatprep.subr.mxu0 0.0
    %2874 = vmatpush2.msra.mxu0 0.0
    %2875 = vmatprep.subr.mxu0 0.0
    %2876 = vmatpush2.msra.mxu0 0.0
    %2877 = vmatprep.subr.mxu0 0.0
    %2878 = vmatpush2.msra.mxu0 0.0
    %2879 = vmatprep.subr.mxu0 0.0
    %2880 = vmatpush2.msra.mxu0 0.0
    %2881 = vmatprep.subr.mxu0 0.0
    %2882 = vmatpush2.msra.mxu0 0.0
    %2883 = vmatprep.subr.mxu0 0.0
    %2884 = vmatpush2.msra.mxu0 0.0
    %2885 = vmatprep.subr.mxu0 0.0
    %2886 = vmatpush2.msra.mxu0 0.0
    %2887 = vmatprep.mubr.f32.mxu0 0.0
    %2888 = vmatmul.mubr.f32.gmra.mxu0 %v2576
    %v2889 = vpop.f32.mrf.mxu0
    %v2890 = vadd.f32 0.0, %v2889
    %v2891 = vpop.f32.mrf.mxu0
    %v2892 = vadd.f32 0.0, %v2891
    %2893 = vdwg.mxu0
    %v2894 = vadd.f32 %v2748, %v2819
    %v2895 = vadd.f32 %v2749, %v2821
    %v2896 = vadd.f32 %v2750, %v2890
    %v2897 = vadd.f32 %v2751, %v2892
    %v2898 = vxor.u32 %v2894, 2147483648
    %v2899 = vmul.f32 %v2898, 1.442695
    %v2900 = vpow.pop %v2899
    %v2901 = vadd.f32 %v2900, 1.0
    %v2902 = vrcp.pop %v2901
    %v2903 = vmul.f32 1.0, %v2902
    %v2904 = vxor.u32 %v2895, 2147483648
    %v2905 = vmul.f32 %v2904, 1.442695
    %v2906 = vpow.pop %v2905
    %v2907 = vadd.f32 %v2906, 1.0
    %v2908 = vrcp.pop %v2907
    %v2909 = vmul.f32 1.0, %v2908
    %v2910 = vtanh.pop %v2896
    %v2911 = vxor.u32 %v2897, 2147483648
    %v2912 = vmul.f32 %v2911, 1.442695
    %v2913 = vpow.pop %v2912
    %v2914 = vadd.f32 %v2913, 1.0
    %v2915 = vrcp.pop %v2914
    %v2916 = vmul.f32 1.0, %v2915
    %v2917 = vmul.f32 %v2909, %v2574
    %v2918 = vmul.f32 %v2903, %v2910
    %v2919 = vadd.f32 %v2917, %v2918
    %v2920 = vtanh.pop %v2919
    %v2921 = vmul.f32 %v2916, %v2920
    %2922 = vmatprep.subr.mxu0 %v587
    %2923 = vmatpush1.msra.mxu0 %v586
    %2924 = vmatprep.subr.mxu0 %v583
    %2925 = vmatpush1.msra.mxu0 %v582
    %2926 = vmatprep.subr.mxu0 %v579
    %2927 = vmatpush1.msra.mxu0 %v578
    %2928 = vmatprep.subr.mxu0 %v575
    %2929 = vmatpush1.msra.mxu0 %v574
    %2930 = vmatprep.subr.mxu0 %v571
    %2931 = vmatpush1.msra.mxu0 %v570
    %2932 = vmatprep.subr.mxu0 %v567
    %2933 = vmatpush1.msra.mxu0 %v566
    %2934 = vmatprep.subr.mxu0 %v563
    %2935 = vmatpush1.msra.mxu0 %v562
    %2936 = vmatprep.subr.mxu0 %v559
    %2937 = vmatpush1.msra.mxu0 %v558
    %2938 = vmatprep.subr.mxu0 %v555
    %2939 = vmatpush1.msra.mxu0 %v554
    %2940 = vmatprep.subr.mxu0 %v551
    %2941 = vmatpush1.msra.mxu0 %v550
    %2942 = vmatprep.subr.mxu0 %v547
    %2943 = vmatpush1.msra.mxu0 %v546
    %2944 = vmatprep.subr.mxu0 %v543
    %2945 = vmatpush1.msra.mxu0 %v542
    %2946 = vmatprep.subr.mxu0 %v539
    %2947 = vmatpush1.msra.mxu0 %v538
    %2948 = vmatprep.subr.mxu0 %v535
    %2949 = vmatpush1.msra.mxu0 %v534
    %2950 = vmatprep.subr.mxu0 %v531
    %2951 = vmatpush1.msra.mxu0 %v530
    %2952 = vmatprep.subr.mxu0 %v527
    %2953 = vmatpush1.msra.mxu0 %v526
    %2954 = vmatprep.subr.mxu0 %v651
    %2955 = vmatpush2.msra.mxu0 %v650
    %2956 = vmatprep.subr.mxu0 %v647
    %2957 = vmatpush2.msra.mxu0 %v646
    %2958 = vmatprep.subr.mxu0 %v643
    %2959 = vmatpush2.msra.mxu0 %v642
    %2960 = vmatprep.subr.mxu0 %v639
    %2961 = vmatpush2.msra.mxu0 %v638
    %2962 = vmatprep.subr.mxu0 %v635
    %2963 = vmatpush2.msra.mxu0 %v634
    %2964 = vmatprep.subr.mxu0 %v631
    %2965 = vmatpush2.msra.mxu0 %v630
    %2966 = vmatprep.subr.mxu0 %v627
    %2967 = vmatpush2.msra.mxu0 %v626
    %2968 = vmatprep.subr.mxu0 %v623
    %2969 = vmatpush2.msra.mxu0 %v622
    %2970 = vmatprep.subr.mxu0 %v619
    %2971 = vmatpush2.msra.mxu0 %v618
    %2972 = vmatprep.subr.mxu0 %v615
    %2973 = vmatpush2.msra.mxu0 %v614
    %2974 = vmatprep.subr.mxu0 %v611
    %2975 = vmatpush2.msra.mxu0 %v610
    %2976 = vmatprep.subr.mxu0 %v607
    %2977 = vmatpush2.msra.mxu0 %v606
    %2978 = vmatprep.subr.mxu0 %v603
    %2979 = vmatpush2.msra.mxu0 %v602
    %2980 = vmatprep.subr.mxu0 %v599
    %2981 = vmatpush2.msra.mxu0 %v598
    %2982 = vmatprep.subr.mxu0 %v595
    %2983 = vmatpush2.msra.mxu0 %v594
    %2984 = vmatprep.subr.mxu0 %v591
    %2985 = vmatpush2.msra.mxu0 %v590
    %2986 = vmatprep.mubr.f32.mxu0 %v2742
    %2987 = vmatmul.mubr.f32.gmra.mxu0 %v2921
    %v2988 = vpop.f32.mrf.mxu0
    %v2989 = vadd.f32 %v659, %v2988
    %v2990 = vpop.f32.mrf.mxu0
    %v2991 = vadd.f32 %v663, %v2990
    %2992 = vdwg.mxu0
    %2993 = vmatprep.subr.mxu0 %v589
    %2994 = vmatpush1.msra.mxu0 %v588
    %2995 = vmatprep.subr.mxu0 %v585
    %2996 = vmatpush1.msra.mxu0 %v584
    %2997 = vmatprep.subr.mxu0 %v581
    %2998 = vmatpush1.msra.mxu0 %v580
    %2999 = vmatprep.subr.mxu0 %v577
    %3000 = vmatpush1.msra.mxu0 %v576
    %3001 = vmatprep.subr.mxu0 %v573
    %3002 = vmatpush1.msra.mxu0 %v572
    %3003 = vmatprep.subr.mxu0 %v569
    %3004 = vmatpush1.msra.mxu0 %v568
    %3005 = vmatprep.subr.mxu0 %v565
    %3006 = vmatpush1.msra.mxu0 %v564
    %3007 = vmatprep.subr.mxu0 %v561
    %3008 = vmatpush1.msra.mxu0 %v560
    %3009 = vmatprep.subr.mxu0 %v557
    %3010 = vmatpush1.msra.mxu0 %v556
    %3011 = vmatprep.subr.mxu0 %v553
    %3012 = vmatpush1.msra.mxu0 %v552
    %3013 = vmatprep.subr.mxu0 %v549
    %3014 = vmatpush1.msra.mxu0 %v548
    %3015 = vmatprep.subr.mxu0 %v545
    %3016 = vmatpush1.msra.mxu0 %v544
    %3017 = vmatprep.subr.mxu0 %v541
    %3018 = vmatpush1.msra.mxu0 %v540
    %3019 = vmatprep.subr.mxu0 %v537
    %3020 = vmatpush1.msra.mxu0 %v536
    %3021 = vmatprep.subr.mxu0 %v533
    %3022 = vmatpush1.msra.mxu0 %v532
    %3023 = vmatprep.subr.mxu0 %v529
    %3024 = vmatpush1.msra.mxu0 %v528
    %3025 = vmatprep.subr.mxu0 %v653
    %3026 = vmatpush2.msra.mxu0 %v652
    %3027 = vmatprep.subr.mxu0 %v649
    %3028 = vmatpush2.msra.mxu0 %v648
    %3029 = vmatprep.subr.mxu0 %v645
    %3030 = vmatpush2.msra.mxu0 %v644
    %3031 = vmatprep.subr.mxu0 %v641
    %3032 = vmatpush2.msra.mxu0 %v640
    %3033 = vmatprep.subr.mxu0 %v637
    %3034 = vmatpush2.msra.mxu0 %v636
    %3035 = vmatprep.subr.mxu0 %v633
    %3036 = vmatpush2.msra.mxu0 %v632
    %3037 = vmatprep.subr.mxu0 %v629
    %3038 = vmatpush2.msra.mxu0 %v628
    %3039 = vmatprep.subr.mxu0 %v625
    %3040 = vmatpush2.msra.mxu0 %v624
    %3041 = vmatprep.subr.mxu0 %v621
    %3042 = vmatpush2.msra.mxu0 %v620
    %3043 = vmatprep.subr.mxu0 %v617
    %3044 = vmatpush2.msra.mxu0 %v616
    %3045 = vmatprep.subr.mxu0 %v613
    %3046 = vmatpush2.msra.mxu0 %v612
    %3047 = vmatprep.subr.mxu0 %v609
    %3048 = vmatpush2.msra.mxu0 %v608
    %3049 = vmatprep.subr.mxu0 %v605
    %3050 = vmatpush2.msra.mxu0 %v604
    %3051 = vmatprep.subr.mxu0 %v601
    %3052 = vmatpush2.msra.mxu0 %v600
    %3053 = vmatprep.subr.mxu0 %v597
    %3054 = vmatpush2.msra.mxu0 %v596
    %3055 = vmatprep.subr.mxu0 %v593
    %3056 = vmatpush2.msra.mxu0 %v592
    %3057 = vmatprep.mubr.f32.mxu0 %v2742
    %3058 = vmatmul.mubr.f32.gmra.mxu0 %v2921
    %v3059 = vpop.f32.mrf.mxu0
    %v3060 = vadd.f32 %v667, %v3059
    %v3061 = vpop.f32.mrf.mxu0
    %v3062 = vadd.f32 %v671, %v3061
    %3063 = vdwg.mxu0
    %v3064 = vxor.u32 %v2989, 2147483648
    %v3065 = vmul.f32 %v3064, 1.442695
    %v3066 = vpow.pop %v3065
    %v3067 = vadd.f32 %v3066, 1.0
    %v3068 = vrcp.pop %v3067
    %v3069 = vmul.f32 1.0, %v3068
    %v3070 = vxor.u32 %v2991, 2147483648
    %v3071 = vmul.f32 %v3070, 1.442695
    %v3072 = vpow.pop %v3071
    %v3073 = vadd.f32 %v3072, 1.0
    %v3074 = vrcp.pop %v3073
    %v3075 = vmul.f32 1.0, %v3074
    %v3076 = vtanh.pop %v3060
    %v3077 = vxor.u32 %v3062, 2147483648
    %v3078 = vmul.f32 %v3077, 1.442695
    %v3079 = vpow.pop %v3078
    %v3080 = vadd.f32 %v3079, 1.0
    %v3081 = vrcp.pop %v3080
    %v3082 = vmul.f32 1.0, %v3081
    %v3083 = vmul.f32 %v3075, %v2740
    %v3084 = vmul.f32 %v3069, %v3076
    %v3085 = vadd.f32 %v3083, %v3084
    %v3086 = vtanh.pop %v3085
    %v3087 = vmul.f32 %v3082, %v3086
    %s3088 = scalar_lea.vmem [#allocation3], 48
    %3089 = vst [vmem:[%s3088] sm:$0xff] %v3087
    %s3090 = smul.u32 7, 4
    %s3091 = smul.addr %s3090, 8
    %s3092 = scalar_lea.vmem [#allocation2], %s3091
    %v3093 = vld [vmem:[%s3092] sm:$0xff]
    %v3094 = vld [vmem:[%s3092 + $0x8] sm:$0xff]
    %v3095 = vld [vmem:[%s3092 + $0x10] sm:$0xff]
    %v3096 = vld [vmem:[%s3092 + $0x18] sm:$0xff]
    %3097 = vmatprep.subr.mxu0 %v523
    %3098 = vmatpush1.msra.mxu0 %v522
    %3099 = vmatprep.subr.mxu0 %v519
    %3100 = vmatpush1.msra.mxu0 %v518
    %3101 = vmatprep.subr.mxu0 %v515
    %3102 = vmatpush1.msra.mxu0 %v514
    %3103 = vmatprep.subr.mxu0 %v511
    %3104 = vmatpush1.msra.mxu0 %v510
    %3105 = vmatprep.subr.mxu0 %v507
    %3106 = vmatpush1.msra.mxu0 %v506
    %3107 = vmatprep.subr.mxu0 %v503
    %3108 = vmatpush1.msra.mxu0 %v502
    %3109 = vmatprep.subr.mxu0 %v499
    %3110 = vmatpush1.msra.mxu0 %v498
    %3111 = vmatprep.subr.mxu0 %v495
    %3112 = vmatpush1.msra.mxu0 %v494
    %3113 = vmatprep.subr.mxu0 %v491
    %3114 = vmatpush1.msra.mxu0 %v490
    %3115 = vmatprep.subr.mxu0 %v487
    %3116 = vmatpush1.msra.mxu0 %v486
    %3117 = vmatprep.subr.mxu0 %v483
    %3118 = vmatpush1.msra.mxu0 %v482
    %3119 = vmatprep.subr.mxu0 %v479
    %3120 = vmatpush1.msra.mxu0 %v478
    %3121 = vmatprep.subr.mxu0 %v475
    %3122 = vmatpush1.msra.mxu0 %v474
    %3123 = vmatprep.subr.mxu0 %v471
    %3124 = vmatpush1.msra.mxu0 %v470
    %3125 = vmatprep.subr.mxu0 %v467
    %3126 = vmatpush1.msra.mxu0 %v466
    %3127 = vmatprep.subr.mxu0 %v463
    %3128 = vmatpush1.msra.mxu0 %v462
    %3129 = vmatprep.subr.mxu0 0.0
    %3130 = vmatpush2.msra.mxu0 0.0
    %3131 = vmatprep.subr.mxu0 0.0
    %3132 = vmatpush2.msra.mxu0 0.0
    %3133 = vmatprep.subr.mxu0 0.0
    %3134 = vmatpush2.msra.mxu0 0.0
    %3135 = vmatprep.subr.mxu0 0.0
    %3136 = vmatpush2.msra.mxu0 0.0
    %3137 = vmatprep.subr.mxu0 0.0
    %3138 = vmatpush2.msra.mxu0 0.0
    %3139 = vmatprep.subr.mxu0 0.0
    %3140 = vmatpush2.msra.mxu0 0.0
    %3141 = vmatprep.subr.mxu0 0.0
    %3142 = vmatpush2.msra.mxu0 0.0
    %3143 = vmatprep.subr.mxu0 0.0
    %3144 = vmatpush2.msra.mxu0 0.0
    %3145 = vmatprep.subr.mxu0 0.0
    %3146 = vmatpush2.msra.mxu0 0.0
    %3147 = vmatprep.subr.mxu0 0.0
    %3148 = vmatpush2.msra.mxu0 0.0
    %3149 = vmatprep.subr.mxu0 0.0
    %3150 = vmatpush2.msra.mxu0 0.0
    %3151 = vmatprep.subr.mxu0 0.0
    %3152 = vmatpush2.msra.mxu0 0.0
    %3153 = vmatprep.subr.mxu0 0.0
    %3154 = vmatpush2.msra.mxu0 0.0
    %3155 = vmatprep.subr.mxu0 0.0
    %3156 = vmatpush2.msra.mxu0 0.0
    %3157 = vmatprep.subr.mxu0 0.0
    %3158 = vmatpush2.msra.mxu0 0.0
    %3159 = vmatprep.subr.mxu0 0.0
    %3160 = vmatpush2.msra.mxu0 0.0
    %3161 = vmatprep.mubr.f32.mxu0 0.0
    %3162 = vmatmul.mubr.f32.gmra.mxu0 %v2921
    %v3163 = vpop.f32.mrf.mxu0
    %v3164 = vadd.f32 0.0, %v3163
    %v3165 = vpop.f32.mrf.mxu0
    %v3166 = vadd.f32 0.0, %v3165
    %3167 = vdwg.mxu0
    %3168 = vmatprep.subr.mxu0 %v525
    %3169 = vmatpush1.msra.mxu0 %v524
    %3170 = vmatprep.subr.mxu0 %v521
    %3171 = vmatpush1.msra.mxu0 %v520
    %3172 = vmatprep.subr.mxu0 %v517
    %3173 = vmatpush1.msra.mxu0 %v516
    %3174 = vmatprep.subr.mxu0 %v513
    %3175 = vmatpush1.msra.mxu0 %v512
    %3176 = vmatprep.subr.mxu0 %v509
    %3177 = vmatpush1.msra.mxu0 %v508
    %3178 = vmatprep.subr.mxu0 %v505
    %3179 = vmatpush1.msra.mxu0 %v504
    %3180 = vmatprep.subr.mxu0 %v501
    %3181 = vmatpush1.msra.mxu0 %v500
    %3182 = vmatprep.subr.mxu0 %v497
    %3183 = vmatpush1.msra.mxu0 %v496
    %3184 = vmatprep.subr.mxu0 %v493
    %3185 = vmatpush1.msra.mxu0 %v492
    %3186 = vmatprep.subr.mxu0 %v489
    %3187 = vmatpush1.msra.mxu0 %v488
    %3188 = vmatprep.subr.mxu0 %v485
    %3189 = vmatpush1.msra.mxu0 %v484
    %3190 = vmatprep.subr.mxu0 %v481
    %3191 = vmatpush1.msra.mxu0 %v480
    %3192 = vmatprep.subr.mxu0 %v477
    %3193 = vmatpush1.msra.mxu0 %v476
    %3194 = vmatprep.subr.mxu0 %v473
    %3195 = vmatpush1.msra.mxu0 %v472
    %3196 = vmatprep.subr.mxu0 %v469
    %3197 = vmatpush1.msra.mxu0 %v468
    %3198 = vmatprep.subr.mxu0 %v465
    %3199 = vmatpush1.msra.mxu0 %v464
    %3200 = vmatprep.subr.mxu0 0.0
    %3201 = vmatpush2.msra.mxu0 0.0
    %3202 = vmatprep.subr.mxu0 0.0
    %3203 = vmatpush2.msra.mxu0 0.0
    %3204 = vmatprep.subr.mxu0 0.0
    %3205 = vmatpush2.msra.mxu0 0.0
    %3206 = vmatprep.subr.mxu0 0.0
    %3207 = vmatpush2.msra.mxu0 0.0
    %3208 = vmatprep.subr.mxu0 0.0
    %3209 = vmatpush2.msra.mxu0 0.0
    %3210 = vmatprep.subr.mxu0 0.0
    %3211 = vmatpush2.msra.mxu0 0.0
    %3212 = vmatprep.subr.mxu0 0.0
    %3213 = vmatpush2.msra.mxu0 0.0
    %3214 = vmatprep.subr.mxu0 0.0
    %3215 = vmatpush2.msra.mxu0 0.0
    %3216 = vmatprep.subr.mxu0 0.0
    %3217 = vmatpush2.msra.mxu0 0.0
    %3218 = vmatprep.subr.mxu0 0.0
    %3219 = vmatpush2.msra.mxu0 0.0
    %3220 = vmatprep.subr.mxu0 0.0
    %3221 = vmatpush2.msra.mxu0 0.0
    %3222 = vmatprep.subr.mxu0 0.0
    %3223 = vmatpush2.msra.mxu0 0.0
    %3224 = vmatprep.subr.mxu0 0.0
    %3225 = vmatpush2.msra.mxu0 0.0
    %3226 = vmatprep.subr.mxu0 0.0
    %3227 = vmatpush2.msra.mxu0 0.0
    %3228 = vmatprep.subr.mxu0 0.0
    %3229 = vmatpush2.msra.mxu0 0.0
    %3230 = vmatprep.subr.mxu0 0.0
    %3231 = vmatpush2.msra.mxu0 0.0
    %3232 = vmatprep.mubr.f32.mxu0 0.0
    %3233 = vmatmul.mubr.f32.gmra.mxu0 %v2921
    %v3234 = vpop.f32.mrf.mxu0
    %v3235 = vadd.f32 0.0, %v3234
    %v3236 = vpop.f32.mrf.mxu0
    %v3237 = vadd.f32 0.0, %v3236
    %3238 = vdwg.mxu0
    %v3239 = vadd.f32 %v3093, %v3164
    %v3240 = vadd.f32 %v3094, %v3166
    %v3241 = vadd.f32 %v3095, %v3235
    %v3242 = vadd.f32 %v3096, %v3237
    %v3243 = vxor.u32 %v3239, 2147483648
    %v3244 = vmul.f32 %v3243, 1.442695
    %v3245 = vpow.pop %v3244
    %v3246 = vadd.f32 %v3245, 1.0
    %v3247 = vrcp.pop %v3246
    %v3248 = vmul.f32 1.0, %v3247
    %v3249 = vxor.u32 %v3240, 2147483648
    %v3250 = vmul.f32 %v3249, 1.442695
    %v3251 = vpow.pop %v3250
    %v3252 = vadd.f32 %v3251, 1.0
    %v3253 = vrcp.pop %v3252
    %v3254 = vmul.f32 1.0, %v3253
    %v3255 = vtanh.pop %v3241
    %v3256 = vxor.u32 %v3242, 2147483648
    %v3257 = vmul.f32 %v3256, 1.442695
    %v3258 = vpow.pop %v3257
    %v3259 = vadd.f32 %v3258, 1.0
    %v3260 = vrcp.pop %v3259
    %v3261 = vmul.f32 1.0, %v3260
    %v3262 = vmul.f32 %v3254, %v2919
    %v3263 = vmul.f32 %v3248, %v3255
    %v3264 = vadd.f32 %v3262, %v3263
    %v3265 = vtanh.pop %v3264
    %v3266 = vmul.f32 %v3261, %v3265
    %3267 = vmatprep.subr.mxu0 %v587
    %3268 = vmatpush1.msra.mxu0 %v586
    %3269 = vmatprep.subr.mxu0 %v583
    %3270 = vmatpush1.msra.mxu0 %v582
    %3271 = vmatprep.subr.mxu0 %v579
    %3272 = vmatpush1.msra.mxu0 %v578
    %3273 = vmatprep.subr.mxu0 %v575
    %3274 = vmatpush1.msra.mxu0 %v574
    %3275 = vmatprep.subr.mxu0 %v571
    %3276 = vmatpush1.msra.mxu0 %v570
    %3277 = vmatprep.subr.mxu0 %v567
    %3278 = vmatpush1.msra.mxu0 %v566
    %3279 = vmatprep.subr.mxu0 %v563
    %3280 = vmatpush1.msra.mxu0 %v562
    %3281 = vmatprep.subr.mxu0 %v559
    %3282 = vmatpush1.msra.mxu0 %v558
    %3283 = vmatprep.subr.mxu0 %v555
    %3284 = vmatpush1.msra.mxu0 %v554
    %3285 = vmatprep.subr.mxu0 %v551
    %3286 = vmatpush1.msra.mxu0 %v550
    %3287 = vmatprep.subr.mxu0 %v547
    %3288 = vmatpush1.msra.mxu0 %v546
    %3289 = vmatprep.subr.mxu0 %v543
    %3290 = vmatpush1.msra.mxu0 %v542
    %3291 = vmatprep.subr.mxu0 %v539
    %3292 = vmatpush1.msra.mxu0 %v538
    %3293 = vmatprep.subr.mxu0 %v535
    %3294 = vmatpush1.msra.mxu0 %v534
    %3295 = vmatprep.subr.mxu0 %v531
    %3296 = vmatpush1.msra.mxu0 %v530
    %3297 = vmatprep.subr.mxu0 %v527
    %3298 = vmatpush1.msra.mxu0 %v526
    %3299 = vmatprep.subr.mxu0 %v651
    %3300 = vmatpush2.msra.mxu0 %v650
    %3301 = vmatprep.subr.mxu0 %v647
    %3302 = vmatpush2.msra.mxu0 %v646
    %3303 = vmatprep.subr.mxu0 %v643
    %3304 = vmatpush2.msra.mxu0 %v642
    %3305 = vmatprep.subr.mxu0 %v639
    %3306 = vmatpush2.msra.mxu0 %v638
    %3307 = vmatprep.subr.mxu0 %v635
    %3308 = vmatpush2.msra.mxu0 %v634
    %3309 = vmatprep.subr.mxu0 %v631
    %3310 = vmatpush2.msra.mxu0 %v630
    %3311 = vmatprep.subr.mxu0 %v627
    %3312 = vmatpush2.msra.mxu0 %v626
    %3313 = vmatprep.subr.mxu0 %v623
    %3314 = vmatpush2.msra.mxu0 %v622
    %3315 = vmatprep.subr.mxu0 %v619
    %3316 = vmatpush2.msra.mxu0 %v618
    %3317 = vmatprep.subr.mxu0 %v615
    %3318 = vmatpush2.msra.mxu0 %v614
    %3319 = vmatprep.subr.mxu0 %v611
    %3320 = vmatpush2.msra.mxu0 %v610
    %3321 = vmatprep.subr.mxu0 %v607
    %3322 = vmatpush2.msra.mxu0 %v606
    %3323 = vmatprep.subr.mxu0 %v603
    %3324 = vmatpush2.msra.mxu0 %v602
    %3325 = vmatprep.subr.mxu0 %v599
    %3326 = vmatpush2.msra.mxu0 %v598
    %3327 = vmatprep.subr.mxu0 %v595
    %3328 = vmatpush2.msra.mxu0 %v594
    %3329 = vmatprep.subr.mxu0 %v591
    %3330 = vmatpush2.msra.mxu0 %v590
    %3331 = vmatprep.mubr.f32.mxu0 %v3087
    %3332 = vmatmul.mubr.f32.gmra.mxu0 %v3266
    %v3333 = vpop.f32.mrf.mxu0
    %v3334 = vadd.f32 %v659, %v3333
    %v3335 = vpop.f32.mrf.mxu0
    %v3336 = vadd.f32 %v663, %v3335
    %3337 = vdwg.mxu0
    %3338 = vmatprep.subr.mxu0 %v589
    %3339 = vmatpush1.msra.mxu0 %v588
    %3340 = vmatprep.subr.mxu0 %v585
    %3341 = vmatpush1.msra.mxu0 %v584
    %3342 = vmatprep.subr.mxu0 %v581
    %3343 = vmatpush1.msra.mxu0 %v580
    %3344 = vmatprep.subr.mxu0 %v577
    %3345 = vmatpush1.msra.mxu0 %v576
    %3346 = vmatprep.subr.mxu0 %v573
    %3347 = vmatpush1.msra.mxu0 %v572
    %3348 = vmatprep.subr.mxu0 %v569
    %3349 = vmatpush1.msra.mxu0 %v568
    %3350 = vmatprep.subr.mxu0 %v565
    %3351 = vmatpush1.msra.mxu0 %v564
    %3352 = vmatprep.subr.mxu0 %v561
    %3353 = vmatpush1.msra.mxu0 %v560
    %3354 = vmatprep.subr.mxu0 %v557
    %3355 = vmatpush1.msra.mxu0 %v556
    %3356 = vmatprep.subr.mxu0 %v553
    %3357 = vmatpush1.msra.mxu0 %v552
    %3358 = vmatprep.subr.mxu0 %v549
    %3359 = vmatpush1.msra.mxu0 %v548
    %3360 = vmatprep.subr.mxu0 %v545
    %3361 = vmatpush1.msra.mxu0 %v544
    %3362 = vmatprep.subr.mxu0 %v541
    %3363 = vmatpush1.msra.mxu0 %v540
    %3364 = vmatprep.subr.mxu0 %v537
    %3365 = vmatpush1.msra.mxu0 %v536
    %3366 = vmatprep.subr.mxu0 %v533
    %3367 = vmatpush1.msra.mxu0 %v532
    %3368 = vmatprep.subr.mxu0 %v529
    %3369 = vmatpush1.msra.mxu0 %v528
    %3370 = vmatprep.subr.mxu0 %v653
    %3371 = vmatpush2.msra.mxu0 %v652
    %3372 = vmatprep.subr.mxu0 %v649
    %3373 = vmatpush2.msra.mxu0 %v648
    %3374 = vmatprep.subr.mxu0 %v645
    %3375 = vmatpush2.msra.mxu0 %v644
    %3376 = vmatprep.subr.mxu0 %v641
    %3377 = vmatpush2.msra.mxu0 %v640
    %3378 = vmatprep.subr.mxu0 %v637
    %3379 = vmatpush2.msra.mxu0 %v636
    %3380 = vmatprep.subr.mxu0 %v633
    %3381 = vmatpush2.msra.mxu0 %v632
    %3382 = vmatprep.subr.mxu0 %v629
    %3383 = vmatpush2.msra.mxu0 %v628
    %3384 = vmatprep.subr.mxu0 %v625
    %3385 = vmatpush2.msra.mxu0 %v624
    %3386 = vmatprep.subr.mxu0 %v621
    %3387 = vmatpush2.msra.mxu0 %v620
    %3388 = vmatprep.subr.mxu0 %v617
    %3389 = vmatpush2.msra.mxu0 %v616
    %3390 = vmatprep.subr.mxu0 %v613
    %3391 = vmatpush2.msra.mxu0 %v612
    %3392 = vmatprep.subr.mxu0 %v609
    %3393 = vmatpush2.msra.mxu0 %v608
    %3394 = vmatprep.subr.mxu0 %v605
    %3395 = vmatpush2.msra.mxu0 %v604
    %3396 = vmatprep.subr.mxu0 %v601
    %3397 = vmatpush2.msra.mxu0 %v600
    %3398 = vmatprep.subr.mxu0 %v597
    %3399 = vmatpush2.msra.mxu0 %v596
    %3400 = vmatprep.subr.mxu0 %v593
    %3401 = vmatpush2.msra.mxu0 %v592
    %3402 = vmatprep.mubr.f32.mxu0 %v3087
    %3403 = vmatmul.mubr.f32.gmra.mxu0 %v3266
    %v3404 = vpop.f32.mrf.mxu0
    %v3405 = vadd.f32 %v667, %v3404
    %v3406 = vpop.f32.mrf.mxu0
    %v3407 = vadd.f32 %v671, %v3406
    %3408 = vdwg.mxu0
    %v3409 = vxor.u32 %v3334, 2147483648
    %v3410 = vmul.f32 %v3409, 1.442695
    %v3411 = vpow.pop %v3410
    %v3412 = vadd.f32 %v3411, 1.0
    %v3413 = vrcp.pop %v3412
    %v3414 = vmul.f32 1.0, %v3413
    %v3415 = vxor.u32 %v3336, 2147483648
    %v3416 = vmul.f32 %v3415, 1.442695
    %v3417 = vpow.pop %v3416
    %v3418 = vadd.f32 %v3417, 1.0
    %v3419 = vrcp.pop %v3418
    %v3420 = vmul.f32 1.0, %v3419
    %v3421 = vtanh.pop %v3405
    %v3422 = vxor.u32 %v3407, 2147483648
    %v3423 = vmul.f32 %v3422, 1.442695
    %v3424 = vpow.pop %v3423
    %v3425 = vadd.f32 %v3424, 1.0
    %v3426 = vrcp.pop %v3425
    %v3427 = vmul.f32 1.0, %v3426
    %v3428 = vmul.f32 %v3420, %v3085
    %v3429 = vmul.f32 %v3414, %v3421
    %v3430 = vadd.f32 %v3428, %v3429
    %v3431 = vtanh.pop %v3430
    %v3432 = vmul.f32 %v3427, %v3431
    %s3433 = scalar_lea.vmem [#allocation3], 56
    %3434 = vst [vmem:[%s3433] sm:$0xff] %v3432
    %v3435 = vld [vmem:[#allocation3] sm:$0xff]
    %v3436 = vld [vmem:[#allocation3 + $0x8] sm:$0xff]
    %v3437 = vld [vmem:[#allocation3 + $0x10] sm:$0xff]
    %v3438 = vld [vmem:[#allocation3 + $0x18] sm:$0xff]
    %v3439 = vld [vmem:[#allocation3 + $0x20] sm:$0xff]
    %v3440 = vld [vmem:[#allocation3 + $0x28] sm:$0xff]
    %v3441 = vld [vmem:[#allocation3 + $0x30] sm:$0xff]
    %v3442 = vld [vmem:[#allocation3 + $0x38] sm:$0xff]
    %v3443 = vld [vmem:[#allocation13] sm:$0xff]
    %v3444 = vld [vmem:[#allocation13 + $0x8] sm:$0xff]
    %v3445 = vld [vmem:[#allocation13 + $0x10] sm:$0xff]
    %v3446 = vld [vmem:[#allocation13 + $0x18] sm:$0xff]
    %v3447 = vld [vmem:[#allocation13 + $0x20] sm:$0xff]
    %v3448 = vld [vmem:[#allocation13 + $0x28] sm:$0xff]
    %v3449 = vld [vmem:[#allocation13 + $0x30] sm:$0xff]
    %v3450 = vld [vmem:[#allocation13 + $0x38] sm:$0xff]
    %v3451 = vld [vmem:[#allocation13 + $0x40] sm:$0xff]
    %v3452 = vld [vmem:[#allocation13 + $0x48] sm:$0xff]
    %v3453 = vld [vmem:[#allocation13 + $0x50] sm:$0xff]
    %v3454 = vld [vmem:[#allocation13 + $0x58] sm:$0xff]
    %v3455 = vld [vmem:[#allocation13 + $0x60] sm:$0xff]
    %v3456 = vld [vmem:[#allocation13 + $0x68] sm:$0xff]
    %v3457 = vld [vmem:[#allocation13 + $0x70] sm:$0xff]
    %v3458 = vld [vmem:[#allocation13 + $0x78] sm:$0xff]
    %v3459 = vld [vmem:[%s7] sm:$0x1]
    %v3461 = vlaneseq
    %v3462 = vshrl.u32 %v3461, 7
    %v3463 = vsub.s32 0, %v3462
    %v3464 = vrot.slane %v3459, %v3463
    %3466 = vmatprep.subr.mxu0 0.0
    %3467 = vmatpush1.msra.mxu0 %v3458
    %3468 = vmatprep.subr.mxu0 0.0
    %3469 = vmatpush1.msra.mxu0 %v3457
    %3470 = vmatprep.subr.mxu0 0.0
    %3471 = vmatpush1.msra.mxu0 %v3456
    %3472 = vmatprep.subr.mxu0 0.0
    %3473 = vmatpush1.msra.mxu0 %v3455
    %3474 = vmatprep.subr.mxu0 0.0
    %3475 = vmatpush1.msra.mxu0 %v3454
    %3476 = vmatprep.subr.mxu0 0.0
    %3477 = vmatpush1.msra.mxu0 %v3453
    %3478 = vmatprep.subr.mxu0 0.0
    %3479 = vmatpush1.msra.mxu0 %v3452
    %3480 = vmatprep.subr.mxu0 0.0
    %3481 = vmatpush1.msra.mxu0 %v3451
    %3482 = vmatprep.subr.mxu0 0.0
    %3483 = vmatpush1.msra.mxu0 %v3450
    %3484 = vmatprep.subr.mxu0 0.0
    %3485 = vmatpush1.msra.mxu0 %v3449
    %3486 = vmatprep.subr.mxu0 0.0
    %3487 = vmatpush1.msra.mxu0 %v3448
    %3488 = vmatprep.subr.mxu0 0.0
    %3489 = vmatpush1.msra.mxu0 %v3447
    %3490 = vmatprep.subr.mxu0 0.0
    %3491 = vmatpush1.msra.mxu0 %v3446
    %3492 = vmatprep.subr.mxu0 0.0
    %3493 = vmatpush1.msra.mxu0 %v3445
    %3494 = vmatprep.subr.mxu0 0.0
    %3495 = vmatpush1.msra.mxu0 %v3444
    %3496 = vmatprep.subr.mxu0 0.0
    %3497 = vmatpush1.msra.mxu0 %v3443
    %3498 = vmatprep.subr.mxu0 0.0
    %3499 = vmatpush2.msra.mxu0 0.0
    %3500 = vmatprep.subr.mxu0 0.0
    %3501 = vmatpush2.msra.mxu0 0.0
    %3502 = vmatprep.subr.mxu0 0.0
    %3503 = vmatpush2.msra.mxu0 0.0
    %3504 = vmatprep.subr.mxu0 0.0
    %3505 = vmatpush2.msra.mxu0 0.0
    %3506 = vmatprep.subr.mxu0 0.0
    %3507 = vmatpush2.msra.mxu0 0.0
    %3508 = vmatprep.subr.mxu0 0.0
    %3509 = vmatpush2.msra.mxu0 0.0
    %3510 = vmatprep.subr.mxu0 0.0
    %3511 = vmatpush2.msra.mxu0 0.0
    %3512 = vmatprep.subr.mxu0 0.0
    %3513 = vmatpush2.msra.mxu0 0.0
    %3514 = vmatprep.subr.mxu0 0.0
    %3515 = vmatpush2.msra.mxu0 0.0
    %3516 = vmatprep.subr.mxu0 0.0
    %3517 = vmatpush2.msra.mxu0 0.0
    %3518 = vmatprep.subr.mxu0 0.0
    %3519 = vmatpush2.msra.mxu0 0.0
    %3520 = vmatprep.subr.mxu0 0.0
    %3521 = vmatpush2.msra.mxu0 0.0
    %3522 = vmatprep.subr.mxu0 0.0
    %3523 = vmatpush2.msra.mxu0 0.0
    %3524 = vmatprep.subr.mxu0 0.0
    %3525 = vmatpush2.msra.mxu0 0.0
    %3526 = vmatprep.subr.mxu0 0.0
    %3527 = vmatpush2.msra.mxu0 0.0
    %3528 = vmatprep.subr.mxu0 0.0
    %3529 = vmatpush2.msra.mxu0 0.0
    %3530 = vmatprep.mubr.f32.mxu0 0.0
    %3531 = vmatmul.mubr.f32.gmra.mxu0 %v3435
    %v3532 = vpop.f32.mrf.mxu0
    %v3533 = vadd.f32 %v3464, %v3532
    %v3534 = vpop.f32.mrf.mxu0
    %3535 = vmatprep.mubr.f32.mxu0 0.0
    %3536 = vmatmul.mubr.f32.gmra.mxu0 %v3436
    %v3537 = vpop.f32.mrf.mxu0
    %v3538 = vadd.f32 %v3464, %v3537
    %v3539 = vpop.f32.mrf.mxu0
    %3540 = vmatprep.mubr.f32.mxu0 0.0
    %3541 = vmatmul.mubr.f32.gmra.mxu0 %v3437
    %v3542 = vpop.f32.mrf.mxu0
    %v3543 = vadd.f32 %v3464, %v3542
    %v3544 = vpop.f32.mrf.mxu0
    %3545 = vmatprep.mubr.f32.mxu0 0.0
    %3546 = vmatmul.mubr.f32.gmra.mxu0 %v3438
    %v3547 = vpop.f32.mrf.mxu0
    %v3548 = vadd.f32 %v3464, %v3547
    %v3549 = vpop.f32.mrf.mxu0
    %3550 = vmatprep.mubr.f32.mxu0 0.0
    %3551 = vmatmul.mubr.f32.gmra.mxu0 %v3439
    %v3552 = vpop.f32.mrf.mxu0
    %v3553 = vadd.f32 %v3464, %v3552
    %v3554 = vpop.f32.mrf.mxu0
    %3555 = vmatprep.mubr.f32.mxu0 0.0
    %3556 = vmatmul.mubr.f32.gmra.mxu0 %v3440
    %v3557 = vpop.f32.mrf.mxu0
    %v3558 = vadd.f32 %v3464, %v3557
    %v3559 = vpop.f32.mrf.mxu0
    %3560 = vmatprep.mubr.f32.mxu0 0.0
    %3561 = vmatmul.mubr.f32.gmra.mxu0 %v3441
    %v3562 = vpop.f32.mrf.mxu0
    %v3563 = vadd.f32 %v3464, %v3562
    %v3564 = vpop.f32.mrf.mxu0
    %3565 = vmatprep.mubr.f32.mxu0 0.0
    %3566 = vmatmul.mubr.f32.gmra.mxu0 %v3442
    %v3567 = vpop.f32.mrf.mxu0
    %v3568 = vadd.f32 %v3464, %v3567
    %v3569 = vpop.f32.mrf.mxu0
    %3570 = vdwg.mxu0
    %3571 = vst [vmem:[#allocation15] sm:$0xff] %v3533
    %3572 = vst [vmem:[#allocation15 + $0x8] sm:$0xff] %v3538
    %3573 = vst [vmem:[#allocation15 + $0x10] sm:$0xff] %v3543
    %3574 = vst [vmem:[#allocation15 + $0x18] sm:$0xff] %v3548
    %3575 = vst [vmem:[#allocation15 + $0x20] sm:$0xff] %v3553
    %3576 = vst [vmem:[#allocation15 + $0x28] sm:$0xff] %v3558
    %3577 = vst [vmem:[#allocation15 + $0x30] sm:$0xff] %v3563
    %3578 = vst [vmem:[#allocation15 + $0x38] sm:$0xff] %v3568
    // Predicated region
    $region58: #{tpu_custom_call.1} parent=1 // pred_check
      _
    $region59: #{tpu_custom_call.1} parent=1 // pred_check_branch
      %3580 = sbr.rel (0) target = $region61
    $region60: #{tpu_custom_call.1} parent=1 // pred_region
      %s3582 = ssub.s32 1024, 1024
      %3583 = vsyncadd [#allocation6], %s3582
      %s3584 = sshll.u32 [#allocation15], 4
      %s3585 = int_to_ptr.vmem [resolvable:$true] %s3584
      %3590 = dma.vmem_to_hbm [thread:$0]  %s3585, 1024, %s8, [#allocation6], 128, 128, 8
    $region61: #{tpu_custom_call.1} parent=1 // pred_fallthru
      _
    // Predicated region
    $region62: #{tpu_custom_call.1} parent=1 // pred_check
      _
    $region63: #{tpu_custom_call.1} parent=1 // pred_check_branch
      %3592 = sbr.rel (0) target = $region65
    $region64: #{tpu_custom_call.1} parent=1 // pred_region
      %3593 = dma.done [#allocation6], 1024
    $region65: #{tpu_custom_call.1} parent=1 // pred_fallthru
      _
    %3594 = vsyncpa [#allocation5], 1
    %3595 = vsyncpa [#allocation8], 1
    %3596 = vsyncpa [#allocation11], 1
    %3597 = vsyncpa [#allocation14], 1
    %3598 = vsyncpa [#allocation6], 1

</llo_original>
